<compile_context>
chip_gen: v7x
topology: tpu7x:2x2x1
jax: 0.10.0
libtpu: 0.0.40
codegen_flags: <defaults>
</compile_context>

<pallas_src>
import jax
import jax.numpy as jnp
from jax.experimental import pallas as pl
from jax.experimental.pallas import tpu as pltpu

N_NODES = 16
N_GRAPHS = 2
F_IN = 71
F_OUT = 50
HEADS = 5
EDGE_DIM = 41
FP_DIM = 161
NEG = -1e30


# ----------------------------------------------------------------------------
# Single fused kernel: GATv2Conv + ReLU + global_max_pool + concat(fp) + MLP
# ----------------------------------------------------------------------------
def net_kernel(x_ref, adj_ref, eflat_ref, mask_ref, fp_ref,
               wl_ref, bl_ref, wr_ref, br_ref, we_ref, attp_ref, hmix_ref, gb_ref,
               w1h_ref, w1f_ref, b1_ref, w2_ref, b2_ref, w3_ref, b3_ref,
               out_ref):
    n = x_ref.shape[0]
    c_all = HEADS * F_OUT                      # 250 fused channels (lane-dense)

    x = x_ref[...]                             # [N, F_IN]
    adj = adj_ref[...]                         # [N, N]  (i = target, j = source)

    # Fused-head linear maps: single MXU issues, 250-wide results.
    xl = jnp.dot(x, wl_ref[...], preferred_element_type=jnp.float32) + bl_ref[...]   # lin_l [N,250]
    xr = jnp.dot(x, wr_ref[...], preferred_element_type=jnp.float32) + br_ref[...]   # lin_r [N,250]
    e_proj = jnp.dot(eflat_ref[...], we_ref[...],
                     preferred_element_type=jnp.float32)                              # lin_edge [N*N,250]
    attp = attp_ref[...]                       # [250,250] block-diag att weights

    # Process target-node rows in blocks of 8 to bound vreg/VMEM-temp pressure.
    BI = 8 if n % 8 == 0 else n
    agg_blocks = []
    for bi in range(n // BI):                  # static, fully unrolled (2 iters)
        r0 = bi * BI
        e_blk = e_proj[r0 * n:(r0 + BI) * n, :].reshape(BI, n, c_all)   # [BI,N,250]
        xr_blk = xr[r0:r0 + BI, :]                                      # [BI,250]
        adj_blk = adj[r0:r0 + BI, :][:, :, None]                        # [BI,N,1]

        # GATv2 scoring: s[i,j,:] = LeakyReLU(x_l[j] + x_r[i] + e[i,j]) (250-wide)
        s = xl[None, :, :] + xr_blk[:, None, :] + e_blk
        s = jnp.where(s > 0, s, 0.2 * s)                                # LeakyReLU(0.2)

        # Per-head att-weighted sum, replicated across each head's 50 channels:
        # logits[i,j,h*50+c'] = sum_c s[i,j,h*50+c] * att[h,c]
        logits = jnp.dot(s.reshape(BI * n, c_all), attp,
                         preferred_element_type=jnp.float32).reshape(BI, n, c_all)

        # Masked softmax over source nodes j (per head, replicated over channels)
        logits = jnp.where(adj_blk > 0, logits, NEG)
        logits = logits - jnp.max(logits, axis=1, keepdims=True)
        p = jnp.exp(logits)
        p = jnp.where(adj_blk > 0, p, 0.0)
        inv = pl.reciprocal(jnp.sum(p, axis=1, keepdims=True), approx=True)
        alpha = p * inv                                                 # [BI,N,250]

        # Message aggregation: agg[i, h*50+c] = sum_j alpha[i,j,h] * x_l[j, h*50+c]
        agg_blocks.append(jnp.sum(alpha * xl[None, :, :], axis=1))      # [BI,250]

    agg = jnp.concatenate(agg_blocks, axis=0) if len(agg_blocks) > 1 else agg_blocks[0]

    # Head mean (concat=False) folded into hmix (= tiled eye / HEADS), + bias, ReLU
    h_nodes = jnp.dot(agg, hmix_ref[...], preferred_element_type=jnp.float32) + gb_ref[...]
    h_nodes = jnp.maximum(h_nodes, 0.0)                                 # [N, F_OUT]

    # global_max_pool over graph membership
    mask = mask_ref[...]                                                # [G, N]
    pooled = jnp.max(jnp.where(mask[:, :, None] > 0, h_nodes[None, :, :], NEG),
                     axis=1)                                            # [G, F_OUT]

    # MLP 211->512->64->1; concat(fp) folded into the first layer's split weights
    z = (jnp.dot(pooled, w1h_ref[...], preferred_element_type=jnp.float32)
         + jnp.dot(fp_ref[...], w1f_ref[...], preferred_element_type=jnp.float32)
         + b1_ref[...])
    z = jnp.maximum(z, 0.0)
    z = jnp.dot(z, w2_ref[...], preferred_element_type=jnp.float32) + b2_ref[...]
    z = jnp.maximum(z, 0.0)
    out_ref[...] = jnp.dot(z, w3_ref[...], preferred_element_type=jnp.float32) + b3_ref[...]


# ----------------------------------------------------------------------------
# Wrapper / glue
# ----------------------------------------------------------------------------
@jax.jit
def net_forward(x, edge_index, edge_attr, batch, fp, fused):
    N = x.shape[0]
    G = fp.shape[0]
    src, dst = edge_index[0], edge_index[1]

    # Densify graph; add self loops with edge_attr fill_value='mean' (PyG semantics).
    # TODO(synk): this data-dependent scatter stays in XLA glue (not expressible
    # as a Pallas BlockSpec); it is fused under jit and tiny at this size.
    deg = jax.ops.segment_sum(jnp.ones(dst.shape, jnp.float32), dst, num_segments=N)
    loop_attr = (jax.ops.segment_sum(edge_attr, dst, num_segments=N)
                 / jnp.maximum(deg, 1.0)[:, None])
    idx = jnp.arange(N, dtype=dst.dtype)
    all_src = jnp.concatenate([src, idx])
    all_dst = jnp.concatenate([dst, idx])
    all_attr = jnp.concatenate([edge_attr, loop_attr], axis=0)
    adj = jnp.zeros((N, N), jnp.float32).at[all_dst, all_src].set(1.0)
    e_flat = (jnp.zeros((N * N, EDGE_DIM), jnp.float32)
              .at[all_dst * N + all_src].set(all_attr))

    # graph-membership mask for global_max_pool
    mask = (batch[None, :] == jnp.arange(G, dtype=batch.dtype)[:, None]).astype(jnp.float32)

    vmem = pl.BlockSpec(memory_space=pltpu.MemorySpace.VMEM)
    return pl.pallas_call(
        net_kernel,
        out_shape=jax.ShapeDtypeStruct((G, 1), jnp.float32),
        in_specs=[vmem] * 20,
        out_specs=vmem,
    )(x, adj, e_flat, mask, fp,
      fused['wl_f'], fused['bl_f'], fused['wr_f'], fused['br_f'], fused['we_f'],
      fused['attp'], fused['hmix'], fused['gat_bias'],
      fused['w1h'], fused['w1f'], fused['b1'],
      fused['w2'], fused['b2'], fused['w3'], fused['b3'])


def init_params(key):
    ks = jax.random.split(key, 8)

    def glorot(k, shape):
        fan_in, fan_out = shape[-2], shape[-1]
        lim = jnp.sqrt(6.0 / (fan_in + fan_out))
        return jax.random.uniform(k, shape, jnp.float32, -lim, lim)

    return dict(
        # GATv2Conv(71, 50, heads=5, edge_dim=41, concat=False)
        wl=glorot(ks[0], (HEADS, F_IN, F_OUT)),
        bl=jnp.zeros((HEADS, F_OUT), jnp.float32),
        wr=glorot(ks[1], (HEADS, F_IN, F_OUT)),
        br=jnp.zeros((HEADS, F_OUT), jnp.float32),
        we=glorot(ks[2], (HEADS, EDGE_DIM, F_OUT)),
        att=glorot(ks[3], (HEADS, F_OUT)),
        gat_bias=jnp.zeros((1, F_OUT), jnp.float32),
        # MLP: Linear(211,512) split into [50,512] and [161,512]
        w1h=glorot(ks[4], (F_OUT, 512)),
        w1f=glorot(ks[5], (FP_DIM, 512)),
        b1=jnp.zeros((1, 512), jnp.float32),
        w2=glorot(ks[6], (512, 64)),
        b2=jnp.zeros((1, 64), jnp.float32),
        w3=glorot(ks[7], (64, 1)),
        b3=jnp.zeros((1, 1), jnp.float32),
    )


def prepare_params(p):
    """One-time repack: fuse the 5 heads along the lane axis (250-wide)."""
    c_all = HEADS * F_OUT
    wl_f = p['wl'].transpose(1, 0, 2).reshape(F_IN, c_all)
    wr_f = p['wr'].transpose(1, 0, 2).reshape(F_IN, c_all)
    we_f = p['we'].transpose(1, 0, 2).reshape(EDGE_DIM, c_all)
    bl_f = p['bl'].reshape(1, c_all)
    br_f = p['br'].reshape(1, c_all)

    # attp[r, c] = att[head(r), chan(r)] if head(r) == head(c) else 0
    att_flat = p['att'].reshape(c_all)
    head_id = jnp.arange(c_all) // F_OUT
    attp = jnp.where(head_id[:, None] == head_id[None, :],
                     att_flat[:, None], 0.0).astype(jnp.float32)
    # hmix[h*F_OUT + c, c] = 1/HEADS  -> mean over heads (concat=False)
    hmix = jnp.tile(jnp.eye(F_OUT, dtype=jnp.float32), (HEADS, 1)) / HEADS

    return dict(wl_f=wl_f, bl_f=bl_f, wr_f=wr_f, br_f=br_f, we_f=we_f,
                attp=attp, hmix=hmix, gat_bias=p['gat_bias'],
                w1h=p['w1h'], w1f=p['w1f'], b1=p['b1'],
                w2=p['w2'], b2=p['b2'], w3=p['w3'], b3=p['b3'])


if __name__ == "__main__":
    key = jax.random.PRNGKey(0)
    k_x, k_e, k_fp, k_p = jax.random.split(key, 4)

    N, G = N_NODES, N_GRAPHS
    x = jax.random.normal(k_x, (N, F_IN), jnp.float32)
    batch = jnp.concatenate([jnp.zeros(N // 2, jnp.int32),
                             jnp.ones(N // 2, jnp.int32)])

    # deterministic edges: bidirectional chain inside each graph (no self loops)
    src_list, dst_list = [], []
    for g in range(G):
        base = g * (N // G)
        for n in range(N // G - 1):
            src_list += [base + n, base + n + 1]
            dst_list += [base + n + 1, base + n]
    edge_index = jnp.array([src_list, dst_list], jnp.int32)   # [2, E]
    E = edge_index.shape[1]
    edge_attr = jax.random.normal(k_e, (E, EDGE_DIM), jnp.float32)
    fp = jax.random.normal(k_fp, (G, FP_DIM), jnp.float32)

    params = init_params(k_p)
    fused = prepare_params(params)              # one-time weight repack

    out = net_forward(x, edge_index, edge_attr, batch, fp, fused)
    out = jax.block_until_ready(out)
    assert out.shape == (G, 1) and out.dtype == jnp.float32
    print("KERNEL_OK")
</pallas_src>

<mosaic_0001>
module attributes {stable_mosaic.version = 11 : i64} {
  func.func @net_kernel(%arg0: memref<16x71xf32, #tpu.memory_space<vmem>>, %arg1: memref<16x16xf32, #tpu.memory_space<vmem>>, %arg2: memref<256x41xf32, #tpu.memory_space<vmem>>, %arg3: memref<2x16xf32, #tpu.memory_space<vmem>>, %arg4: memref<2x161xf32, #tpu.memory_space<vmem>>, %arg5: memref<71x250xf32, #tpu.memory_space<vmem>>, %arg6: memref<1x250xf32, #tpu.memory_space<vmem>>, %arg7: memref<71x250xf32, #tpu.memory_space<vmem>>, %arg8: memref<1x250xf32, #tpu.memory_space<vmem>>, %arg9: memref<41x250xf32, #tpu.memory_space<vmem>>, %arg10: memref<250x250xf32, #tpu.memory_space<vmem>>, %arg11: memref<250x50xf32, #tpu.memory_space<vmem>>, %arg12: memref<1x50xf32, #tpu.memory_space<vmem>>, %arg13: memref<50x512xf32, #tpu.memory_space<vmem>>, %arg14: memref<161x512xf32, #tpu.memory_space<vmem>>, %arg15: memref<1x512xf32, #tpu.memory_space<vmem>>, %arg16: memref<512x64xf32, #tpu.memory_space<vmem>>, %arg17: memref<1x64xf32, #tpu.memory_space<vmem>>, %arg18: memref<64x1xf32, #tpu.memory_space<vmem>>, %arg19: memref<1x1xf32, #tpu.memory_space<vmem>>, %arg20: memref<2x1xf32, #tpu.memory_space<vmem>>) attributes {dimension_semantics = [], scalar_prefetch = 0 : i64, scratch_operands = 0 : i64, tpu.core_type = #tpu.core_type<tc>} {
    %c0 = arith.constant 0 : index
    %c0_0 = arith.constant 0 : index
    %0 = vector.load %arg0[%c0, %c0_0] : memref<16x71xf32, #tpu.memory_space<vmem>>, vector<16x71xf32>
    %c0_1 = arith.constant 0 : index
    %c0_2 = arith.constant 0 : index
    %1 = vector.load %arg1[%c0_1, %c0_2] : memref<16x16xf32, #tpu.memory_space<vmem>>, vector<16x16xf32>
    %c0_3 = arith.constant 0 : index
    %c0_4 = arith.constant 0 : index
    %2 = vector.load %arg5[%c0_3, %c0_4] : memref<71x250xf32, #tpu.memory_space<vmem>>, vector<71x250xf32>
    %cst = arith.constant dense<0.000000e+00> : vector<16x250xf32>
    %3 = tpu.matmul %0, %2, %cst {dimension_numbers = #tpu.dot_dimension_numbers<[1], [0], [0], [1], [0, 0, 1, 1], [], []>} : vector<16x71xf32>, vector<71x250xf32>, vector<16x250xf32> -> vector<16x250xf32>
    %c0_5 = arith.constant 0 : index
    %c0_6 = arith.constant 0 : index
    %4 = vector.load %arg6[%c0_5, %c0_6] : memref<1x250xf32, #tpu.memory_space<vmem>>, vector<1x250xf32>
    %5 = vector.broadcast %4 : vector<1x250xf32> to vector<16x250xf32>
    %6 = arith.addf %3, %5 : vector<16x250xf32>
    %c0_7 = arith.constant 0 : index
    %c0_8 = arith.constant 0 : index
    %7 = vector.load %arg7[%c0_7, %c0_8] : memref<71x250xf32, #tpu.memory_space<vmem>>, vector<71x250xf32>
    %cst_9 = arith.constant dense<0.000000e+00> : vector<16x250xf32>
    %8 = tpu.matmul %0, %7, %cst_9 {dimension_numbers = #tpu.dot_dimension_numbers<[1], [0], [0], [1], [0, 0, 1, 1], [], []>} : vector<16x71xf32>, vector<71x250xf32>, vector<16x250xf32> -> vector<16x250xf32>
    %c0_10 = arith.constant 0 : index
    %c0_11 = arith.constant 0 : index
    %9 = vector.load %arg8[%c0_10, %c0_11] : memref<1x250xf32, #tpu.memory_space<vmem>>, vector<1x250xf32>
    %10 = vector.broadcast %9 : vector<1x250xf32> to vector<16x250xf32>
    %11 = arith.addf %8, %10 : vector<16x250xf32>
    %c0_12 = arith.constant 0 : index
    %c0_13 = arith.constant 0 : index
    %12 = vector.load %arg2[%c0_12, %c0_13] : memref<256x41xf32, #tpu.memory_space<vmem>>, vector<256x41xf32>
    %c0_14 = arith.constant 0 : index
    %c0_15 = arith.constant 0 : index
    %13 = vector.load %arg9[%c0_14, %c0_15] : memref<41x250xf32, #tpu.memory_space<vmem>>, vector<41x250xf32>
    %cst_16 = arith.constant dense<0.000000e+00> : vector<256x250xf32>
    %14 = tpu.matmul %12, %13, %cst_16 {dimension_numbers = #tpu.dot_dimension_numbers<[1], [0], [0], [1], [0, 0, 1, 1], [], []>} : vector<256x41xf32>, vector<41x250xf32>, vector<256x250xf32> -> vector<256x250xf32>
    %c0_17 = arith.constant 0 : index
    %c0_18 = arith.constant 0 : index
    %15 = vector.load %arg10[%c0_17, %c0_18] : memref<250x250xf32, #tpu.memory_space<vmem>>, vector<250x250xf32>
    %16 = vector.extract_strided_slice %14 {offsets = [0, 0], sizes = [128, 250], strides = [1, 1]} : vector<256x250xf32> to vector<128x250xf32>
    %17 = vector.shape_cast %16 : vector<128x250xf32> to vector<8x16x250xf32>
    %18 = vector.extract_strided_slice %11 {offsets = [0, 0], sizes = [8, 250], strides = [1, 1]} : vector<16x250xf32> to vector<8x250xf32>
    %19 = vector.extract_strided_slice %1 {offsets = [0, 0], sizes = [8, 16], strides = [1, 1]} : vector<16x16xf32> to vector<8x16xf32>
    %20 = vector.shape_cast %19 : vector<8x16xf32> to vector<8x16x1xf32>
    %21 = vector.shape_cast %6 : vector<16x250xf32> to vector<1x16x250xf32>
    %22 = vector.shape_cast %18 : vector<8x250xf32> to vector<8x1x250xf32>
    %23 = vector.broadcast %21 : vector<1x16x250xf32> to vector<8x16x250xf32>
    %24 = vector.broadcast %22 : vector<8x1x250xf32> to vector<8x16x250xf32>
    %25 = arith.addf %23, %24 : vector<8x16x250xf32>
    %26 = arith.addf %25, %17 : vector<8x16x250xf32>
    %cst_19 = arith.constant 0.000000e+00 : f32
    %27 = vector.broadcast %cst_19 : f32 to vector<8x16x250xf32>
    %28 = arith.cmpf ogt, %26, %27 : vector<8x16x250xf32>
    %cst_20 = arith.constant 2.000000e-01 : f32
    %29 = vector.broadcast %cst_20 : f32 to vector<8x16x250xf32>
    %30 = arith.mulf %29, %26 : vector<8x16x250xf32>
    %31 = arith.select %28, %26, %30 : vector<8x16x250xi1>, vector<8x16x250xf32>
    %32 = vector.shape_cast %31 : vector<8x16x250xf32> to vector<128x250xf32>
    %cst_21 = arith.constant dense<0.000000e+00> : vector<128x250xf32>
    %33 = tpu.matmul %32, %15, %cst_21 {dimension_numbers = #tpu.dot_dimension_numbers<[1], [0], [0], [1], [0, 0, 1, 1], [], []>} : vector<128x250xf32>, vector<250x250xf32>, vector<128x250xf32> -> vector<128x250xf32>
    %34 = vector.shape_cast %33 : vector<128x250xf32> to vector<8x16x250xf32>
    %cst_22 = arith.constant 0.000000e+00 : f32
    %35 = vector.broadcast %cst_22 : f32 to vector<8x16x1xf32>
    %36 = arith.cmpf ogt, %20, %35 : vector<8x16x1xf32>
    %cst_23 = arith.constant -1.000000e+30 : f32
    %37 = vector.shape_cast %36 : vector<8x16x1xi1> to vector<8x16x1xi1>
    %38 = vector.broadcast %37 : vector<8x16x1xi1> to vector<8x16x250xi1>
    %39 = vector.broadcast %cst_23 : f32 to vector<8x16x250xf32>
    %40 = arith.select %38, %34, %39 : vector<8x16x250xi1>, vector<8x16x250xf32>
    %cst_24 = arith.constant dense<0xFF800000> : vector<8x250xf32>
    %41 = vector.multi_reduction <maximumf>, %40, %cst_24 [1] : vector<8x16x250xf32> to vector<8x250xf32>
    %42 = vector.shape_cast %41 : vector<8x250xf32> to vector<8x1x250xf32>
    %43 = vector.broadcast %42 : vector<8x1x250xf32> to vector<8x16x250xf32>
    %44 = arith.subf %40, %43 : vector<8x16x250xf32>
    %45 = math.exp %44 : vector<8x16x250xf32>
    %cst_25 = arith.constant 0.000000e+00 : f32
    %46 = vector.broadcast %cst_25 : f32 to vector<8x16x1xf32>
    %47 = arith.cmpf ogt, %20, %46 : vector<8x16x1xf32>
    %cst_26 = arith.constant 0.000000e+00 : f32
    %48 = vector.shape_cast %47 : vector<8x16x1xi1> to vector<8x16x1xi1>
    %49 = vector.broadcast %48 : vector<8x16x1xi1> to vector<8x16x250xi1>
    %50 = vector.broadcast %cst_26 : f32 to vector<8x16x250xf32>
    %51 = arith.select %49, %45, %50 : vector<8x16x250xi1>, vector<8x16x250xf32>
    %cst_27 = arith.constant dense<0.000000e+00> : vector<8x250xf32>
    %52 = vector.multi_reduction <add>, %51, %cst_27 [1] : vector<8x16x250xf32> to vector<8x250xf32>
    %53 = vector.shape_cast %52 : vector<8x250xf32> to vector<8x1x250xf32>
    %54 = tpu.reciprocal %53 {approx = true} : vector<8x1x250xf32> -> vector<8x1x250xf32>
    %55 = vector.broadcast %54 : vector<8x1x250xf32> to vector<8x16x250xf32>
    %56 = arith.mulf %51, %55 : vector<8x16x250xf32>
    %57 = vector.shape_cast %6 : vector<16x250xf32> to vector<1x16x250xf32>
    %58 = vector.broadcast %57 : vector<1x16x250xf32> to vector<8x16x250xf32>
    %59 = arith.mulf %56, %58 : vector<8x16x250xf32>
    %cst_28 = arith.constant dense<0.000000e+00> : vector<8x250xf32>
    %60 = vector.multi_reduction <add>, %59, %cst_28 [1] : vector<8x16x250xf32> to vector<8x250xf32>
    %61 = vector.extract_strided_slice %14 {offsets = [128, 0], sizes = [128, 250], strides = [1, 1]} : vector<256x250xf32> to vector<128x250xf32>
    %62 = vector.shape_cast %61 : vector<128x250xf32> to vector<8x16x250xf32>
    %63 = vector.extract_strided_slice %11 {offsets = [8, 0], sizes = [8, 250], strides = [1, 1]} : vector<16x250xf32> to vector<8x250xf32>
    %64 = vector.extract_strided_slice %1 {offsets = [8, 0], sizes = [8, 16], strides = [1, 1]} : vector<16x16xf32> to vector<8x16xf32>
    %65 = vector.shape_cast %64 : vector<8x16xf32> to vector<8x16x1xf32>
    %66 = vector.shape_cast %6 : vector<16x250xf32> to vector<1x16x250xf32>
    %67 = vector.shape_cast %63 : vector<8x250xf32> to vector<8x1x250xf32>
    %68 = vector.broadcast %66 : vector<1x16x250xf32> to vector<8x16x250xf32>
    %69 = vector.broadcast %67 : vector<8x1x250xf32> to vector<8x16x250xf32>
    %70 = arith.addf %68, %69 : vector<8x16x250xf32>
    %71 = arith.addf %70, %62 : vector<8x16x250xf32>
    %cst_29 = arith.constant 0.000000e+00 : f32
    %72 = vector.broadcast %cst_29 : f32 to vector<8x16x250xf32>
    %73 = arith.cmpf ogt, %71, %72 : vector<8x16x250xf32>
    %cst_30 = arith.constant 2.000000e-01 : f32
    %74 = vector.broadcast %cst_30 : f32 to vector<8x16x250xf32>
    %75 = arith.mulf %74, %71 : vector<8x16x250xf32>
    %76 = arith.select %73, %71, %75 : vector<8x16x250xi1>, vector<8x16x250xf32>
    %77 = vector.shape_cast %76 : vector<8x16x250xf32> to vector<128x250xf32>
    %cst_31 = arith.constant dense<0.000000e+00> : vector<128x250xf32>
    %78 = tpu.matmul %77, %15, %cst_31 {dimension_numbers = #tpu.dot_dimension_numbers<[1], [0], [0], [1], [0, 0, 1, 1], [], []>} : vector<128x250xf32>, vector<250x250xf32>, vector<128x250xf32> -> vector<128x250xf32>
    %79 = vector.shape_cast %78 : vector<128x250xf32> to vector<8x16x250xf32>
    %cst_32 = arith.constant 0.000000e+00 : f32
    %80 = vector.broadcast %cst_32 : f32 to vector<8x16x1xf32>
    %81 = arith.cmpf ogt, %65, %80 : vector<8x16x1xf32>
    %cst_33 = arith.constant -1.000000e+30 : f32
    %82 = vector.shape_cast %81 : vector<8x16x1xi1> to vector<8x16x1xi1>
    %83 = vector.broadcast %82 : vector<8x16x1xi1> to vector<8x16x250xi1>
    %84 = vector.broadcast %cst_33 : f32 to vector<8x16x250xf32>
    %85 = arith.select %83, %79, %84 : vector<8x16x250xi1>, vector<8x16x250xf32>
    %cst_34 = arith.constant dense<0xFF800000> : vector<8x250xf32>
    %86 = vector.multi_reduction <maximumf>, %85, %cst_34 [1] : vector<8x16x250xf32> to vector<8x250xf32>
    %87 = vector.shape_cast %86 : vector<8x250xf32> to vector<8x1x250xf32>
    %88 = vector.broadcast %87 : vector<8x1x250xf32> to vector<8x16x250xf32>
    %89 = arith.subf %85, %88 : vector<8x16x250xf32>
    %90 = math.exp %89 : vector<8x16x250xf32>
    %cst_35 = arith.constant 0.000000e+00 : f32
    %91 = vector.broadcast %cst_35 : f32 to vector<8x16x1xf32>
    %92 = arith.cmpf ogt, %65, %91 : vector<8x16x1xf32>
    %cst_36 = arith.constant 0.000000e+00 : f32
    %93 = vector.shape_cast %92 : vector<8x16x1xi1> to vector<8x16x1xi1>
    %94 = vector.broadcast %93 : vector<8x16x1xi1> to vector<8x16x250xi1>
    %95 = vector.broadcast %cst_36 : f32 to vector<8x16x250xf32>
    %96 = arith.select %94, %90, %95 : vector<8x16x250xi1>, vector<8x16x250xf32>
    %cst_37 = arith.constant dense<0.000000e+00> : vector<8x250xf32>
    %97 = vector.multi_reduction <add>, %96, %cst_37 [1] : vector<8x16x250xf32> to vector<8x250xf32>
    %98 = vector.shape_cast %97 : vector<8x250xf32> to vector<8x1x250xf32>
    %99 = tpu.reciprocal %98 {approx = true} : vector<8x1x250xf32> -> vector<8x1x250xf32>
    %100 = vector.broadcast %99 : vector<8x1x250xf32> to vector<8x16x250xf32>
    %101 = arith.mulf %96, %100 : vector<8x16x250xf32>
    %102 = vector.shape_cast %6 : vector<16x250xf32> to vector<1x16x250xf32>
    %103 = vector.broadcast %102 : vector<1x16x250xf32> to vector<8x16x250xf32>
    %104 = arith.mulf %101, %103 : vector<8x16x250xf32>
    %cst_38 = arith.constant dense<0.000000e+00> : vector<8x250xf32>
    %105 = vector.multi_reduction <add>, %104, %cst_38 [1] : vector<8x16x250xf32> to vector<8x250xf32>
    %106 = tpu.concatenate %60, %105 in 0 : vector<8x250xf32>, vector<8x250xf32> -> vector<16x250xf32>
    %c0_39 = arith.constant 0 : index
    %c0_40 = arith.constant 0 : index
    %107 = vector.load %arg11[%c0_39, %c0_40] : memref<250x50xf32, #tpu.memory_space<vmem>>, vector<250x50xf32>
    %cst_41 = arith.constant dense<0.000000e+00> : vector<16x50xf32>
    %108 = tpu.matmul %106, %107, %cst_41 {dimension_numbers = #tpu.dot_dimension_numbers<[1], [0], [0], [1], [0, 0, 1, 1], [], []>} : vector<16x250xf32>, vector<250x50xf32>, vector<16x50xf32> -> vector<16x50xf32>
    %c0_42 = arith.constant 0 : index
    %c0_43 = arith.constant 0 : index
    %109 = vector.load %arg12[%c0_42, %c0_43] : memref<1x50xf32, #tpu.memory_space<vmem>>, vector<1x50xf32>
    %110 = vector.broadcast %109 : vector<1x50xf32> to vector<16x50xf32>
    %111 = arith.addf %108, %110 : vector<16x50xf32>
    %cst_44 = arith.constant 0.000000e+00 : f32
    %112 = vector.broadcast %cst_44 : f32 to vector<16x50xf32>
    %113 = arith.maximumf %111, %112 : vector<16x50xf32>
    %c0_45 = arith.constant 0 : index
    %c0_46 = arith.constant 0 : index
    %114 = vector.load %arg3[%c0_45, %c0_46] : memref<2x16xf32, #tpu.memory_space<vmem>>, vector<2x16xf32>
    %115 = vector.shape_cast %114 : vector<2x16xf32> to vector<2x16x1xf32>
    %cst_47 = arith.constant 0.000000e+00 : f32
    %116 = vector.broadcast %cst_47 : f32 to vector<2x16x1xf32>
    %117 = arith.cmpf ogt, %115, %116 : vector<2x16x1xf32>
    %118 = vector.shape_cast %113 : vector<16x50xf32> to vector<1x16x50xf32>
    %cst_48 = arith.constant -1.000000e+30 : f32
    %119 = vector.shape_cast %117 : vector<2x16x1xi1> to vector<2x16x1xi1>
    %120 = vector.broadcast %119 : vector<2x16x1xi1> to vector<2x16x50xi1>
    %121 = vector.shape_cast %118 : vector<1x16x50xf32> to vector<1x16x50xf32>
    %122 = vector.broadcast %121 : vector<1x16x50xf32> to vector<2x16x50xf32>
    %123 = vector.broadcast %cst_48 : f32 to vector<2x16x50xf32>
    %124 = arith.select %120, %122, %123 : vector<2x16x50xi1>, vector<2x16x50xf32>
    %cst_49 = arith.constant dense<0xFF800000> : vector<2x50xf32>
    %125 = vector.multi_reduction <maximumf>, %124, %cst_49 [1] : vector<2x16x50xf32> to vector<2x50xf32>
    %c0_50 = arith.constant 0 : index
    %c0_51 = arith.constant 0 : index
    %126 = vector.load %arg13[%c0_50, %c0_51] : memref<50x512xf32, #tpu.memory_space<vmem>>, vector<50x512xf32>
    %cst_52 = arith.constant dense<0.000000e+00> : vector<2x512xf32>
    %127 = tpu.matmul %125, %126, %cst_52 {dimension_numbers = #tpu.dot_dimension_numbers<[1], [0], [0], [1], [0, 0, 1, 1], [], []>} : vector<2x50xf32>, vector<50x512xf32>, vector<2x512xf32> -> vector<2x512xf32>
    %c0_53 = arith.constant 0 : index
    %c0_54 = arith.constant 0 : index
    %128 = vector.load %arg4[%c0_53, %c0_54] : memref<2x161xf32, #tpu.memory_space<vmem>>, vector<2x161xf32>
    %c0_55 = arith.constant 0 : index
    %c0_56 = arith.constant 0 : index
    %129 = vector.load %arg14[%c0_55, %c0_56] : memref<161x512xf32, #tpu.memory_space<vmem>>, vector<161x512xf32>
    %cst_57 = arith.constant dense<0.000000e+00> : vector<2x512xf32>
    %130 = tpu.matmul %128, %129, %cst_57 {dimension_numbers = #tpu.dot_dimension_numbers<[1], [0], [0], [1], [0, 0, 1, 1], [], []>} : vector<2x161xf32>, vector<161x512xf32>, vector<2x512xf32> -> vector<2x512xf32>
    %131 = arith.addf %127, %130 : vector<2x512xf32>
    %c0_58 = arith.constant 0 : index
    %c0_59 = arith.constant 0 : index
    %132 = vector.load %arg15[%c0_58, %c0_59] : memref<1x512xf32, #tpu.memory_space<vmem>>, vector<1x512xf32>
    %133 = vector.broadcast %132 : vector<1x512xf32> to vector<2x512xf32>
    %134 = arith.addf %131, %133 : vector<2x512xf32>
    %cst_60 = arith.constant 0.000000e+00 : f32
    %135 = vector.broadcast %cst_60 : f32 to vector<2x512xf32>
    %136 = arith.maximumf %134, %135 : vector<2x512xf32>
    %c0_61 = arith.constant 0 : index
    %c0_62 = arith.constant 0 : index
    %137 = vector.load %arg16[%c0_61, %c0_62] : memref<512x64xf32, #tpu.memory_space<vmem>>, vector<512x64xf32>
    %cst_63 = arith.constant dense<0.000000e+00> : vector<2x64xf32>
    %138 = tpu.matmul %136, %137, %cst_63 {dimension_numbers = #tpu.dot_dimension_numbers<[1], [0], [0], [1], [0, 0, 1, 1], [], []>} : vector<2x512xf32>, vector<512x64xf32>, vector<2x64xf32> -> vector<2x64xf32>
    %c0_64 = arith.constant 0 : index
    %c0_65 = arith.constant 0 : index
    %139 = vector.load %arg17[%c0_64, %c0_65] : memref<1x64xf32, #tpu.memory_space<vmem>>, vector<1x64xf32>
    %140 = vector.broadcast %139 : vector<1x64xf32> to vector<2x64xf32>
    %141 = arith.addf %138, %140 : vector<2x64xf32>
    %cst_66 = arith.constant 0.000000e+00 : f32
    %142 = vector.broadcast %cst_66 : f32 to vector<2x64xf32>
    %143 = arith.maximumf %141, %142 : vector<2x64xf32>
    %c0_67 = arith.constant 0 : index
    %c0_68 = arith.constant 0 : index
    %144 = vector.load %arg18[%c0_67, %c0_68] : memref<64x1xf32, #tpu.memory_space<vmem>>, vector<64x1xf32>
    %cst_69 = arith.constant dense<0.000000e+00> : vector<2x1xf32>
    %145 = tpu.matmul %143, %144, %cst_69 {dimension_numbers = #tpu.dot_dimension_numbers<[1], [0], [0], [1], [0, 0, 1, 1], [], []>} : vector<2x64xf32>, vector<64x1xf32>, vector<2x1xf32> -> vector<2x1xf32>
    %c0_70 = arith.constant 0 : index
    %c0_71 = arith.constant 0 : index
    %146 = vector.load %arg19[%c0_70, %c0_71] : memref<1x1xf32, #tpu.memory_space<vmem>>, vector<1x1xf32>
    %147 = vector.broadcast %146 : vector<1x1xf32> to vector<2x1xf32>
    %148 = arith.addf %145, %147 : vector<2x1xf32>
    %c0_72 = arith.constant 0 : index
    %c0_73 = arith.constant 0 : index
    %149 = vector.load %arg20[%c0_72, %c0_73] : memref<2x1xf32, #tpu.memory_space<vmem>>, vector<2x1xf32>
    tpu.vector_store %arg20[%c0_72, %c0_73], %148 {strides = array<i32>} : memref<2x1xf32, #tpu.memory_space<vmem>>, vector<2x1xf32>,
    return
  }
}

</mosaic_0001>

<llo_original>
// kernel: net_forward.1
$region0: #{net_forward.1}
  #allocation0 [shape = 'u32[]', space=smem, size = 0x4, offset = 0x4, fixed_abs, tag = 'smem constant byte address 0x4 - core index']
  #allocation1 [shape = 'u32[144,128]{1,0:T(1,128)}', space=vmem, size = 0x12000, scoped, tag = 'internal scratch']
  #allocation2 [shape = 'f32[1,1]{1,0:T(1,128)S(1)}', space=vmem, size = 0x200, scoped, tag = 'scoped memory for net_forward.1']
  %s0 = inlined_call_operand.vmem [shape: f32[16,71], index: 0, kind: input, shape index: {}]
  %s1 = inlined_call_operand.vmem [shape: f32[16,16], index: 1, kind: input, shape index: {}]
  %s2 = inlined_call_operand.vmem [shape: f32[256,41], index: 2, kind: input, shape index: {}]
  %s3 = inlined_call_operand.vmem [shape: f32[2,16], index: 3, kind: input, shape index: {}]
  %s4 = inlined_call_operand.vmem [shape: f32[2,161], index: 4, kind: input, shape index: {}]
  %s5 = inlined_call_operand.vmem [shape: f32[71,250], index: 5, kind: input, shape index: {}]
  %s6 = inlined_call_operand.vmem [shape: f32[1,250], index: 6, kind: input, shape index: {}]
  %s7 = inlined_call_operand.vmem [shape: f32[71,250], index: 7, kind: input, shape index: {}]
  %s8 = inlined_call_operand.vmem [shape: f32[1,250], index: 8, kind: input, shape index: {}]
  %s9 = inlined_call_operand.vmem [shape: f32[41,250], index: 9, kind: input, shape index: {}]
  %s10 = inlined_call_operand.vmem [shape: f32[250,250], index: 10, kind: input, shape index: {}]
  %s11 = inlined_call_operand.vmem [shape: f32[250,50], index: 11, kind: input, shape index: {}]
  %s12 = inlined_call_operand.vmem [shape: f32[1,50], index: 12, kind: input, shape index: {}]
  %s13 = inlined_call_operand.vmem [shape: f32[50,512], index: 13, kind: input, shape index: {}]
  %s14 = inlined_call_operand.vmem [shape: f32[161,512], index: 14, kind: input, shape index: {}]
  %s15 = inlined_call_operand.vmem [shape: f32[1,512], index: 15, kind: input, shape index: {}]
  %s16 = inlined_call_operand.vmem [shape: f32[512,64], index: 16, kind: input, shape index: {}]
  %s17 = inlined_call_operand.vmem [shape: f32[1,64], index: 17, kind: input, shape index: {}]
  %s18 = inlined_call_operand.vmem [shape: f32[64,1], index: 18, kind: input, shape index: {}]
  %s19 = inlined_call_operand.<no memory space> [shape: f32[1,1], index: 19, kind: input, shape index: {}]
  %s20 = inlined_call_operand.vmem [shape: f32[2,1], index: 20, kind: output, shape index: {}]
  %s21 = sld [smem:[#allocation0]]
  $region90: #{net_forward.1} parent=0
    _
  %s23 = ssub.s32 1, %s21
  %s24 = scalar_select 0, %s23, %s21
  %v25 = vstv %s19
  %26 = vst [vmem:[#allocation2] sm:$0x1] %v25
  // Predicated region
  $region2: #{net_forward.1} parent=0 // pred_check
    _
  $region3: #{net_forward.1} parent=0 // pred_check_branch
    %28 = sbr.rel (0) target = $region5
  $region4: #{net_forward.1} parent=0 // pred_region
    _
  $region5: #{net_forward.1} parent=0 // pred_fallthru
    _
  // Predicated region
  $region6: #{net_forward.1} parent=0 // pred_check
    _
  $region7: #{net_forward.1} parent=0 // pred_check_branch
    %30 = sbr.rel (0) target = $region9
  $region8: #{net_forward.1} parent=0 // pred_region
    _
  $region9: #{net_forward.1} parent=0 // pred_fallthru
    _
  // Predicated region
  $region10: #{net_forward.1} parent=0 // pred_check
    _
  $region11: #{net_forward.1} parent=0 // pred_check_branch
    %32 = sbr.rel (0) target = $region13
  $region12: #{net_forward.1} parent=0 // pred_region
    _
  $region13: #{net_forward.1} parent=0 // pred_fallthru
    _
  // Predicated region
  $region14: #{net_forward.1} parent=0 // pred_check
    _
  $region15: #{net_forward.1} parent=0 // pred_check_branch
    %34 = sbr.rel (0) target = $region17
  $region16: #{net_forward.1} parent=0 // pred_region
    _
  $region17: #{net_forward.1} parent=0 // pred_fallthru
    _
  // Predicated region
  $region18: #{net_forward.1} parent=0 // pred_check
    _
  $region19: #{net_forward.1} parent=0 // pred_check_branch
    %36 = sbr.rel (0) target = $region21
  $region20: #{net_forward.1} parent=0 // pred_region
    _
  $region21: #{net_forward.1} parent=0 // pred_fallthru
    _
  // Predicated region
  $region22: #{net_forward.1} parent=0 // pred_check
    _
  $region23: #{net_forward.1} parent=0 // pred_check_branch
    %38 = sbr.rel (0) target = $region25
  $region24: #{net_forward.1} parent=0 // pred_region
    _
  $region25: #{net_forward.1} parent=0 // pred_fallthru
    _
  // Predicated region
  $region26: #{net_forward.1} parent=0 // pred_check
    _
  $region27: #{net_forward.1} parent=0 // pred_check_branch
    %40 = sbr.rel (0) target = $region29
  $region28: #{net_forward.1} parent=0 // pred_region
    _
  $region29: #{net_forward.1} parent=0 // pred_fallthru
    _
  // Predicated region
  $region30: #{net_forward.1} parent=0 // pred_check
    _
  $region31: #{net_forward.1} parent=0 // pred_check_branch
    %42 = sbr.rel (0) target = $region33
  $region32: #{net_forward.1} parent=0 // pred_region
    _
  $region33: #{net_forward.1} parent=0 // pred_fallthru
    _
  // Predicated region
  $region34: #{net_forward.1} parent=0 // pred_check
    _
  $region35: #{net_forward.1} parent=0 // pred_check_branch
    %44 = sbr.rel (0) target = $region37
  $region36: #{net_forward.1} parent=0 // pred_region
    _
  $region37: #{net_forward.1} parent=0 // pred_fallthru
    _
  // Predicated region
  $region38: #{net_forward.1} parent=0 // pred_check
    _
  $region39: #{net_forward.1} parent=0 // pred_check_branch
    %46 = sbr.rel (0) target = $region41
  $region40: #{net_forward.1} parent=0 // pred_region
    _
  $region41: #{net_forward.1} parent=0 // pred_fallthru
    _
  // Predicated region
  $region42: #{net_forward.1} parent=0 // pred_check
    _
  $region43: #{net_forward.1} parent=0 // pred_check_branch
    %48 = sbr.rel (0) target = $region45
  $region44: #{net_forward.1} parent=0 // pred_region
    _
  $region45: #{net_forward.1} parent=0 // pred_fallthru
    _
  // Predicated region
  $region46: #{net_forward.1} parent=0 // pred_check
    _
  $region47: #{net_forward.1} parent=0 // pred_check_branch
    %50 = sbr.rel (0) target = $region49
  $region48: #{net_forward.1} parent=0 // pred_region
    _
  $region49: #{net_forward.1} parent=0 // pred_fallthru
    _
  // Predicated region
  $region50: #{net_forward.1} parent=0 // pred_check
    _
  $region51: #{net_forward.1} parent=0 // pred_check_branch
    %52 = sbr.rel (0) target = $region53
  $region52: #{net_forward.1} parent=0 // pred_region
    _
  $region53: #{net_forward.1} parent=0 // pred_fallthru
    _
  // Predicated region
  $region54: #{net_forward.1} parent=0 // pred_check
    _
  $region55: #{net_forward.1} parent=0 // pred_check_branch
    %54 = sbr.rel (0) target = $region57
  $region56: #{net_forward.1} parent=0 // pred_region
    _
  $region57: #{net_forward.1} parent=0 // pred_fallthru
    _
  // Predicated region
  $region58: #{net_forward.1} parent=0 // pred_check
    _
  $region59: #{net_forward.1} parent=0 // pred_check_branch
    %56 = sbr.rel (0) target = $region61
  $region60: #{net_forward.1} parent=0 // pred_region
    _
  $region61: #{net_forward.1} parent=0 // pred_fallthru
    _
  // Predicated region
  $region62: #{net_forward.1} parent=0 // pred_check
    _
  $region63: #{net_forward.1} parent=0 // pred_check_branch
    %58 = sbr.rel (0) target = $region65
  $region64: #{net_forward.1} parent=0 // pred_region
    _
  $region65: #{net_forward.1} parent=0 // pred_fallthru
    _
  // Predicated region
  $region66: #{net_forward.1} parent=0 // pred_check
    _
  $region67: #{net_forward.1} parent=0 // pred_check_branch
    %60 = sbr.rel (0) target = $region69
  $region68: #{net_forward.1} parent=0 // pred_region
    _
  $region69: #{net_forward.1} parent=0 // pred_fallthru
    _
  // Predicated region
  $region70: #{net_forward.1} parent=0 // pred_check
    _
  $region71: #{net_forward.1} parent=0 // pred_check_branch
    %62 = sbr.rel (0) target = $region73
  $region72: #{net_forward.1} parent=0 // pred_region
    _
  $region73: #{net_forward.1} parent=0 // pred_fallthru
    _
  // Predicated region
  $region74: #{net_forward.1} parent=0 // pred_check
    _
  $region75: #{net_forward.1} parent=0 // pred_check_branch
    %64 = sbr.rel (0) target = $region77
  $region76: #{net_forward.1} parent=0 // pred_region
    _
  $region77: #{net_forward.1} parent=0 // pred_fallthru
    _
  // Predicated region
  $region78: #{net_forward.1} parent=0 // pred_check
    _
  $region79: #{net_forward.1} parent=0 // pred_check_branch
    %66 = sbr.rel (0) target = $region81
  $region80: #{net_forward.1} parent=0 // pred_region
    _
  $region81: #{net_forward.1} parent=0 // pred_fallthru
    _
  %v67 = vld [vmem:[%s0] sm:$0xff]
  %v68 = vld [vmem:[%s0 + $0x8] sm:$0xff]
  %v69 = vld [vmem:[%s1] sm:$0xff]
  %v70 = vld [vmem:[%s1 + $0x8] sm:$0xff]
  %v71 = vld [vmem:[%s5] sm:$0xff]
  %v72 = vld [vmem:[%s5 + $0x8] sm:$0xff]
  %v73 = vld [vmem:[%s5 + $0x10] sm:$0xff]
  %v74 = vld [vmem:[%s5 + $0x18] sm:$0xff]
  %v75 = vld [vmem:[%s5 + $0x20] sm:$0xff]
  %v76 = vld [vmem:[%s5 + $0x28] sm:$0xff]
  %v77 = vld [vmem:[%s5 + $0x30] sm:$0xff]
  %v78 = vld [vmem:[%s5 + $0x38] sm:$0xff]
  %v79 = vld [vmem:[%s5 + $0x40] sm:$0xff]
  %v80 = vld [vmem:[%s5 + $0x48] sm:$0xff]
  %v81 = vld [vmem:[%s5 + $0x50] sm:$0xff]
  %v82 = vld [vmem:[%s5 + $0x58] sm:$0xff]
  %v83 = vld [vmem:[%s5 + $0x60] sm:$0xff]
  %v84 = vld [vmem:[%s5 + $0x68] sm:$0xff]
  %v85 = vld [vmem:[%s5 + $0x70] sm:$0xff]
  %v86 = vld [vmem:[%s5 + $0x78] sm:$0xff]
  %v87 = vld [vmem:[%s5 + $0x80] sm:$0x7f]
  %v88 = vld [vmem:[%s5 + $0x88] sm:$0x7f]
  %v89 = vld [vmem:[%s6] sm:$0x3]
  %v91 = vlaneseq
  %v92 = vshrl.u32 %v91, 7
  %v93 = vsub.s32 0, %v92
  %v94 = vrot.slane %v89, %v93
  %v95 = vlaneseq
  %v96 = vshrl.u32 %v95, 7
  %v97 = vsub.s32 1, %v96
  %v98 = vrot.slane %v89, %v97
  %vm101 = vcmask 580608
  %v103 = vsel %vm101, %v67, 0
  %v106 = vsel %vm101, %v68, 0
  %vm108 = vcmask 1046528
  %v110 = vsel %vm108, %v87, 0
  %v113 = vsel %vm108, %v88, 0
  %115 = vmatprep.subr.mxu0 %v72
  %116 = vmatpush1.msra.mxu0 %v71
  %117 = vmatprep.subr.mxu0 %v74
  %118 = vmatpush1.msra.mxu0 %v73
  %119 = vmatprep.subr.mxu0 %v76
  %120 = vmatpush1.msra.mxu0 %v75
  %121 = vmatprep.subr.mxu0 %v78
  %122 = vmatpush1.msra.mxu0 %v77
  %123 = vmatprep.subr.mxu0 %v80
  %124 = vmatpush1.msra.mxu0 %v79
  %125 = vmatprep.subr.mxu0 %v82
  %126 = vmatpush1.msra.mxu0 %v81
  %127 = vmatprep.subr.mxu0 %v84
  %128 = vmatpush1.msra.mxu0 %v83
  %129 = vmatprep.subr.mxu0 %v86
  %130 = vmatpush1.msra.mxu0 %v85
  %131 = vmatprep.subr.mxu0 %v113
  %132 = vmatpush1.msra.mxu0 %v110
  %133 = vmatprep.subr.mxu0 0.0
  %134 = vmatpush1.msra.mxu0 0.0
  %135 = vmatprep.subr.mxu0 0.0
  %136 = vmatpush1.msra.mxu0 0.0
  %137 = vmatprep.subr.mxu0 0.0
  %138 = vmatpush1.msra.mxu0 0.0
  %139 = vmatprep.subr.mxu0 0.0
  %140 = vmatpush1.msra.mxu0 0.0
  %141 = vmatprep.subr.mxu0 0.0
  %142 = vmatpush1.msra.mxu0 0.0
  %143 = vmatprep.subr.mxu0 0.0
  %144 = vmatpush1.msra.mxu0 0.0
  %145 = vmatprep.subr.mxu0 0.0
  %146 = vmatpush1.msra.mxu0 0.0
  %147 = vmatprep.subr.mxu0 0.0
  %148 = vmatpush1.msra.mxu0 0.0
  %149 = vmatprep.subr.mxu0 0.0
  %150 = vmatpush1.msra.mxu0 0.0
  %151 = vmatprep.subr.mxu0 0.0
  %152 = vmatpush1.msra.mxu0 0.0
  %153 = vmatprep.subr.mxu0 0.0
  %154 = vmatpush1.msra.mxu0 0.0
  %155 = vmatprep.subr.mxu0 0.0
  %156 = vmatpush1.msra.mxu0 0.0
  %157 = vmatprep.subr.mxu0 0.0
  %158 = vmatpush1.msra.mxu0 0.0
  %159 = vmatprep.subr.mxu0 0.0
  %160 = vmatpush1.msra.mxu0 0.0
  %161 = vmatprep.subr.mxu0 0.0
  %162 = vmatpush1.msra.mxu0 0.0
  %163 = vmatprep.subr.mxu0 0.0
  %164 = vmatpush1.msra.mxu0 0.0
  %165 = vmatprep.subr.mxu0 0.0
  %166 = vmatpush1.msra.mxu0 0.0
  %167 = vmatprep.subr.mxu0 0.0
  %168 = vmatpush1.msra.mxu0 0.0
  %169 = vmatprep.subr.mxu0 0.0
  %170 = vmatpush1.msra.mxu0 0.0
  %171 = vmatprep.subr.mxu0 0.0
  %172 = vmatpush1.msra.mxu0 0.0
  %173 = vmatprep.subr.mxu0 0.0
  %174 = vmatpush1.msra.mxu0 0.0
  %175 = vmatprep.subr.mxu0 0.0
  %176 = vmatpush1.msra.mxu0 0.0
  %177 = vmatprep.subr.mxu0 0.0
  %178 = vmatpush1.msra.mxu0 0.0
  %179 = vmatprep.mubr.f32.mxu0 0.0
  %180 = vmatmul.mubr.f32.gmra.mrb[0].mxu0 %v103
  %v181 = vpop.f32.mrb[0].mxu0
  %v182 = vadd.f32 %v94, %v181
  %v183 = vpop.f32.mrb[0].mxu0
  %v184 = vadd.f32 %v98, %v183
  %185 = vmatprep.mubr.f32.mxu0 0.0
  %186 = vmatmul.mubr.f32.gmra.mrb[0].mxu0 %v106
  %v187 = vpop.f32.mrb[0].mxu0
  %v188 = vadd.f32 %v94, %v187
  %v189 = vpop.f32.mrb[0].mxu0
  %v190 = vadd.f32 %v98, %v189
  %191 = vdwg.mxu0
  %v192 = vld [vmem:[%s7] sm:$0xff]
  %v193 = vld [vmem:[%s7 + $0x8] sm:$0xff]
  %v194 = vld [vmem:[%s7 + $0x10] sm:$0xff]
  %v195 = vld [vmem:[%s7 + $0x18] sm:$0xff]
  %v196 = vld [vmem:[%s7 + $0x20] sm:$0xff]
  %v197 = vld [vmem:[%s7 + $0x28] sm:$0xff]
  %v198 = vld [vmem:[%s7 + $0x30] sm:$0xff]
  %v199 = vld [vmem:[%s7 + $0x38] sm:$0xff]
  %v200 = vld [vmem:[%s7 + $0x40] sm:$0xff]
  %v201 = vld [vmem:[%s7 + $0x48] sm:$0xff]
  %v202 = vld [vmem:[%s7 + $0x50] sm:$0xff]
  %v203 = vld [vmem:[%s7 + $0x58] sm:$0xff]
  %v204 = vld [vmem:[%s7 + $0x60] sm:$0xff]
  %v205 = vld [vmem:[%s7 + $0x68] sm:$0xff]
  %v206 = vld [vmem:[%s7 + $0x70] sm:$0xff]
  %v207 = vld [vmem:[%s7 + $0x78] sm:$0xff]
  %v208 = vld [vmem:[%s7 + $0x80] sm:$0x7f]
  %v209 = vld [vmem:[%s7 + $0x88] sm:$0x7f]
  %v210 = vld [vmem:[%s8] sm:$0x3]
  %v212 = vlaneseq
  %v213 = vshrl.u32 %v212, 7
  %v214 = vsub.s32 0, %v213
  %v215 = vrot.slane %v210, %v214
  %v216 = vlaneseq
  %v217 = vshrl.u32 %v216, 7
  %v218 = vsub.s32 1, %v217
  %v219 = vrot.slane %v210, %v218
  %v223 = vsel %vm108, %v208, 0
  %v226 = vsel %vm108, %v209, 0
  %228 = vmatprep.subr.mxu0 %v193
  %229 = vmatpush1.msra.mxu0 %v192
  %230 = vmatprep.subr.mxu0 %v195
  %231 = vmatpush1.msra.mxu0 %v194
  %232 = vmatprep.subr.mxu0 %v197
  %233 = vmatpush1.msra.mxu0 %v196
  %234 = vmatprep.subr.mxu0 %v199
  %235 = vmatpush1.msra.mxu0 %v198
  %236 = vmatprep.subr.mxu0 %v201
  %237 = vmatpush1.msra.mxu0 %v200
  %238 = vmatprep.subr.mxu0 %v203
  %239 = vmatpush1.msra.mxu0 %v202
  %240 = vmatprep.subr.mxu0 %v205
  %241 = vmatpush1.msra.mxu0 %v204
  %242 = vmatprep.subr.mxu0 %v207
  %243 = vmatpush1.msra.mxu0 %v206
  %244 = vmatprep.subr.mxu0 %v226
  %245 = vmatpush1.msra.mxu0 %v223
  %246 = vmatprep.subr.mxu0 0.0
  %247 = vmatpush1.msra.mxu0 0.0
  %248 = vmatprep.subr.mxu0 0.0
  %249 = vmatpush1.msra.mxu0 0.0
  %250 = vmatprep.subr.mxu0 0.0
  %251 = vmatpush1.msra.mxu0 0.0
  %252 = vmatprep.subr.mxu0 0.0
  %253 = vmatpush1.msra.mxu0 0.0
  %254 = vmatprep.subr.mxu0 0.0
  %255 = vmatpush1.msra.mxu0 0.0
  %256 = vmatprep.subr.mxu0 0.0
  %257 = vmatpush1.msra.mxu0 0.0
  %258 = vmatprep.subr.mxu0 0.0
  %259 = vmatpush1.msra.mxu0 0.0
  %260 = vmatprep.subr.mxu0 0.0
  %261 = vmatpush1.msra.mxu0 0.0
  %262 = vmatprep.subr.mxu0 0.0
  %263 = vmatpush1.msra.mxu0 0.0
  %264 = vmatprep.subr.mxu0 0.0
  %265 = vmatpush1.msra.mxu0 0.0
  %266 = vmatprep.subr.mxu0 0.0
  %267 = vmatpush1.msra.mxu0 0.0
  %268 = vmatprep.subr.mxu0 0.0
  %269 = vmatpush1.msra.mxu0 0.0
  %270 = vmatprep.subr.mxu0 0.0
  %271 = vmatpush1.msra.mxu0 0.0
  %272 = vmatprep.subr.mxu0 0.0
  %273 = vmatpush1.msra.mxu0 0.0
  %274 = vmatprep.subr.mxu0 0.0
  %275 = vmatpush1.msra.mxu0 0.0
  %276 = vmatprep.subr.mxu0 0.0
  %277 = vmatpush1.msra.mxu0 0.0
  %278 = vmatprep.subr.mxu0 0.0
  %279 = vmatpush1.msra.mxu0 0.0
  %280 = vmatprep.subr.mxu0 0.0
  %281 = vmatpush1.msra.mxu0 0.0
  %282 = vmatprep.subr.mxu0 0.0
  %283 = vmatpush1.msra.mxu0 0.0
  %284 = vmatprep.subr.mxu0 0.0
  %285 = vmatpush1.msra.mxu0 0.0
  %286 = vmatprep.subr.mxu0 0.0
  %287 = vmatpush1.msra.mxu0 0.0
  %288 = vmatprep.subr.mxu0 0.0
  %289 = vmatpush1.msra.mxu0 0.0
  %290 = vmatprep.subr.mxu0 0.0
  %291 = vmatpush1.msra.mxu0 0.0
  %292 = vmatprep.mubr.f32.mxu0 0.0
  %293 = vmatmul.mubr.f32.gmra.mrb[0].mxu0 %v103
  %v294 = vpop.f32.mrb[0].mxu0
  %v295 = vadd.f32 %v215, %v294
  %v296 = vpop.f32.mrb[0].mxu0
  %v297 = vadd.f32 %v219, %v296
  %298 = vmatprep.mubr.f32.mxu0 0.0
  %299 = vmatmul.mubr.f32.gmra.mrb[0].mxu0 %v106
  %v300 = vpop.f32.mrb[0].mxu0
  %v301 = vadd.f32 %v215, %v300
  %v302 = vpop.f32.mrb[0].mxu0
  %v303 = vadd.f32 %v219, %v302
  %304 = vdwg.mxu0
  %v305 = vld [vmem:[%s2] sm:$0xff]
  %v306 = vld [vmem:[%s2 + $0x8] sm:$0xff]
  %v307 = vld [vmem:[%s2 + $0x10] sm:$0xff]
  %v308 = vld [vmem:[%s2 + $0x18] sm:$0xff]
  %v309 = vld [vmem:[%s2 + $0x20] sm:$0xff]
  %v310 = vld [vmem:[%s2 + $0x28] sm:$0xff]
  %v311 = vld [vmem:[%s2 + $0x30] sm:$0xff]
  %v312 = vld [vmem:[%s2 + $0x38] sm:$0xff]
  %v313 = vld [vmem:[%s2 + $0x40] sm:$0xff]
  %v314 = vld [vmem:[%s2 + $0x48] sm:$0xff]
  %v315 = vld [vmem:[%s2 + $0x50] sm:$0xff]
  %v316 = vld [vmem:[%s2 + $0x58] sm:$0xff]
  %v317 = vld [vmem:[%s2 + $0x60] sm:$0xff]
  %v318 = vld [vmem:[%s2 + $0x68] sm:$0xff]
  %v319 = vld [vmem:[%s2 + $0x70] sm:$0xff]
  %v320 = vld [vmem:[%s2 + $0x78] sm:$0xff]
  %v321 = vld [vmem:[%s2 + $0x80] sm:$0xff]
  %v322 = vld [vmem:[%s2 + $0x88] sm:$0xff]
  %v323 = vld [vmem:[%s2 + $0x90] sm:$0xff]
  %v324 = vld [vmem:[%s2 + $0x98] sm:$0xff]
  %v325 = vld [vmem:[%s2 + $0xa0] sm:$0xff]
  %v326 = vld [vmem:[%s2 + $0xa8] sm:$0xff]
  %v327 = vld [vmem:[%s2 + $0xb0] sm:$0xff]
  %v328 = vld [vmem:[%s2 + $0xb8] sm:$0xff]
  %v329 = vld [vmem:[%s2 + $0xc0] sm:$0xff]
  %v330 = vld [vmem:[%s2 + $0xc8] sm:$0xff]
  %v331 = vld [vmem:[%s2 + $0xd0] sm:$0xff]
  %v332 = vld [vmem:[%s2 + $0xd8] sm:$0xff]
  %v333 = vld [vmem:[%s2 + $0xe0] sm:$0xff]
  %v334 = vld [vmem:[%s2 + $0xe8] sm:$0xff]
  %v335 = vld [vmem:[%s2 + $0xf0] sm:$0xff]
  %v336 = vld [vmem:[%s2 + $0xf8] sm:$0xff]
  %v337 = vld [vmem:[%s9] sm:$0xff]
  %v338 = vld [vmem:[%s9 + $0x8] sm:$0xff]
  %v339 = vld [vmem:[%s9 + $0x10] sm:$0xff]
  %v340 = vld [vmem:[%s9 + $0x18] sm:$0xff]
  %v341 = vld [vmem:[%s9 + $0x20] sm:$0xff]
  %v342 = vld [vmem:[%s9 + $0x28] sm:$0xff]
  %v343 = vld [vmem:[%s9 + $0x30] sm:$0xff]
  %v344 = vld [vmem:[%s9 + $0x38] sm:$0xff]
  %v345 = vld [vmem:[%s9 + $0x40] sm:$0xff]
  %v346 = vld [vmem:[%s9 + $0x48] sm:$0xff]
  %v347 = vld [vmem:[%s9 + $0x50] sm:$0x1]
  %v348 = vld [vmem:[%s9 + $0x58] sm:$0x1]
  %vm349 = vcmask 334848
  %v351 = vsel %vm349, %v305, 0
  %v354 = vsel %vm349, %v306, 0
  %v357 = vsel %vm349, %v307, 0
  %v360 = vsel %vm349, %v308, 0
  %v363 = vsel %vm349, %v309, 0
  %v366 = vsel %vm349, %v310, 0
  %v369 = vsel %vm349, %v311, 0
  %v372 = vsel %vm349, %v312, 0
  %v375 = vsel %vm349, %v313, 0
  %v378 = vsel %vm349, %v314, 0
  %v381 = vsel %vm349, %v315, 0
  %v384 = vsel %vm349, %v316, 0
  %v387 = vsel %vm349, %v317, 0
  %v390 = vsel %vm349, %v318, 0
  %v393 = vsel %vm349, %v319, 0
  %v396 = vsel %vm349, %v320, 0
  %v399 = vsel %vm349, %v321, 0
  %v402 = vsel %vm349, %v322, 0
  %v405 = vsel %vm349, %v323, 0
  %v408 = vsel %vm349, %v324, 0
  %v411 = vsel %vm349, %v325, 0
  %v414 = vsel %vm349, %v326, 0
  %v417 = vsel %vm349, %v327, 0
  %v420 = vsel %vm349, %v328, 0
  %v423 = vsel %vm349, %v329, 0
  %v426 = vsel %vm349, %v330, 0
  %v429 = vsel %vm349, %v331, 0
  %v432 = vsel %vm349, %v332, 0
  %v435 = vsel %vm349, %v333, 0
  %v438 = vsel %vm349, %v334, 0
  %v441 = vsel %vm349, %v335, 0
  %v444 = vsel %vm349, %v336, 0
  %vm446 = vcmask 1040384
  %v448 = vsel %vm446, %v347, 0
  %v451 = vsel %vm446, %v348, 0
  %453 = vmatprep.subr.mxu0 %v338
  %454 = vmatpush1.msra.mxu0 %v337
  %455 = vmatprep.subr.mxu0 %v340
  %456 = vmatpush1.msra.mxu0 %v339
  %457 = vmatprep.subr.mxu0 %v342
  %458 = vmatpush1.msra.mxu0 %v341
  %459 = vmatprep.subr.mxu0 %v344
  %460 = vmatpush1.msra.mxu0 %v343
  %461 = vmatprep.subr.mxu0 %v346
  %462 = vmatpush1.msra.mxu0 %v345
  %463 = vmatprep.subr.mxu0 %v451
  %464 = vmatpush1.msra.mxu0 %v448
  %465 = vmatprep.subr.mxu0 0.0
  %466 = vmatpush1.msra.mxu0 0.0
  %467 = vmatprep.subr.mxu0 0.0
  %468 = vmatpush1.msra.mxu0 0.0
  %469 = vmatprep.subr.mxu0 0.0
  %470 = vmatpush1.msra.mxu0 0.0
  %471 = vmatprep.subr.mxu0 0.0
  %472 = vmatpush1.msra.mxu0 0.0
  %473 = vmatprep.subr.mxu0 0.0
  %474 = vmatpush1.msra.mxu0 0.0
  %475 = vmatprep.subr.mxu0 0.0
  %476 = vmatpush1.msra.mxu0 0.0
  %477 = vmatprep.subr.mxu0 0.0
  %478 = vmatpush1.msra.mxu0 0.0
  %479 = vmatprep.subr.mxu0 0.0
  %480 = vmatpush1.msra.mxu0 0.0
  %481 = vmatprep.subr.mxu0 0.0
  %482 = vmatpush1.msra.mxu0 0.0
  %483 = vmatprep.subr.mxu0 0.0
  %484 = vmatpush1.msra.mxu0 0.0
  %485 = vmatprep.subr.mxu0 0.0
  %486 = vmatpush1.msra.mxu0 0.0
  %487 = vmatprep.subr.mxu0 0.0
  %488 = vmatpush1.msra.mxu0 0.0
  %489 = vmatprep.subr.mxu0 0.0
  %490 = vmatpush1.msra.mxu0 0.0
  %491 = vmatprep.subr.mxu0 0.0
  %492 = vmatpush1.msra.mxu0 0.0
  %493 = vmatprep.subr.mxu0 0.0
  %494 = vmatpush1.msra.mxu0 0.0
  %495 = vmatprep.subr.mxu0 0.0
  %496 = vmatpush1.msra.mxu0 0.0
  %497 = vmatprep.subr.mxu0 0.0
  %498 = vmatpush1.msra.mxu0 0.0
  %499 = vmatprep.subr.mxu0 0.0
  %500 = vmatpush1.msra.mxu0 0.0
  %501 = vmatprep.subr.mxu0 0.0
  %502 = vmatpush1.msra.mxu0 0.0
  %503 = vmatprep.subr.mxu0 0.0
  %504 = vmatpush1.msra.mxu0 0.0
  %505 = vmatprep.subr.mxu0 0.0
  %506 = vmatpush1.msra.mxu0 0.0
  %507 = vmatprep.subr.mxu0 0.0
  %508 = vmatpush1.msra.mxu0 0.0
  %509 = vmatprep.subr.mxu0 0.0
  %510 = vmatpush1.msra.mxu0 0.0
  %511 = vmatprep.subr.mxu0 0.0
  %512 = vmatpush1.msra.mxu0 0.0
  %513 = vmatprep.subr.mxu0 0.0
  %514 = vmatpush1.msra.mxu0 0.0
  %515 = vmatprep.subr.mxu0 0.0
  %516 = vmatpush1.msra.mxu0 0.0
  %517 = vmatprep.mubr.f32.mxu0 0.0
  %518 = vmatmul.mubr.f32.gmra.mrb[0].mxu0 %v351
  %v519 = vpop.f32.mrb[0].mxu0
  %v520 = vadd.f32 0.0, %v519
  %v521 = vpop.f32.mrb[0].mxu0
  %v522 = vadd.f32 0.0, %v521
  %523 = vmatprep.mubr.f32.mxu0 0.0
  %524 = vmatmul.mubr.f32.gmra.mrb[0].mxu0 %v354
  %v525 = vpop.f32.mrb[0].mxu0
  %v526 = vadd.f32 0.0, %v525
  %v527 = vpop.f32.mrb[0].mxu0
  %v528 = vadd.f32 0.0, %v527
  %529 = vmatprep.mubr.f32.mxu0 0.0
  %530 = vmatmul.mubr.f32.gmra.mrb[0].mxu0 %v357
  %v531 = vpop.f32.mrb[0].mxu0
  %v532 = vadd.f32 0.0, %v531
  %v533 = vpop.f32.mrb[0].mxu0
  %v534 = vadd.f32 0.0, %v533
  %535 = vmatprep.mubr.f32.mxu0 0.0
  %536 = vmatmul.mubr.f32.gmra.mrb[0].mxu0 %v360
  %v537 = vpop.f32.mrb[0].mxu0
  %v538 = vadd.f32 0.0, %v537
  %v539 = vpop.f32.mrb[0].mxu0
  %v540 = vadd.f32 0.0, %v539
  %541 = vmatprep.mubr.f32.mxu0 0.0
  %542 = vmatmul.mubr.f32.gmra.mrb[0].mxu0 %v363
  %v543 = vpop.f32.mrb[0].mxu0
  %v544 = vadd.f32 0.0, %v543
  %v545 = vpop.f32.mrb[0].mxu0
  %v546 = vadd.f32 0.0, %v545
  %547 = vmatprep.mubr.f32.mxu0 0.0
  %548 = vmatmul.mubr.f32.gmra.mrb[0].mxu0 %v366
  %v549 = vpop.f32.mrb[0].mxu0
  %v550 = vadd.f32 0.0, %v549
  %v551 = vpop.f32.mrb[0].mxu0
  %v552 = vadd.f32 0.0, %v551
  %553 = vmatprep.mubr.f32.mxu0 0.0
  %554 = vmatmul.mubr.f32.gmra.mrb[0].mxu0 %v369
  %v555 = vpop.f32.mrb[0].mxu0
  %v556 = vadd.f32 0.0, %v555
  %v557 = vpop.f32.mrb[0].mxu0
  %v558 = vadd.f32 0.0, %v557
  %559 = vmatprep.mubr.f32.mxu0 0.0
  %560 = vmatmul.mubr.f32.gmra.mrb[0].mxu0 %v372
  %v561 = vpop.f32.mrb[0].mxu0
  %v562 = vadd.f32 0.0, %v561
  %v563 = vpop.f32.mrb[0].mxu0
  %v564 = vadd.f32 0.0, %v563
  %565 = vmatprep.mubr.f32.mxu0 0.0
  %566 = vmatmul.mubr.f32.gmra.mrb[0].mxu0 %v375
  %v567 = vpop.f32.mrb[0].mxu0
  %v568 = vadd.f32 0.0, %v567
  %v569 = vpop.f32.mrb[0].mxu0
  %v570 = vadd.f32 0.0, %v569
  %571 = vmatprep.mubr.f32.mxu0 0.0
  %572 = vmatmul.mubr.f32.gmra.mrb[0].mxu0 %v378
  %v573 = vpop.f32.mrb[0].mxu0
  %v574 = vadd.f32 0.0, %v573
  %v575 = vpop.f32.mrb[0].mxu0
  %v576 = vadd.f32 0.0, %v575
  %577 = vmatprep.mubr.f32.mxu0 0.0
  %578 = vmatmul.mubr.f32.gmra.mrb[0].mxu0 %v381
  %v579 = vpop.f32.mrb[0].mxu0
  %v580 = vadd.f32 0.0, %v579
  %v581 = vpop.f32.mrb[0].mxu0
  %v582 = vadd.f32 0.0, %v581
  %583 = vmatprep.mubr.f32.mxu0 0.0
  %584 = vmatmul.mubr.f32.gmra.mrb[0].mxu0 %v384
  %v585 = vpop.f32.mrb[0].mxu0
  %v586 = vadd.f32 0.0, %v585
  %v587 = vpop.f32.mrb[0].mxu0
  %v588 = vadd.f32 0.0, %v587
  %589 = vmatprep.mubr.f32.mxu0 0.0
  %590 = vmatmul.mubr.f32.gmra.mrb[0].mxu0 %v387
  %v591 = vpop.f32.mrb[0].mxu0
  %v592 = vadd.f32 0.0, %v591
  %v593 = vpop.f32.mrb[0].mxu0
  %v594 = vadd.f32 0.0, %v593
  %595 = vmatprep.mubr.f32.mxu0 0.0
  %596 = vmatmul.mubr.f32.gmra.mrb[0].mxu0 %v390
  %v597 = vpop.f32.mrb[0].mxu0
  %v598 = vadd.f32 0.0, %v597
  %v599 = vpop.f32.mrb[0].mxu0
  %v600 = vadd.f32 0.0, %v599
  %601 = vmatprep.mubr.f32.mxu0 0.0
  %602 = vmatmul.mubr.f32.gmra.mrb[0].mxu0 %v393
  %v603 = vpop.f32.mrb[0].mxu0
  %v604 = vadd.f32 0.0, %v603
  %v605 = vpop.f32.mrb[0].mxu0
  %v606 = vadd.f32 0.0, %v605
  %607 = vmatprep.mubr.f32.mxu0 0.0
  %608 = vmatmul.mubr.f32.gmra.mrb[0].mxu0 %v396
  %v609 = vpop.f32.mrb[0].mxu0
  %v610 = vadd.f32 0.0, %v609
  %v611 = vpop.f32.mrb[0].mxu0
  %v612 = vadd.f32 0.0, %v611
  %613 = vmatprep.mubr.f32.mxu0 0.0
  %614 = vmatmul.mubr.f32.gmra.mrb[0].mxu0 %v399
  %v615 = vpop.f32.mrb[0].mxu0
  %v616 = vadd.f32 0.0, %v615
  %v617 = vpop.f32.mrb[0].mxu0
  %v618 = vadd.f32 0.0, %v617
  %619 = vmatprep.mubr.f32.mxu0 0.0
  %620 = vmatmul.mubr.f32.gmra.mrb[0].mxu0 %v402
  %v621 = vpop.f32.mrb[0].mxu0
  %v622 = vadd.f32 0.0, %v621
  %v623 = vpop.f32.mrb[0].mxu0
  %v624 = vadd.f32 0.0, %v623
  %625 = vmatprep.mubr.f32.mxu0 0.0
  %626 = vmatmul.mubr.f32.gmra.mrb[0].mxu0 %v405
  %v627 = vpop.f32.mrb[0].mxu0
  %v628 = vadd.f32 0.0, %v627
  %v629 = vpop.f32.mrb[0].mxu0
  %v630 = vadd.f32 0.0, %v629
  %631 = vmatprep.mubr.f32.mxu0 0.0
  %632 = vmatmul.mubr.f32.gmra.mrb[0].mxu0 %v408
  %v633 = vpop.f32.mrb[0].mxu0
  %v634 = vadd.f32 0.0, %v633
  %v635 = vpop.f32.mrb[0].mxu0
  %v636 = vadd.f32 0.0, %v635
  %637 = vmatprep.mubr.f32.mxu0 0.0
  %638 = vmatmul.mubr.f32.gmra.mrb[0].mxu0 %v411
  %v639 = vpop.f32.mrb[0].mxu0
  %v640 = vadd.f32 0.0, %v639
  %v641 = vpop.f32.mrb[0].mxu0
  %v642 = vadd.f32 0.0, %v641
  %643 = vmatprep.mubr.f32.mxu0 0.0
  %644 = vmatmul.mubr.f32.gmra.mrb[0].mxu0 %v414
  %v645 = vpop.f32.mrb[0].mxu0
  %v646 = vadd.f32 0.0, %v645
  %v647 = vpop.f32.mrb[0].mxu0
  %v648 = vadd.f32 0.0, %v647
  %649 = vmatprep.mubr.f32.mxu0 0.0
  %650 = vmatmul.mubr.f32.gmra.mrb[0].mxu0 %v417
  %v651 = vpop.f32.mrb[0].mxu0
  %v652 = vadd.f32 0.0, %v651
  %v653 = vpop.f32.mrb[0].mxu0
  %v654 = vadd.f32 0.0, %v653
  %655 = vmatprep.mubr.f32.mxu0 0.0
  %656 = vmatmul.mubr.f32.gmra.mrb[0].mxu0 %v420
  %v657 = vpop.f32.mrb[0].mxu0
  %v658 = vadd.f32 0.0, %v657
  %v659 = vpop.f32.mrb[0].mxu0
  %v660 = vadd.f32 0.0, %v659
  %661 = vmatprep.mubr.f32.mxu0 0.0
  %662 = vmatmul.mubr.f32.gmra.mrb[0].mxu0 %v423
  %v663 = vpop.f32.mrb[0].mxu0
  %v664 = vadd.f32 0.0, %v663
  %v665 = vpop.f32.mrb[0].mxu0
  %v666 = vadd.f32 0.0, %v665
  %667 = vmatprep.mubr.f32.mxu0 0.0
  %668 = vmatmul.mubr.f32.gmra.mrb[0].mxu0 %v426
  %v669 = vpop.f32.mrb[0].mxu0
  %v670 = vadd.f32 0.0, %v669
  %v671 = vpop.f32.mrb[0].mxu0
  %v672 = vadd.f32 0.0, %v671
  %673 = vmatprep.mubr.f32.mxu0 0.0
  %674 = vmatmul.mubr.f32.gmra.mrb[0].mxu0 %v429
  %v675 = vpop.f32.mrb[0].mxu0
  %v676 = vadd.f32 0.0, %v675
  %v677 = vpop.f32.mrb[0].mxu0
  %v678 = vadd.f32 0.0, %v677
  %679 = vmatprep.mubr.f32.mxu0 0.0
  %680 = vmatmul.mubr.f32.gmra.mrb[0].mxu0 %v432
  %v681 = vpop.f32.mrb[0].mxu0
  %v682 = vadd.f32 0.0, %v681
  %v683 = vpop.f32.mrb[0].mxu0
  %v684 = vadd.f32 0.0, %v683
  %685 = vmatprep.mubr.f32.mxu0 0.0
  %686 = vmatmul.mubr.f32.gmra.mrb[0].mxu0 %v435
  %v687 = vpop.f32.mrb[0].mxu0
  %v688 = vadd.f32 0.0, %v687
  %v689 = vpop.f32.mrb[0].mxu0
  %v690 = vadd.f32 0.0, %v689
  %691 = vmatprep.mubr.f32.mxu0 0.0
  %692 = vmatmul.mubr.f32.gmra.mrb[0].mxu0 %v438
  %v693 = vpop.f32.mrb[0].mxu0
  %v694 = vadd.f32 0.0, %v693
  %v695 = vpop.f32.mrb[0].mxu0
  %v696 = vadd.f32 0.0, %v695
  %697 = vmatprep.mubr.f32.mxu0 0.0
  %698 = vmatmul.mubr.f32.gmra.mrb[0].mxu0 %v441
  %v699 = vpop.f32.mrb[0].mxu0
  %v700 = vadd.f32 0.0, %v699
  %v701 = vpop.f32.mrb[0].mxu0
  %v702 = vadd.f32 0.0, %v701
  %703 = vmatprep.mubr.f32.mxu0 0.0
  %704 = vmatmul.mubr.f32.gmra.mrb[0].mxu0 %v444
  %v705 = vpop.f32.mrb[0].mxu0
  %v706 = vadd.f32 0.0, %v705
  %v707 = vpop.f32.mrb[0].mxu0
  %v708 = vadd.f32 0.0, %v707
  %709 = vdwg.mxu0
  %v710 = vld [vmem:[%s10] sm:$0xff]
  %v711 = vld [vmem:[%s10 + $0x8] sm:$0xff]
  %v712 = vld [vmem:[%s10 + $0x10] sm:$0xff]
  %v713 = vld [vmem:[%s10 + $0x18] sm:$0xff]
  %v714 = vld [vmem:[%s10 + $0x20] sm:$0xff]
  %v715 = vld [vmem:[%s10 + $0x28] sm:$0xff]
  %v716 = vld [vmem:[%s10 + $0x30] sm:$0xff]
  %v717 = vld [vmem:[%s10 + $0x38] sm:$0xff]
  %v718 = vld [vmem:[%s10 + $0x40] sm:$0xff]
  %v719 = vld [vmem:[%s10 + $0x48] sm:$0xff]
  %v720 = vld [vmem:[%s10 + $0x50] sm:$0xff]
  %v721 = vld [vmem:[%s10 + $0x58] sm:$0xff]
  %v722 = vld [vmem:[%s10 + $0x60] sm:$0xff]
  %v723 = vld [vmem:[%s10 + $0x68] sm:$0xff]
  %v724 = vld [vmem:[%s10 + $0x70] sm:$0xff]
  %v725 = vld [vmem:[%s10 + $0x78] sm:$0xff]
  %v726 = vld [vmem:[%s10 + $0x80] sm:$0xff]
  %v727 = vld [vmem:[%s10 + $0x88] sm:$0xff]
  %v728 = vld [vmem:[%s10 + $0x90] sm:$0xff]
  %v729 = vld [vmem:[%s10 + $0x98] sm:$0xff]
  %v730 = vld [vmem:[%s10 + $0xa0] sm:$0xff]
  %v731 = vld [vmem:[%s10 + $0xa8] sm:$0xff]
  %v732 = vld [vmem:[%s10 + $0xb0] sm:$0xff]
  %v733 = vld [vmem:[%s10 + $0xb8] sm:$0xff]
  %v734 = vld [vmem:[%s10 + $0xc0] sm:$0xff]
  %v735 = vld [vmem:[%s10 + $0xc8] sm:$0xff]
  %v736 = vld [vmem:[%s10 + $0xd0] sm:$0xff]
  %v737 = vld [vmem:[%s10 + $0xd8] sm:$0xff]
  %v738 = vld [vmem:[%s10 + $0xe0] sm:$0xff]
  %v739 = vld [vmem:[%s10 + $0xe8] sm:$0xff]
  %v740 = vld [vmem:[%s10 + $0xf0] sm:$0xff]
  %v741 = vld [vmem:[%s10 + $0xf8] sm:$0xff]
  %v742 = vld [vmem:[%s10 + $0x100] sm:$0xff]
  %v743 = vld [vmem:[%s10 + $0x108] sm:$0xff]
  %v744 = vld [vmem:[%s10 + $0x110] sm:$0xff]
  %v745 = vld [vmem:[%s10 + $0x118] sm:$0xff]
  %v746 = vld [vmem:[%s10 + $0x120] sm:$0xff]
  %v747 = vld [vmem:[%s10 + $0x128] sm:$0xff]
  %v748 = vld [vmem:[%s10 + $0x130] sm:$0xff]
  %v749 = vld [vmem:[%s10 + $0x138] sm:$0xff]
  %v750 = vld [vmem:[%s10 + $0x140] sm:$0xff]
  %v751 = vld [vmem:[%s10 + $0x148] sm:$0xff]
  %v752 = vld [vmem:[%s10 + $0x150] sm:$0xff]
  %v753 = vld [vmem:[%s10 + $0x158] sm:$0xff]
  %v754 = vld [vmem:[%s10 + $0x160] sm:$0xff]
  %v755 = vld [vmem:[%s10 + $0x168] sm:$0xff]
  %v756 = vld [vmem:[%s10 + $0x170] sm:$0xff]
  %v757 = vld [vmem:[%s10 + $0x178] sm:$0xff]
  %v758 = vld [vmem:[%s10 + $0x180] sm:$0xff]
  %v759 = vld [vmem:[%s10 + $0x188] sm:$0xff]
  %v760 = vld [vmem:[%s10 + $0x190] sm:$0xff]
  %v761 = vld [vmem:[%s10 + $0x198] sm:$0xff]
  %v762 = vld [vmem:[%s10 + $0x1a0] sm:$0xff]
  %v763 = vld [vmem:[%s10 + $0x1a8] sm:$0xff]
  %v764 = vld [vmem:[%s10 + $0x1b0] sm:$0xff]
  %v765 = vld [vmem:[%s10 + $0x1b8] sm:$0xff]
  %v766 = vld [vmem:[%s10 + $0x1c0] sm:$0xff]
  %v767 = vld [vmem:[%s10 + $0x1c8] sm:$0xff]
  %v768 = vld [vmem:[%s10 + $0x1d0] sm:$0xff]
  %v769 = vld [vmem:[%s10 + $0x1d8] sm:$0xff]
  %v770 = vld [vmem:[%s10 + $0x1e0] sm:$0xff]
  %v771 = vld [vmem:[%s10 + $0x1e8] sm:$0xff]
  %v772 = vld [vmem:[%s10 + $0x1f0] sm:$0x3]
  %v773 = vld [vmem:[%s10 + $0x1f8] sm:$0x3]
  %v774 = vlaneseq
  %v775 = vshrl.u32 %v774, 7
  %v776 = vsub.s32 0, %v775
  %v777 = vrot.slane %v69, %v776
  %779 = vbcast.lane.b32.xlu0 %v777, 256
  %v780 = vpop.permute.xlu0 %779
  %s782 = sor.u32 256, 8
  %783 = vbcast.lane.b32.xlu0 %v777, %s782
  %v784 = vpop.permute.xlu0 %783
  %v785 = vlaneseq
  %v786 = vshrl.u32 %v785, 7
  %v787 = vsub.s32 1, %v786
  %v788 = vrot.slane %v69, %v787
  %790 = vbcast.lane.b32.xlu0 %v788, 256
  %v791 = vpop.permute.xlu0 %790
  %s793 = sor.u32 256, 8
  %794 = vbcast.lane.b32.xlu0 %v788, %s793
  %v795 = vpop.permute.xlu0 %794
  %v796 = vlaneseq
  %v797 = vshrl.u32 %v796, 7
  %v798 = vsub.s32 2, %v797
  %v799 = vrot.slane %v69, %v798
  %801 = vbcast.lane.b32.xlu0 %v799, 256
  %v802 = vpop.permute.xlu0 %801
  %s804 = sor.u32 256, 8
  %805 = vbcast.lane.b32.xlu0 %v799, %s804
  %v806 = vpop.permute.xlu0 %805
  %v807 = vlaneseq
  %v808 = vshrl.u32 %v807, 7
  %v809 = vsub.s32 3, %v808
  %v810 = vrot.slane %v69, %v809
  %812 = vbcast.lane.b32.xlu0 %v810, 256
  %v813 = vpop.permute.xlu0 %812
  %s815 = sor.u32 256, 8
  %816 = vbcast.lane.b32.xlu0 %v810, %s815
  %v817 = vpop.permute.xlu0 %816
  %v818 = vlaneseq
  %v819 = vshrl.u32 %v818, 7
  %v820 = vsub.s32 4, %v819
  %v821 = vrot.slane %v69, %v820
  %823 = vbcast.lane.b32.xlu0 %v821, 256
  %v824 = vpop.permute.xlu0 %823
  %s826 = sor.u32 256, 8
  %827 = vbcast.lane.b32.xlu0 %v821, %s826
  %v828 = vpop.permute.xlu0 %827
  %v829 = vlaneseq
  %v830 = vshrl.u32 %v829, 7
  %v831 = vsub.s32 5, %v830
  %v832 = vrot.slane %v69, %v831
  %834 = vbcast.lane.b32.xlu0 %v832, 256
  %v835 = vpop.permute.xlu0 %834
  %s837 = sor.u32 256, 8
  %838 = vbcast.lane.b32.xlu0 %v832, %s837
  %v839 = vpop.permute.xlu0 %838
  %v840 = vlaneseq
  %v841 = vshrl.u32 %v840, 7
  %v842 = vsub.s32 6, %v841
  %v843 = vrot.slane %v69, %v842
  %845 = vbcast.lane.b32.xlu0 %v843, 256
  %v846 = vpop.permute.xlu0 %845
  %s848 = sor.u32 256, 8
  %849 = vbcast.lane.b32.xlu0 %v843, %s848
  %v850 = vpop.permute.xlu0 %849
  %v851 = vlaneseq
  %v852 = vshrl.u32 %v851, 7
  %v853 = vsub.s32 7, %v852
  %v854 = vrot.slane %v69, %v853
  %856 = vbcast.lane.b32.xlu0 %v854, 256
  %v857 = vpop.permute.xlu0 %856
  %s859 = sor.u32 256, 8
  %860 = vbcast.lane.b32.xlu0 %v854, %s859
  %v861 = vpop.permute.xlu0 %860
  %v864 = vcombine.low %v295, %v297
  %v865 = vcombine.high %v295, %v297
  %v867 = vunpack.c.l.s4 1966171168
  %v868 = vunpack.c.0.s8 %v867
  %v869 = vlaneseq
  %v870 = vshrl.u32 %v869, 7
  %v871 = vsub.s32 %v868, %v870
  %v872 = vrot.slane %v864, %v871
  %v874 = vunpack.c.l.s4 1966171168
  %v875 = vunpack.c.0.s8 %v874
  %v876 = vlaneseq
  %v877 = vshrl.u32 %v876, 7
  %v878 = vsub.s32 %v875, %v877
  %v879 = vrot.slane %v865, %v878
  %v880 = vcombine.high %v872, %v872
  %v881 = vcombine.high %v879, %v879
  %v883 = vunpack.c.l.s4 1966171168
  %v884 = vunpack.c.0.s8 %v883
  %v885 = vlaneseq
  %v886 = vshrl.u32 %v885, 7
  %v887 = vsub.s32 %v884, %v886
  %v888 = vrot.slane %v872, %v887
  %v890 = vunpack.c.l.s4 1966171168
  %v891 = vunpack.c.0.s8 %v890
  %v892 = vlaneseq
  %v893 = vshrl.u32 %v892, 7
  %v894 = vsub.s32 %v891, %v893
  %v895 = vrot.slane %v879, %v894
  %v897 = vunpack.c.l.s4 1966171168
  %v898 = vunpack.c.0.s8 %v897
  %v899 = vlaneseq
  %v900 = vshrl.u32 %v899, 7
  %v901 = vsub.s32 %v898, %v900
  %v902 = vrot.slane %v880, %v901
  %v904 = vunpack.c.l.s4 1966171168
  %v905 = vunpack.c.0.s8 %v904
  %v906 = vlaneseq
  %v907 = vshrl.u32 %v906, 7
  %v908 = vsub.s32 %v905, %v907
  %v909 = vrot.slane %v881, %v908
  %v910 = vcombine.high %v888, %v888
  %v911 = vcombine.high %v895, %v895
  %v912 = vcombine.high %v902, %v902
  %v913 = vcombine.high %v909, %v909
  %v914 = vlaneseq
  %v915 = vshrl.u32 %v914, 7
  %v916 = vsub.s32 0, %v915
  %v917 = vrot.slane %v888, %v916
  %v918 = vlaneseq
  %v919 = vshrl.u32 %v918, 7
  %v920 = vsub.s32 1, %v919
  %v921 = vrot.slane %v888, %v920
  %v922 = vlaneseq
  %v923 = vshrl.u32 %v922, 7
  %v924 = vsub.s32 0, %v923
  %v925 = vrot.slane %v902, %v924
  %v926 = vlaneseq
  %v927 = vshrl.u32 %v926, 7
  %v928 = vsub.s32 1, %v927
  %v929 = vrot.slane %v902, %v928
  %v930 = vlaneseq
  %v931 = vshrl.u32 %v930, 7
  %v932 = vsub.s32 0, %v931
  %v933 = vrot.slane %v910, %v932
  %v934 = vlaneseq
  %v935 = vshrl.u32 %v934, 7
  %v936 = vsub.s32 1, %v935
  %v937 = vrot.slane %v910, %v936
  %v938 = vlaneseq
  %v939 = vshrl.u32 %v938, 7
  %v940 = vsub.s32 0, %v939
  %v941 = vrot.slane %v912, %v940
  %v942 = vlaneseq
  %v943 = vshrl.u32 %v942, 7
  %v944 = vsub.s32 1, %v943
  %v945 = vrot.slane %v912, %v944
  %v946 = vlaneseq
  %v947 = vshrl.u32 %v946, 7
  %v948 = vsub.s32 0, %v947
  %v949 = vrot.slane %v895, %v948
  %v950 = vlaneseq
  %v951 = vshrl.u32 %v950, 7
  %v952 = vsub.s32 1, %v951
  %v953 = vrot.slane %v895, %v952
  %v954 = vlaneseq
  %v955 = vshrl.u32 %v954, 7
  %v956 = vsub.s32 0, %v955
  %v957 = vrot.slane %v909, %v956
  %v958 = vlaneseq
  %v959 = vshrl.u32 %v958, 7
  %v960 = vsub.s32 1, %v959
  %v961 = vrot.slane %v909, %v960
  %v962 = vlaneseq
  %v963 = vshrl.u32 %v962, 7
  %v964 = vsub.s32 0, %v963
  %v965 = vrot.slane %v911, %v964
  %v966 = vlaneseq
  %v967 = vshrl.u32 %v966, 7
  %v968 = vsub.s32 1, %v967
  %v969 = vrot.slane %v911, %v968
  %v970 = vlaneseq
  %v971 = vshrl.u32 %v970, 7
  %v972 = vsub.s32 0, %v971
  %v973 = vrot.slane %v913, %v972
  %v974 = vlaneseq
  %v975 = vshrl.u32 %v974, 7
  %v976 = vsub.s32 1, %v975
  %v977 = vrot.slane %v913, %v976
  %v994 = vadd.f32 %v182, %v917
  %v995 = vadd.f32 %v184, %v921
  %v996 = vadd.f32 %v188, %v917
  %v997 = vadd.f32 %v190, %v921
  %v998 = vadd.f32 %v182, %v925
  %v999 = vadd.f32 %v184, %v929
  %v1000 = vadd.f32 %v188, %v925
  %v1001 = vadd.f32 %v190, %v929
  %v1002 = vadd.f32 %v182, %v933
  %v1003 = vadd.f32 %v184, %v937
  %v1004 = vadd.f32 %v188, %v933
  %v1005 = vadd.f32 %v190, %v937
  %v1006 = vadd.f32 %v182, %v941
  %v1007 = vadd.f32 %v184, %v945
  %v1008 = vadd.f32 %v188, %v941
  %v1009 = vadd.f32 %v190, %v945
  %v1010 = vadd.f32 %v182, %v949
  %v1011 = vadd.f32 %v184, %v953
  %v1012 = vadd.f32 %v188, %v949
  %v1013 = vadd.f32 %v190, %v953
  %v1014 = vadd.f32 %v182, %v957
  %v1015 = vadd.f32 %v184, %v961
  %v1016 = vadd.f32 %v188, %v957
  %v1017 = vadd.f32 %v190, %v961
  %v1018 = vadd.f32 %v182, %v965
  %v1019 = vadd.f32 %v184, %v969
  %v1020 = vadd.f32 %v188, %v965
  %v1021 = vadd.f32 %v190, %v969
  %v1022 = vadd.f32 %v182, %v973
  %v1023 = vadd.f32 %v184, %v977
  %v1024 = vadd.f32 %v188, %v973
  %v1025 = vadd.f32 %v190, %v977
  %v1026 = vadd.f32 %v994, %v520
  %v1027 = vadd.f32 %v995, %v522
  %v1028 = vadd.f32 %v996, %v526
  %v1029 = vadd.f32 %v997, %v528
  %v1030 = vadd.f32 %v998, %v532
  %v1031 = vadd.f32 %v999, %v534
  %v1032 = vadd.f32 %v1000, %v538
  %v1033 = vadd.f32 %v1001, %v540
  %v1034 = vadd.f32 %v1002, %v544
  %v1035 = vadd.f32 %v1003, %v546
  %v1036 = vadd.f32 %v1004, %v550
  %v1037 = vadd.f32 %v1005, %v552
  %v1038 = vadd.f32 %v1006, %v556
  %v1039 = vadd.f32 %v1007, %v558
  %v1040 = vadd.f32 %v1008, %v562
  %v1041 = vadd.f32 %v1009, %v564
  %v1042 = vadd.f32 %v1010, %v568
  %v1043 = vadd.f32 %v1011, %v570
  %v1044 = vadd.f32 %v1012, %v574
  %v1045 = vadd.f32 %v1013, %v576
  %v1046 = vadd.f32 %v1014, %v580
  %v1047 = vadd.f32 %v1015, %v582
  %v1048 = vadd.f32 %v1016, %v586
  %v1049 = vadd.f32 %v1017, %v588
  %v1050 = vadd.f32 %v1018, %v592
  %v1051 = vadd.f32 %v1019, %v594
  %v1052 = vadd.f32 %v1020, %v598
  %v1053 = vadd.f32 %v1021, %v600
  %v1054 = vadd.f32 %v1022, %v604
  %v1055 = vadd.f32 %v1023, %v606
  %v1056 = vadd.f32 %v1024, %v610
  %v1057 = vadd.f32 %v1025, %v612
  %vm1058 = vcmp.gt.f32.partialorder %v1026, 0.0
  %vm1059 = vcmp.gt.f32.partialorder %v1027, 0.0
  %vm1060 = vcmp.gt.f32.partialorder %v1028, 0.0
  %vm1061 = vcmp.gt.f32.partialorder %v1029, 0.0
  %vm1062 = vcmp.gt.f32.partialorder %v1030, 0.0
  %vm1063 = vcmp.gt.f32.partialorder %v1031, 0.0
  %vm1064 = vcmp.gt.f32.partialorder %v1032, 0.0
  %vm1065 = vcmp.gt.f32.partialorder %v1033, 0.0
  %vm1066 = vcmp.gt.f32.partialorder %v1034, 0.0
  %vm1067 = vcmp.gt.f32.partialorder %v1035, 0.0
  %vm1068 = vcmp.gt.f32.partialorder %v1036, 0.0
  %vm1069 = vcmp.gt.f32.partialorder %v1037, 0.0
  %vm1070 = vcmp.gt.f32.partialorder %v1038, 0.0
  %vm1071 = vcmp.gt.f32.partialorder %v1039, 0.0
  %vm1072 = vcmp.gt.f32.partialorder %v1040, 0.0
  %vm1073 = vcmp.gt.f32.partialorder %v1041, 0.0
  %vm1074 = vcmp.gt.f32.partialorder %v1042, 0.0
  %vm1075 = vcmp.gt.f32.partialorder %v1043, 0.0
  %vm1076 = vcmp.gt.f32.partialorder %v1044, 0.0
  %vm1077 = vcmp.gt.f32.partialorder %v1045, 0.0
  %vm1078 = vcmp.gt.f32.partialorder %v1046, 0.0
  %vm1079 = vcmp.gt.f32.partialorder %v1047, 0.0
  %vm1080 = vcmp.gt.f32.partialorder %v1048, 0.0
  %vm1081 = vcmp.gt.f32.partialorder %v1049, 0.0
  %vm1082 = vcmp.gt.f32.partialorder %v1050, 0.0
  %vm1083 = vcmp.gt.f32.partialorder %v1051, 0.0
  %vm1084 = vcmp.gt.f32.partialorder %v1052, 0.0
  %vm1085 = vcmp.gt.f32.partialorder %v1053, 0.0
  %vm1086 = vcmp.gt.f32.partialorder %v1054, 0.0
  %vm1087 = vcmp.gt.f32.partialorder %v1055, 0.0
  %vm1088 = vcmp.gt.f32.partialorder %v1056, 0.0
  %vm1089 = vcmp.gt.f32.partialorder %v1057, 0.0
  %v1090 = vmul.f32 %v1026, 0.2
  %v1091 = vmul.f32 %v1027, 0.2
  %v1092 = vmul.f32 %v1028, 0.2
  %v1093 = vmul.f32 %v1029, 0.2
  %v1094 = vmul.f32 %v1030, 0.2
  %v1095 = vmul.f32 %v1031, 0.2
  %v1096 = vmul.f32 %v1032, 0.2
  %v1097 = vmul.f32 %v1033, 0.2
  %v1098 = vmul.f32 %v1034, 0.2
  %v1099 = vmul.f32 %v1035, 0.2
  %v1100 = vmul.f32 %v1036, 0.2
  %v1101 = vmul.f32 %v1037, 0.2
  %v1102 = vmul.f32 %v1038, 0.2
  %v1103 = vmul.f32 %v1039, 0.2
  %v1104 = vmul.f32 %v1040, 0.2
  %v1105 = vmul.f32 %v1041, 0.2
  %v1106 = vmul.f32 %v1042, 0.2
  %v1107 = vmul.f32 %v1043, 0.2
  %v1108 = vmul.f32 %v1044, 0.2
  %v1109 = vmul.f32 %v1045, 0.2
  %v1110 = vmul.f32 %v1046, 0.2
  %v1111 = vmul.f32 %v1047, 0.2
  %v1112 = vmul.f32 %v1048, 0.2
  %v1113 = vmul.f32 %v1049, 0.2
  %v1114 = vmul.f32 %v1050, 0.2
  %v1115 = vmul.f32 %v1051, 0.2
  %v1116 = vmul.f32 %v1052, 0.2
  %v1117 = vmul.f32 %v1053, 0.2
  %v1118 = vmul.f32 %v1054, 0.2
  %v1119 = vmul.f32 %v1055, 0.2
  %v1120 = vmul.f32 %v1056, 0.2
  %v1121 = vmul.f32 %v1057, 0.2
  %v1122 = vsel %vm1058, %v1026, %v1090
  %v1123 = vsel %vm1059, %v1027, %v1091
  %v1124 = vsel %vm1060, %v1028, %v1092
  %v1125 = vsel %vm1061, %v1029, %v1093
  %v1126 = vsel %vm1062, %v1030, %v1094
  %v1127 = vsel %vm1063, %v1031, %v1095
  %v1128 = vsel %vm1064, %v1032, %v1096
  %v1129 = vsel %vm1065, %v1033, %v1097
  %v1130 = vsel %vm1066, %v1034, %v1098
  %v1131 = vsel %vm1067, %v1035, %v1099
  %v1132 = vsel %vm1068, %v1036, %v1100
  %v1133 = vsel %vm1069, %v1037, %v1101
  %v1134 = vsel %vm1070, %v1038, %v1102
  %v1135 = vsel %vm1071, %v1039, %v1103
  %v1136 = vsel %vm1072, %v1040, %v1104
  %v1137 = vsel %vm1073, %v1041, %v1105
  %v1138 = vsel %vm1074, %v1042, %v1106
  %v1139 = vsel %vm1075, %v1043, %v1107
  %v1140 = vsel %vm1076, %v1044, %v1108
  %v1141 = vsel %vm1077, %v1045, %v1109
  %v1142 = vsel %vm1078, %v1046, %v1110
  %v1143 = vsel %vm1079, %v1047, %v1111
  %v1144 = vsel %vm1080, %v1048, %v1112
  %v1145 = vsel %vm1081, %v1049, %v1113
  %v1146 = vsel %vm1082, %v1050, %v1114
  %v1147 = vsel %vm1083, %v1051, %v1115
  %v1148 = vsel %vm1084, %v1052, %v1116
  %v1149 = vsel %vm1085, %v1053, %v1117
  %v1150 = vsel %vm1086, %v1054, %v1118
  %v1151 = vsel %vm1087, %v1055, %v1119
  %v1152 = vsel %vm1088, %v1056, %v1120
  %v1153 = vsel %vm1089, %v1057, %v1121
  %vm1154 = vcmask 998400
  %v1156 = vsel %vm1154, %v1123, 0
  %v1159 = vsel %vm1154, %v1125, 0
  %v1162 = vsel %vm1154, %v1127, 0
  %v1165 = vsel %vm1154, %v1129, 0
  %v1168 = vsel %vm1154, %v1131, 0
  %v1171 = vsel %vm1154, %v1133, 0
  %v1174 = vsel %vm1154, %v1135, 0
  %v1177 = vsel %vm1154, %v1137, 0
  %v1180 = vsel %vm1154, %v1139, 0
  %v1183 = vsel %vm1154, %v1141, 0
  %v1186 = vsel %vm1154, %v1143, 0
  %v1189 = vsel %vm1154, %v1145, 0
  %v1192 = vsel %vm1154, %v1147, 0
  %v1195 = vsel %vm1154, %v1149, 0
  %v1198 = vsel %vm1154, %v1151, 0
  %v1201 = vsel %vm1154, %v1153, 0
  %vm1203 = vcmask 1041408
  %v1205 = vsel %vm1203, %v772, 0
  %v1208 = vsel %vm1203, %v773, 0
  %1210 = vmatprep.subr.mxu0 %v711
  %1211 = vmatpush1.msra.mxu0 %v710
  %1212 = vmatprep.subr.mxu0 %v713
  %1213 = vmatpush1.msra.mxu0 %v712
  %1214 = vmatprep.subr.mxu0 %v715
  %1215 = vmatpush1.msra.mxu0 %v714
  %1216 = vmatprep.subr.mxu0 %v717
  %1217 = vmatpush1.msra.mxu0 %v716
  %1218 = vmatprep.subr.mxu0 %v719
  %1219 = vmatpush1.msra.mxu0 %v718
  %1220 = vmatprep.subr.mxu0 %v721
  %1221 = vmatpush1.msra.mxu0 %v720
  %1222 = vmatprep.subr.mxu0 %v723
  %1223 = vmatpush1.msra.mxu0 %v722
  %1224 = vmatprep.subr.mxu0 %v725
  %1225 = vmatpush1.msra.mxu0 %v724
  %1226 = vmatprep.subr.mxu0 %v727
  %1227 = vmatpush1.msra.mxu0 %v726
  %1228 = vmatprep.subr.mxu0 %v729
  %1229 = vmatpush1.msra.mxu0 %v728
  %1230 = vmatprep.subr.mxu0 %v731
  %1231 = vmatpush1.msra.mxu0 %v730
  %1232 = vmatprep.subr.mxu0 %v733
  %1233 = vmatpush1.msra.mxu0 %v732
  %1234 = vmatprep.subr.mxu0 %v735
  %1235 = vmatpush1.msra.mxu0 %v734
  %1236 = vmatprep.subr.mxu0 %v737
  %1237 = vmatpush1.msra.mxu0 %v736
  %1238 = vmatprep.subr.mxu0 %v739
  %1239 = vmatpush1.msra.mxu0 %v738
  %1240 = vmatprep.subr.mxu0 %v741
  %1241 = vmatpush1.msra.mxu0 %v740
  %1242 = vmatprep.subr.mxu0 %v743
  %1243 = vmatpush1.msra.mxu0 %v742
  %1244 = vmatprep.subr.mxu0 %v745
  %1245 = vmatpush1.msra.mxu0 %v744
  %1246 = vmatprep.subr.mxu0 %v747
  %1247 = vmatpush1.msra.mxu0 %v746
  %1248 = vmatprep.subr.mxu0 %v749
  %1249 = vmatpush1.msra.mxu0 %v748
  %1250 = vmatprep.subr.mxu0 %v751
  %1251 = vmatpush1.msra.mxu0 %v750
  %1252 = vmatprep.subr.mxu0 %v753
  %1253 = vmatpush1.msra.mxu0 %v752
  %1254 = vmatprep.subr.mxu0 %v755
  %1255 = vmatpush1.msra.mxu0 %v754
  %1256 = vmatprep.subr.mxu0 %v757
  %1257 = vmatpush1.msra.mxu0 %v756
  %1258 = vmatprep.subr.mxu0 %v759
  %1259 = vmatpush1.msra.mxu0 %v758
  %1260 = vmatprep.subr.mxu0 %v761
  %1261 = vmatpush1.msra.mxu0 %v760
  %1262 = vmatprep.subr.mxu0 %v763
  %1263 = vmatpush1.msra.mxu0 %v762
  %1264 = vmatprep.subr.mxu0 %v765
  %1265 = vmatpush1.msra.mxu0 %v764
  %1266 = vmatprep.subr.mxu0 %v767
  %1267 = vmatpush1.msra.mxu0 %v766
  %1268 = vmatprep.subr.mxu0 %v769
  %1269 = vmatpush1.msra.mxu0 %v768
  %1270 = vmatprep.subr.mxu0 %v771
  %1271 = vmatpush1.msra.mxu0 %v770
  %1272 = vmatprep.subr.mxu0 %v1208
  %1273 = vmatpush1.msra.mxu0 %v1205
  %1274 = vmatprep.mubr.f32.mxu0 %v1156
  %1275 = vmatmul.mubr.f32.gmra.mrb[0].mxu0 %v1122
  %v1276 = vpop.f32.mrb[0].mxu0
  %v1277 = vadd.f32 0.0, %v1276
  %v1278 = vpop.f32.mrb[0].mxu0
  %v1279 = vadd.f32 0.0, %v1278
  %1280 = vmatprep.mubr.f32.mxu0 %v1159
  %1281 = vmatmul.mubr.f32.gmra.mrb[0].mxu0 %v1124
  %v1282 = vpop.f32.mrb[0].mxu0
  %v1283 = vadd.f32 0.0, %v1282
  %v1284 = vpop.f32.mrb[0].mxu0
  %v1285 = vadd.f32 0.0, %v1284
  %1286 = vmatprep.mubr.f32.mxu0 %v1162
  %1287 = vmatmul.mubr.f32.gmra.mrb[0].mxu0 %v1126
  %v1288 = vpop.f32.mrb[0].mxu0
  %v1289 = vadd.f32 0.0, %v1288
  %v1290 = vpop.f32.mrb[0].mxu0
  %v1291 = vadd.f32 0.0, %v1290
  %1292 = vmatprep.mubr.f32.mxu0 %v1165
  %1293 = vmatmul.mubr.f32.gmra.mrb[0].mxu0 %v1128
  %v1294 = vpop.f32.mrb[0].mxu0
  %v1295 = vadd.f32 0.0, %v1294
  %v1296 = vpop.f32.mrb[0].mxu0
  %v1297 = vadd.f32 0.0, %v1296
  %1298 = vmatprep.mubr.f32.mxu0 %v1168
  %1299 = vmatmul.mubr.f32.gmra.mrb[0].mxu0 %v1130
  %v1300 = vpop.f32.mrb[0].mxu0
  %v1301 = vadd.f32 0.0, %v1300
  %v1302 = vpop.f32.mrb[0].mxu0
  %v1303 = vadd.f32 0.0, %v1302
  %1304 = vmatprep.mubr.f32.mxu0 %v1171
  %1305 = vmatmul.mubr.f32.gmra.mrb[0].mxu0 %v1132
  %v1306 = vpop.f32.mrb[0].mxu0
  %v1307 = vadd.f32 0.0, %v1306
  %v1308 = vpop.f32.mrb[0].mxu0
  %v1309 = vadd.f32 0.0, %v1308
  %1310 = vmatprep.mubr.f32.mxu0 %v1174
  %1311 = vmatmul.mubr.f32.gmra.mrb[0].mxu0 %v1134
  %v1312 = vpop.f32.mrb[0].mxu0
  %v1313 = vadd.f32 0.0, %v1312
  %v1314 = vpop.f32.mrb[0].mxu0
  %v1315 = vadd.f32 0.0, %v1314
  %1316 = vmatprep.mubr.f32.mxu0 %v1177
  %1317 = vmatmul.mubr.f32.gmra.mrb[0].mxu0 %v1136
  %v1318 = vpop.f32.mrb[0].mxu0
  %v1319 = vadd.f32 0.0, %v1318
  %v1320 = vpop.f32.mrb[0].mxu0
  %v1321 = vadd.f32 0.0, %v1320
  %1322 = vmatprep.mubr.f32.mxu0 %v1180
  %1323 = vmatmul.mubr.f32.gmra.mrb[0].mxu0 %v1138
  %v1324 = vpop.f32.mrb[0].mxu0
  %v1325 = vadd.f32 0.0, %v1324
  %v1326 = vpop.f32.mrb[0].mxu0
  %v1327 = vadd.f32 0.0, %v1326
  %1328 = vmatprep.mubr.f32.mxu0 %v1183
  %1329 = vmatmul.mubr.f32.gmra.mrb[0].mxu0 %v1140
  %v1330 = vpop.f32.mrb[0].mxu0
  %v1331 = vadd.f32 0.0, %v1330
  %v1332 = vpop.f32.mrb[0].mxu0
  %v1333 = vadd.f32 0.0, %v1332
  %1334 = vmatprep.mubr.f32.mxu0 %v1186
  %1335 = vmatmul.mubr.f32.gmra.mrb[0].mxu0 %v1142
  %v1336 = vpop.f32.mrb[0].mxu0
  %v1337 = vadd.f32 0.0, %v1336
  %v1338 = vpop.f32.mrb[0].mxu0
  %v1339 = vadd.f32 0.0, %v1338
  %1340 = vmatprep.mubr.f32.mxu0 %v1189
  %1341 = vmatmul.mubr.f32.gmra.mrb[0].mxu0 %v1144
  %v1342 = vpop.f32.mrb[0].mxu0
  %v1343 = vadd.f32 0.0, %v1342
  %v1344 = vpop.f32.mrb[0].mxu0
  %v1345 = vadd.f32 0.0, %v1344
  %1346 = vmatprep.mubr.f32.mxu0 %v1192
  %1347 = vmatmul.mubr.f32.gmra.mrb[0].mxu0 %v1146
  %v1348 = vpop.f32.mrb[0].mxu0
  %v1349 = vadd.f32 0.0, %v1348
  %v1350 = vpop.f32.mrb[0].mxu0
  %v1351 = vadd.f32 0.0, %v1350
  %1352 = vmatprep.mubr.f32.mxu0 %v1195
  %1353 = vmatmul.mubr.f32.gmra.mrb[0].mxu0 %v1148
  %v1354 = vpop.f32.mrb[0].mxu0
  %v1355 = vadd.f32 0.0, %v1354
  %v1356 = vpop.f32.mrb[0].mxu0
  %v1357 = vadd.f32 0.0, %v1356
  %1358 = vmatprep.mubr.f32.mxu0 %v1198
  %1359 = vmatmul.mubr.f32.gmra.mrb[0].mxu0 %v1150
  %v1360 = vpop.f32.mrb[0].mxu0
  %v1361 = vadd.f32 0.0, %v1360
  %v1362 = vpop.f32.mrb[0].mxu0
  %v1363 = vadd.f32 0.0, %v1362
  %1364 = vmatprep.mubr.f32.mxu0 %v1201
  %1365 = vmatmul.mubr.f32.gmra.mrb[0].mxu0 %v1152
  %v1366 = vpop.f32.mrb[0].mxu0
  %v1367 = vadd.f32 0.0, %v1366
  %v1368 = vpop.f32.mrb[0].mxu0
  %v1369 = vadd.f32 0.0, %v1368
  %1370 = vdwg.mxu0
  %vm1371 = vcmp.gt.f32.partialorder %v780, 0.0
  %vm1372 = vcmp.gt.f32.partialorder %v784, 0.0
  %vm1373 = vcmp.gt.f32.partialorder %v791, 0.0
  %vm1374 = vcmp.gt.f32.partialorder %v795, 0.0
  %vm1375 = vcmp.gt.f32.partialorder %v802, 0.0
  %vm1376 = vcmp.gt.f32.partialorder %v806, 0.0
  %vm1377 = vcmp.gt.f32.partialorder %v813, 0.0
  %vm1378 = vcmp.gt.f32.partialorder %v817, 0.0
  %vm1379 = vcmp.gt.f32.partialorder %v824, 0.0
  %vm1380 = vcmp.gt.f32.partialorder %v828, 0.0
  %vm1381 = vcmp.gt.f32.partialorder %v835, 0.0
  %vm1382 = vcmp.gt.f32.partialorder %v839, 0.0
  %vm1383 = vcmp.gt.f32.partialorder %v846, 0.0
  %vm1384 = vcmp.gt.f32.partialorder %v850, 0.0
  %vm1385 = vcmp.gt.f32.partialorder %v857, 0.0
  %vm1386 = vcmp.gt.f32.partialorder %v861, 0.0
  %v1387 = vsel %vm1371, 1, 0
  %v1388 = vsel %vm1372, 1, 0
  %v1389 = vsel %vm1373, 1, 0
  %v1390 = vsel %vm1374, 1, 0
  %v1391 = vsel %vm1375, 1, 0
  %v1392 = vsel %vm1376, 1, 0
  %v1393 = vsel %vm1377, 1, 0
  %v1394 = vsel %vm1378, 1, 0
  %v1395 = vsel %vm1379, 1, 0
  %v1396 = vsel %vm1380, 1, 0
  %v1397 = vsel %vm1381, 1, 0
  %v1398 = vsel %vm1382, 1, 0
  %v1399 = vsel %vm1383, 1, 0
  %v1400 = vsel %vm1384, 1, 0
  %v1401 = vsel %vm1385, 1, 0
  %v1402 = vsel %vm1386, 1, 0
  %vm1403 = vcmp.eq.s32.totalorder %v1387, 1
  %vm1404 = vcmp.eq.s32.totalorder %v1388, 1
  %vm1405 = vcmp.eq.s32.totalorder %v1389, 1
  %vm1406 = vcmp.eq.s32.totalorder %v1390, 1
  %vm1407 = vcmp.eq.s32.totalorder %v1391, 1
  %vm1408 = vcmp.eq.s32.totalorder %v1392, 1
  %vm1409 = vcmp.eq.s32.totalorder %v1393, 1
  %vm1410 = vcmp.eq.s32.totalorder %v1394, 1
  %vm1411 = vcmp.eq.s32.totalorder %v1395, 1
  %vm1412 = vcmp.eq.s32.totalorder %v1396, 1
  %vm1413 = vcmp.eq.s32.totalorder %v1397, 1
  %vm1414 = vcmp.eq.s32.totalorder %v1398, 1
  %vm1415 = vcmp.eq.s32.totalorder %v1399, 1
  %vm1416 = vcmp.eq.s32.totalorder %v1400, 1
  %vm1417 = vcmp.eq.s32.totalorder %v1401, 1
  %vm1418 = vcmp.eq.s32.totalorder %v1402, 1
  %v1419 = vsel %vm1403, %v1277, -1e+30
  %v1420 = vsel %vm1403, %v1279, -1e+30
  %v1421 = vsel %vm1404, %v1283, -1e+30
  %v1422 = vsel %vm1404, %v1285, -1e+30
  %v1423 = vsel %vm1405, %v1289, -1e+30
  %v1424 = vsel %vm1405, %v1291, -1e+30
  %v1425 = vsel %vm1406, %v1295, -1e+30
  %v1426 = vsel %vm1406, %v1297, -1e+30
  %v1427 = vsel %vm1407, %v1301, -1e+30
  %v1428 = vsel %vm1407, %v1303, -1e+30
  %v1429 = vsel %vm1408, %v1307, -1e+30
  %v1430 = vsel %vm1408, %v1309, -1e+30
  %v1431 = vsel %vm1409, %v1313, -1e+30
  %v1432 = vsel %vm1409, %v1315, -1e+30
  %v1433 = vsel %vm1410, %v1319, -1e+30
  %v1434 = vsel %vm1410, %v1321, -1e+30
  %v1435 = vsel %vm1411, %v1325, -1e+30
  %v1436 = vsel %vm1411, %v1327, -1e+30
  %v1437 = vsel %vm1412, %v1331, -1e+30
  %v1438 = vsel %vm1412, %v1333, -1e+30
  %v1439 = vsel %vm1413, %v1337, -1e+30
  %v1440 = vsel %vm1413, %v1339, -1e+30
  %v1441 = vsel %vm1414, %v1343, -1e+30
  %v1442 = vsel %vm1414, %v1345, -1e+30
  %v1443 = vsel %vm1415, %v1349, -1e+30
  %v1444 = vsel %vm1415, %v1351, -1e+30
  %v1445 = vsel %vm1416, %v1355, -1e+30
  %v1446 = vsel %vm1416, %v1357, -1e+30
  %v1447 = vsel %vm1417, %v1361, -1e+30
  %v1448 = vsel %vm1417, %v1363, -1e+30
  %v1449 = vsel %vm1418, %v1367, -1e+30
  %v1450 = vsel %vm1418, %v1369, -1e+30
  %v1451 = vmax.f32 %v1419, %v1421
  %v1452 = vrot.slane %v1451, 4
  %v1453 = vmax.f32 %v1451, %v1452
  %v1454 = vrot.slane %v1453, 2
  %v1455 = vmax.f32 %v1453, %v1454
  %v1456 = vrot.slane %v1455, 1
  %v1457 = vmax.f32 %v1455, %v1456
  %v1458 = vsel %vm1154, %v1420, -inf
  %v1459 = vsel %vm1154, %v1422, -inf
  %v1460 = vmax.f32 %v1458, %v1459
  %v1461 = vrot.slane %v1460, 4
  %v1462 = vmax.f32 %v1460, %v1461
  %v1463 = vrot.slane %v1462, 2
  %v1464 = vmax.f32 %v1462, %v1463
  %v1465 = vrot.slane %v1464, 1
  %v1466 = vmax.f32 %v1464, %v1465
  %v1467 = vmax.f32 %v1423, %v1425
  %v1468 = vrot.slane %v1467, 4
  %v1469 = vmax.f32 %v1467, %v1468
  %v1470 = vrot.slane %v1469, 2
  %v1471 = vmax.f32 %v1469, %v1470
  %v1472 = vrot.slane %v1471, 1
  %v1473 = vmax.f32 %v1471, %v1472
  %v1474 = vsel %vm1154, %v1424, -inf
  %v1475 = vsel %vm1154, %v1426, -inf
  %v1476 = vmax.f32 %v1474, %v1475
  %v1477 = vrot.slane %v1476, 4
  %v1478 = vmax.f32 %v1476, %v1477
  %v1479 = vrot.slane %v1478, 2
  %v1480 = vmax.f32 %v1478, %v1479
  %v1481 = vrot.slane %v1480, 1
  %v1482 = vmax.f32 %v1480, %v1481
  %v1483 = vmax.f32 %v1427, %v1429
  %v1484 = vrot.slane %v1483, 4
  %v1485 = vmax.f32 %v1483, %v1484
  %v1486 = vrot.slane %v1485, 2
  %v1487 = vmax.f32 %v1485, %v1486
  %v1488 = vrot.slane %v1487, 1
  %v1489 = vmax.f32 %v1487, %v1488
  %v1490 = vsel %vm1154, %v1428, -inf
  %v1491 = vsel %vm1154, %v1430, -inf
  %v1492 = vmax.f32 %v1490, %v1491
  %v1493 = vrot.slane %v1492, 4
  %v1494 = vmax.f32 %v1492, %v1493
  %v1495 = vrot.slane %v1494, 2
  %v1496 = vmax.f32 %v1494, %v1495
  %v1497 = vrot.slane %v1496, 1
  %v1498 = vmax.f32 %v1496, %v1497
  %v1499 = vmax.f32 %v1431, %v1433
  %v1500 = vrot.slane %v1499, 4
  %v1501 = vmax.f32 %v1499, %v1500
  %v1502 = vrot.slane %v1501, 2
  %v1503 = vmax.f32 %v1501, %v1502
  %v1504 = vrot.slane %v1503, 1
  %v1505 = vmax.f32 %v1503, %v1504
  %v1506 = vsel %vm1154, %v1432, -inf
  %v1507 = vsel %vm1154, %v1434, -inf
  %v1508 = vmax.f32 %v1506, %v1507
  %v1509 = vrot.slane %v1508, 4
  %v1510 = vmax.f32 %v1508, %v1509
  %v1511 = vrot.slane %v1510, 2
  %v1512 = vmax.f32 %v1510, %v1511
  %v1513 = vrot.slane %v1512, 1
  %v1514 = vmax.f32 %v1512, %v1513
  %v1515 = vmax.f32 %v1435, %v1437
  %v1516 = vrot.slane %v1515, 4
  %v1517 = vmax.f32 %v1515, %v1516
  %v1518 = vrot.slane %v1517, 2
  %v1519 = vmax.f32 %v1517, %v1518
  %v1520 = vrot.slane %v1519, 1
  %v1521 = vmax.f32 %v1519, %v1520
  %v1522 = vsel %vm1154, %v1436, -inf
  %v1523 = vsel %vm1154, %v1438, -inf
  %v1524 = vmax.f32 %v1522, %v1523
  %v1525 = vrot.slane %v1524, 4
  %v1526 = vmax.f32 %v1524, %v1525
  %v1527 = vrot.slane %v1526, 2
  %v1528 = vmax.f32 %v1526, %v1527
  %v1529 = vrot.slane %v1528, 1
  %v1530 = vmax.f32 %v1528, %v1529
  %v1531 = vmax.f32 %v1439, %v1441
  %v1532 = vrot.slane %v1531, 4
  %v1533 = vmax.f32 %v1531, %v1532
  %v1534 = vrot.slane %v1533, 2
  %v1535 = vmax.f32 %v1533, %v1534
  %v1536 = vrot.slane %v1535, 1
  %v1537 = vmax.f32 %v1535, %v1536
  %v1538 = vsel %vm1154, %v1440, -inf
  %v1539 = vsel %vm1154, %v1442, -inf
  %v1540 = vmax.f32 %v1538, %v1539
  %v1541 = vrot.slane %v1540, 4
  %v1542 = vmax.f32 %v1540, %v1541
  %v1543 = vrot.slane %v1542, 2
  %v1544 = vmax.f32 %v1542, %v1543
  %v1545 = vrot.slane %v1544, 1
  %v1546 = vmax.f32 %v1544, %v1545
  %v1547 = vmax.f32 %v1443, %v1445
  %v1548 = vrot.slane %v1547, 4
  %v1549 = vmax.f32 %v1547, %v1548
  %v1550 = vrot.slane %v1549, 2
  %v1551 = vmax.f32 %v1549, %v1550
  %v1552 = vrot.slane %v1551, 1
  %v1553 = vmax.f32 %v1551, %v1552
  %v1554 = vsel %vm1154, %v1444, -inf
  %v1555 = vsel %vm1154, %v1446, -inf
  %v1556 = vmax.f32 %v1554, %v1555
  %v1557 = vrot.slane %v1556, 4
  %v1558 = vmax.f32 %v1556, %v1557
  %v1559 = vrot.slane %v1558, 2
  %v1560 = vmax.f32 %v1558, %v1559
  %v1561 = vrot.slane %v1560, 1
  %v1562 = vmax.f32 %v1560, %v1561
  %v1563 = vmax.f32 %v1447, %v1449
  %v1564 = vrot.slane %v1563, 4
  %v1565 = vmax.f32 %v1563, %v1564
  %v1566 = vrot.slane %v1565, 2
  %v1567 = vmax.f32 %v1565, %v1566
  %v1568 = vrot.slane %v1567, 1
  %v1569 = vmax.f32 %v1567, %v1568
  %v1570 = vsel %vm1154, %v1448, -inf
  %v1571 = vsel %vm1154, %v1450, -inf
  %v1572 = vmax.f32 %v1570, %v1571
  %v1573 = vrot.slane %v1572, 4
  %v1574 = vmax.f32 %v1572, %v1573
  %v1575 = vrot.slane %v1574, 2
  %v1576 = vmax.f32 %v1574, %v1575
  %v1577 = vrot.slane %v1576, 1
  %v1578 = vmax.f32 %v1576, %v1577
  %v1579 = vsub.f32 %v1419, %v1457
  %v1580 = vsub.f32 %v1420, %v1466
  %v1581 = vsub.f32 %v1421, %v1457
  %v1582 = vsub.f32 %v1422, %v1466
  %v1583 = vsub.f32 %v1423, %v1473
  %v1584 = vsub.f32 %v1424, %v1482
  %v1585 = vsub.f32 %v1425, %v1473
  %v1586 = vsub.f32 %v1426, %v1482
  %v1587 = vsub.f32 %v1427, %v1489
  %v1588 = vsub.f32 %v1428, %v1498
  %v1589 = vsub.f32 %v1429, %v1489
  %v1590 = vsub.f32 %v1430, %v1498
  %v1591 = vsub.f32 %v1431, %v1505
  %v1592 = vsub.f32 %v1432, %v1514
  %v1593 = vsub.f32 %v1433, %v1505
  %v1594 = vsub.f32 %v1434, %v1514
  %v1595 = vsub.f32 %v1435, %v1521
  %v1596 = vsub.f32 %v1436, %v1530
  %v1597 = vsub.f32 %v1437, %v1521
  %v1598 = vsub.f32 %v1438, %v1530
  %v1599 = vsub.f32 %v1439, %v1537
  %v1600 = vsub.f32 %v1440, %v1546
  %v1601 = vsub.f32 %v1441, %v1537
  %v1602 = vsub.f32 %v1442, %v1546
  %v1603 = vsub.f32 %v1443, %v1553
  %v1604 = vsub.f32 %v1444, %v1562
  %v1605 = vsub.f32 %v1445, %v1553
  %v1606 = vsub.f32 %v1446, %v1562
  %v1607 = vsub.f32 %v1447, %v1569
  %v1608 = vsub.f32 %v1448, %v1578
  %v1609 = vsub.f32 %v1449, %v1569
  %v1610 = vsub.f32 %v1450, %v1578
  %v1611 = vmul.f32 %v1579, 1.442695
  %v1612 = vpow.pop %v1611
  %v1613 = vmul.f32 %v1580, 1.442695
  %v1614 = vpow.pop %v1613
  %v1615 = vmul.f32 %v1581, 1.442695
  %v1616 = vpow.pop %v1615
  %v1617 = vmul.f32 %v1582, 1.442695
  %v1618 = vpow.pop %v1617
  %v1619 = vmul.f32 %v1583, 1.442695
  %v1620 = vpow.pop %v1619
  %v1621 = vmul.f32 %v1584, 1.442695
  %v1622 = vpow.pop %v1621
  %v1623 = vmul.f32 %v1585, 1.442695
  %v1624 = vpow.pop %v1623
  %v1625 = vmul.f32 %v1586, 1.442695
  %v1626 = vpow.pop %v1625
  %v1627 = vmul.f32 %v1587, 1.442695
  %v1628 = vpow.pop %v1627
  %v1629 = vmul.f32 %v1588, 1.442695
  %v1630 = vpow.pop %v1629
  %v1631 = vmul.f32 %v1589, 1.442695
  %v1632 = vpow.pop %v1631
  %v1633 = vmul.f32 %v1590, 1.442695
  %v1634 = vpow.pop %v1633
  %v1635 = vmul.f32 %v1591, 1.442695
  %v1636 = vpow.pop %v1635
  %v1637 = vmul.f32 %v1592, 1.442695
  %v1638 = vpow.pop %v1637
  %v1639 = vmul.f32 %v1593, 1.442695
  %v1640 = vpow.pop %v1639
  %v1641 = vmul.f32 %v1594, 1.442695
  %v1642 = vpow.pop %v1641
  %v1643 = vmul.f32 %v1595, 1.442695
  %v1644 = vpow.pop %v1643
  %v1645 = vmul.f32 %v1596, 1.442695
  %v1646 = vpow.pop %v1645
  %v1647 = vmul.f32 %v1597, 1.442695
  %v1648 = vpow.pop %v1647
  %v1649 = vmul.f32 %v1598, 1.442695
  %v1650 = vpow.pop %v1649
  %v1651 = vmul.f32 %v1599, 1.442695
  %v1652 = vpow.pop %v1651
  %v1653 = vmul.f32 %v1600, 1.442695
  %v1654 = vpow.pop %v1653
  %v1655 = vmul.f32 %v1601, 1.442695
  %v1656 = vpow.pop %v1655
  %v1657 = vmul.f32 %v1602, 1.442695
  %v1658 = vpow.pop %v1657
  %v1659 = vmul.f32 %v1603, 1.442695
  %v1660 = vpow.pop %v1659
  %v1661 = vmul.f32 %v1604, 1.442695
  %v1662 = vpow.pop %v1661
  %v1663 = vmul.f32 %v1605, 1.442695
  %v1664 = vpow.pop %v1663
  %v1665 = vmul.f32 %v1606, 1.442695
  %v1666 = vpow.pop %v1665
  %v1667 = vmul.f32 %v1607, 1.442695
  %v1668 = vpow.pop %v1667
  %v1669 = vmul.f32 %v1608, 1.442695
  %v1670 = vpow.pop %v1669
  %v1671 = vmul.f32 %v1609, 1.442695
  %v1672 = vpow.pop %v1671
  %v1673 = vmul.f32 %v1610, 1.442695
  %v1674 = vpow.pop %v1673
  %v1675 = vsel %vm1403, %v1612, 0.0
  %v1676 = vsel %vm1403, %v1614, 0.0
  %v1677 = vsel %vm1404, %v1616, 0.0
  %v1678 = vsel %vm1404, %v1618, 0.0
  %v1679 = vsel %vm1405, %v1620, 0.0
  %v1680 = vsel %vm1405, %v1622, 0.0
  %v1681 = vsel %vm1406, %v1624, 0.0
  %v1682 = vsel %vm1406, %v1626, 0.0
  %v1683 = vsel %vm1407, %v1628, 0.0
  %v1684 = vsel %vm1407, %v1630, 0.0
  %v1685 = vsel %vm1408, %v1632, 0.0
  %v1686 = vsel %vm1408, %v1634, 0.0
  %v1687 = vsel %vm1409, %v1636, 0.0
  %v1688 = vsel %vm1409, %v1638, 0.0
  %v1689 = vsel %vm1410, %v1640, 0.0
  %v1690 = vsel %vm1410, %v1642, 0.0
  %v1691 = vsel %vm1411, %v1644, 0.0
  %v1692 = vsel %vm1411, %v1646, 0.0
  %v1693 = vsel %vm1412, %v1648, 0.0
  %v1694 = vsel %vm1412, %v1650, 0.0
  %v1695 = vsel %vm1413, %v1652, 0.0
  %v1696 = vsel %vm1413, %v1654, 0.0
  %v1697 = vsel %vm1414, %v1656, 0.0
  %v1698 = vsel %vm1414, %v1658, 0.0
  %v1699 = vsel %vm1415, %v1660, 0.0
  %v1700 = vsel %vm1415, %v1662, 0.0
  %v1701 = vsel %vm1416, %v1664, 0.0
  %v1702 = vsel %vm1416, %v1666, 0.0
  %v1703 = vsel %vm1417, %v1668, 0.0
  %v1704 = vsel %vm1417, %v1670, 0.0
  %v1705 = vsel %vm1418, %v1672, 0.0
  %v1706 = vsel %vm1418, %v1674, 0.0
  %v1707 = vadd.f32 %v1675, %v1677
  %v1708 = vrot.slane %v1707, 4
  %v1709 = vadd.f32 %v1707, %v1708
  %v1710 = vrot.slane %v1709, 2
  %v1711 = vadd.f32 %v1709, %v1710
  %v1712 = vrot.slane %v1711, 1
  %v1713 = vadd.f32 %v1711, %v1712
  %v1714 = vsel %vm1154, %v1676, 0.0
  %v1715 = vsel %vm1154, %v1678, 0.0
  %v1716 = vadd.f32 %v1714, %v1715
  %v1717 = vrot.slane %v1716, 4
  %v1718 = vadd.f32 %v1716, %v1717
  %v1719 = vrot.slane %v1718, 2
  %v1720 = vadd.f32 %v1718, %v1719
  %v1721 = vrot.slane %v1720, 1
  %v1722 = vadd.f32 %v1720, %v1721
  %v1723 = vadd.f32 %v1679, %v1681
  %v1724 = vrot.slane %v1723, 4
  %v1725 = vadd.f32 %v1723, %v1724
  %v1726 = vrot.slane %v1725, 2
  %v1727 = vadd.f32 %v1725, %v1726
  %v1728 = vrot.slane %v1727, 1
  %v1729 = vadd.f32 %v1727, %v1728
  %v1730 = vsel %vm1154, %v1680, 0.0
  %v1731 = vsel %vm1154, %v1682, 0.0
  %v1732 = vadd.f32 %v1730, %v1731
  %v1733 = vrot.slane %v1732, 4
  %v1734 = vadd.f32 %v1732, %v1733
  %v1735 = vrot.slane %v1734, 2
  %v1736 = vadd.f32 %v1734, %v1735
  %v1737 = vrot.slane %v1736, 1
  %v1738 = vadd.f32 %v1736, %v1737
  %v1739 = vadd.f32 %v1683, %v1685
  %v1740 = vrot.slane %v1739, 4
  %v1741 = vadd.f32 %v1739, %v1740
  %v1742 = vrot.slane %v1741, 2
  %v1743 = vadd.f32 %v1741, %v1742
  %v1744 = vrot.slane %v1743, 1
  %v1745 = vadd.f32 %v1743, %v1744
  %v1746 = vsel %vm1154, %v1684, 0.0
  %v1747 = vsel %vm1154, %v1686, 0.0
  %v1748 = vadd.f32 %v1746, %v1747
  %v1749 = vrot.slane %v1748, 4
  %v1750 = vadd.f32 %v1748, %v1749
  %v1751 = vrot.slane %v1750, 2
  %v1752 = vadd.f32 %v1750, %v1751
  %v1753 = vrot.slane %v1752, 1
  %v1754 = vadd.f32 %v1752, %v1753
  %v1755 = vadd.f32 %v1687, %v1689
  %v1756 = vrot.slane %v1755, 4
  %v1757 = vadd.f32 %v1755, %v1756
  %v1758 = vrot.slane %v1757, 2
  %v1759 = vadd.f32 %v1757, %v1758
  %v1760 = vrot.slane %v1759, 1
  %v1761 = vadd.f32 %v1759, %v1760
  %v1762 = vsel %vm1154, %v1688, 0.0
  %v1763 = vsel %vm1154, %v1690, 0.0
  %v1764 = vadd.f32 %v1762, %v1763
  %v1765 = vrot.slane %v1764, 4
  %v1766 = vadd.f32 %v1764, %v1765
  %v1767 = vrot.slane %v1766, 2
  %v1768 = vadd.f32 %v1766, %v1767
  %v1769 = vrot.slane %v1768, 1
  %v1770 = vadd.f32 %v1768, %v1769
  %v1771 = vadd.f32 %v1691, %v1693
  %v1772 = vrot.slane %v1771, 4
  %v1773 = vadd.f32 %v1771, %v1772
  %v1774 = vrot.slane %v1773, 2
  %v1775 = vadd.f32 %v1773, %v1774
  %v1776 = vrot.slane %v1775, 1
  %v1777 = vadd.f32 %v1775, %v1776
  %v1778 = vsel %vm1154, %v1692, 0.0
  %v1779 = vsel %vm1154, %v1694, 0.0
  %v1780 = vadd.f32 %v1778, %v1779
  %v1781 = vrot.slane %v1780, 4
  %v1782 = vadd.f32 %v1780, %v1781
  %v1783 = vrot.slane %v1782, 2
  %v1784 = vadd.f32 %v1782, %v1783
  %v1785 = vrot.slane %v1784, 1
  %v1786 = vadd.f32 %v1784, %v1785
  %v1787 = vadd.f32 %v1695, %v1697
  %v1788 = vrot.slane %v1787, 4
  %v1789 = vadd.f32 %v1787, %v1788
  %v1790 = vrot.slane %v1789, 2
  %v1791 = vadd.f32 %v1789, %v1790
  %v1792 = vrot.slane %v1791, 1
  %v1793 = vadd.f32 %v1791, %v1792
  %v1794 = vsel %vm1154, %v1696, 0.0
  %v1795 = vsel %vm1154, %v1698, 0.0
  %v1796 = vadd.f32 %v1794, %v1795
  %v1797 = vrot.slane %v1796, 4
  %v1798 = vadd.f32 %v1796, %v1797
  %v1799 = vrot.slane %v1798, 2
  %v1800 = vadd.f32 %v1798, %v1799
  %v1801 = vrot.slane %v1800, 1
  %v1802 = vadd.f32 %v1800, %v1801
  %v1803 = vadd.f32 %v1699, %v1701
  %v1804 = vrot.slane %v1803, 4
  %v1805 = vadd.f32 %v1803, %v1804
  %v1806 = vrot.slane %v1805, 2
  %v1807 = vadd.f32 %v1805, %v1806
  %v1808 = vrot.slane %v1807, 1
  %v1809 = vadd.f32 %v1807, %v1808
  %v1810 = vsel %vm1154, %v1700, 0.0
  %v1811 = vsel %vm1154, %v1702, 0.0
  %v1812 = vadd.f32 %v1810, %v1811
  %v1813 = vrot.slane %v1812, 4
  %v1814 = vadd.f32 %v1812, %v1813
  %v1815 = vrot.slane %v1814, 2
  %v1816 = vadd.f32 %v1814, %v1815
  %v1817 = vrot.slane %v1816, 1
  %v1818 = vadd.f32 %v1816, %v1817
  %v1819 = vadd.f32 %v1703, %v1705
  %v1820 = vrot.slane %v1819, 4
  %v1821 = vadd.f32 %v1819, %v1820
  %v1822 = vrot.slane %v1821, 2
  %v1823 = vadd.f32 %v1821, %v1822
  %v1824 = vrot.slane %v1823, 1
  %v1825 = vadd.f32 %v1823, %v1824
  %v1826 = vsel %vm1154, %v1704, 0.0
  %v1827 = vsel %vm1154, %v1706, 0.0
  %v1828 = vadd.f32 %v1826, %v1827
  %v1829 = vrot.slane %v1828, 4
  %v1830 = vadd.f32 %v1828, %v1829
  %v1831 = vrot.slane %v1830, 2
  %v1832 = vadd.f32 %v1830, %v1831
  %v1833 = vrot.slane %v1832, 1
  %v1834 = vadd.f32 %v1832, %v1833
  %v1835 = vrcp.pop %v1713
  %v1836 = vrcp.pop %v1722
  %v1837 = vrcp.pop %v1729
  %v1838 = vrcp.pop %v1738
  %v1839 = vrcp.pop %v1745
  %v1840 = vrcp.pop %v1754
  %v1841 = vrcp.pop %v1761
  %v1842 = vrcp.pop %v1770
  %v1843 = vrcp.pop %v1777
  %v1844 = vrcp.pop %v1786
  %v1845 = vrcp.pop %v1793
  %v1846 = vrcp.pop %v1802
  %v1847 = vrcp.pop %v1809
  %v1848 = vrcp.pop %v1818
  %v1849 = vrcp.pop %v1825
  %v1850 = vrcp.pop %v1834
  %v1851 = vmul.f32 %v1675, %v1835
  %v1852 = vmul.f32 %v1676, %v1836
  %v1853 = vmul.f32 %v1677, %v1835
  %v1854 = vmul.f32 %v1678, %v1836
  %v1855 = vmul.f32 %v1679, %v1837
  %v1856 = vmul.f32 %v1680, %v1838
  %v1857 = vmul.f32 %v1681, %v1837
  %v1858 = vmul.f32 %v1682, %v1838
  %v1859 = vmul.f32 %v1683, %v1839
  %v1860 = vmul.f32 %v1684, %v1840
  %v1861 = vmul.f32 %v1685, %v1839
  %v1862 = vmul.f32 %v1686, %v1840
  %v1863 = vmul.f32 %v1687, %v1841
  %v1864 = vmul.f32 %v1688, %v1842
  %v1865 = vmul.f32 %v1689, %v1841
  %v1866 = vmul.f32 %v1690, %v1842
  %v1867 = vmul.f32 %v1691, %v1843
  %v1868 = vmul.f32 %v1692, %v1844
  %v1869 = vmul.f32 %v1693, %v1843
  %v1870 = vmul.f32 %v1694, %v1844
  %v1871 = vmul.f32 %v1695, %v1845
  %v1872 = vmul.f32 %v1696, %v1846
  %v1873 = vmul.f32 %v1697, %v1845
  %v1874 = vmul.f32 %v1698, %v1846
  %v1875 = vmul.f32 %v1699, %v1847
  %v1876 = vmul.f32 %v1700, %v1848
  %v1877 = vmul.f32 %v1701, %v1847
  %v1878 = vmul.f32 %v1702, %v1848
  %v1879 = vmul.f32 %v1703, %v1849
  %v1880 = vmul.f32 %v1704, %v1850
  %v1881 = vmul.f32 %v1705, %v1849
  %v1882 = vmul.f32 %v1706, %v1850
  %v1883 = vmul.f32 %v1851, %v182
  %v1884 = vmul.f32 %v1852, %v184
  %v1885 = vmul.f32 %v1853, %v188
  %v1886 = vmul.f32 %v1854, %v190
  %v1887 = vmul.f32 %v1855, %v182
  %v1888 = vmul.f32 %v1856, %v184
  %v1889 = vmul.f32 %v1857, %v188
  %v1890 = vmul.f32 %v1858, %v190
  %v1891 = vmul.f32 %v1859, %v182
  %v1892 = vmul.f32 %v1860, %v184
  %v1893 = vmul.f32 %v1861, %v188
  %v1894 = vmul.f32 %v1862, %v190
  %v1895 = vmul.f32 %v1863, %v182
  %v1896 = vmul.f32 %v1864, %v184
  %v1897 = vmul.f32 %v1865, %v188
  %v1898 = vmul.f32 %v1866, %v190
  %v1899 = vmul.f32 %v1867, %v182
  %v1900 = vmul.f32 %v1868, %v184
  %v1901 = vmul.f32 %v1869, %v188
  %v1902 = vmul.f32 %v1870, %v190
  %v1903 = vmul.f32 %v1871, %v182
  %v1904 = vmul.f32 %v1872, %v184
  %v1905 = vmul.f32 %v1873, %v188
  %v1906 = vmul.f32 %v1874, %v190
  %v1907 = vmul.f32 %v1875, %v182
  %v1908 = vmul.f32 %v1876, %v184
  %v1909 = vmul.f32 %v1877, %v188
  %v1910 = vmul.f32 %v1878, %v190
  %v1911 = vmul.f32 %v1879, %v182
  %v1912 = vmul.f32 %v1880, %v184
  %v1913 = vmul.f32 %v1881, %v188
  %v1914 = vmul.f32 %v1882, %v190
  %v1915 = vadd.f32 %v1883, %v1885
  %v1916 = vrot.slane %v1915, 4
  %v1917 = vadd.f32 %v1915, %v1916
  %v1918 = vrot.slane %v1917, 2
  %v1919 = vadd.f32 %v1917, %v1918
  %v1920 = vrot.slane %v1919, 1
  %v1921 = vadd.f32 %v1919, %v1920
  %v1922 = vsel %vm1154, %v1884, 0.0
  %v1923 = vsel %vm1154, %v1886, 0.0
  %v1924 = vadd.f32 %v1922, %v1923
  %v1925 = vrot.slane %v1924, 4
  %v1926 = vadd.f32 %v1924, %v1925
  %v1927 = vrot.slane %v1926, 2
  %v1928 = vadd.f32 %v1926, %v1927
  %v1929 = vrot.slane %v1928, 1
  %v1930 = vadd.f32 %v1928, %v1929
  %v1931 = vadd.f32 %v1887, %v1889
  %v1932 = vrot.slane %v1931, 4
  %v1933 = vadd.f32 %v1931, %v1932
  %v1934 = vrot.slane %v1933, 2
  %v1935 = vadd.f32 %v1933, %v1934
  %v1936 = vrot.slane %v1935, 1
  %v1937 = vadd.f32 %v1935, %v1936
  %v1938 = vsel %vm1154, %v1888, 0.0
  %v1939 = vsel %vm1154, %v1890, 0.0
  %v1940 = vadd.f32 %v1938, %v1939
  %v1941 = vrot.slane %v1940, 4
  %v1942 = vadd.f32 %v1940, %v1941
  %v1943 = vrot.slane %v1942, 2
  %v1944 = vadd.f32 %v1942, %v1943
  %v1945 = vrot.slane %v1944, 1
  %v1946 = vadd.f32 %v1944, %v1945
  %v1947 = vadd.f32 %v1891, %v1893
  %v1948 = vrot.slane %v1947, 4
  %v1949 = vadd.f32 %v1947, %v1948
  %v1950 = vrot.slane %v1949, 2
  %v1951 = vadd.f32 %v1949, %v1950
  %v1952 = vrot.slane %v1951, 1
  %v1953 = vadd.f32 %v1951, %v1952
  %v1954 = vsel %vm1154, %v1892, 0.0
  %v1955 = vsel %vm1154, %v1894, 0.0
  %v1956 = vadd.f32 %v1954, %v1955
  %v1957 = vrot.slane %v1956, 4
  %v1958 = vadd.f32 %v1956, %v1957
  %v1959 = vrot.slane %v1958, 2
  %v1960 = vadd.f32 %v1958, %v1959
  %v1961 = vrot.slane %v1960, 1
  %v1962 = vadd.f32 %v1960, %v1961
  %v1963 = vadd.f32 %v1895, %v1897
  %v1964 = vrot.slane %v1963, 4
  %v1965 = vadd.f32 %v1963, %v1964
  %v1966 = vrot.slane %v1965, 2
  %v1967 = vadd.f32 %v1965, %v1966
  %v1968 = vrot.slane %v1967, 1
  %v1969 = vadd.f32 %v1967, %v1968
  %v1970 = vsel %vm1154, %v1896, 0.0
  %v1971 = vsel %vm1154, %v1898, 0.0
  %v1972 = vadd.f32 %v1970, %v1971
  %v1973 = vrot.slane %v1972, 4
  %v1974 = vadd.f32 %v1972, %v1973
  %v1975 = vrot.slane %v1974, 2
  %v1976 = vadd.f32 %v1974, %v1975
  %v1977 = vrot.slane %v1976, 1
  %v1978 = vadd.f32 %v1976, %v1977
  %v1979 = vadd.f32 %v1899, %v1901
  %v1980 = vrot.slane %v1979, 4
  %v1981 = vadd.f32 %v1979, %v1980
  %v1982 = vrot.slane %v1981, 2
  %v1983 = vadd.f32 %v1981, %v1982
  %v1984 = vrot.slane %v1983, 1
  %v1985 = vadd.f32 %v1983, %v1984
  %v1986 = vsel %vm1154, %v1900, 0.0
  %v1987 = vsel %vm1154, %v1902, 0.0
  %v1988 = vadd.f32 %v1986, %v1987
  %v1989 = vrot.slane %v1988, 4
  %v1990 = vadd.f32 %v1988, %v1989
  %v1991 = vrot.slane %v1990, 2
  %v1992 = vadd.f32 %v1990, %v1991
  %v1993 = vrot.slane %v1992, 1
  %v1994 = vadd.f32 %v1992, %v1993
  %v1995 = vadd.f32 %v1903, %v1905
  %v1996 = vrot.slane %v1995, 4
  %v1997 = vadd.f32 %v1995, %v1996
  %v1998 = vrot.slane %v1997, 2
  %v1999 = vadd.f32 %v1997, %v1998
  %v2000 = vrot.slane %v1999, 1
  %v2001 = vadd.f32 %v1999, %v2000
  %v2002 = vsel %vm1154, %v1904, 0.0
  %v2003 = vsel %vm1154, %v1906, 0.0
  %v2004 = vadd.f32 %v2002, %v2003
  %v2005 = vrot.slane %v2004, 4
  %v2006 = vadd.f32 %v2004, %v2005
  %v2007 = vrot.slane %v2006, 2
  %v2008 = vadd.f32 %v2006, %v2007
  %v2009 = vrot.slane %v2008, 1
  %v2010 = vadd.f32 %v2008, %v2009
  %v2011 = vadd.f32 %v1907, %v1909
  %v2012 = vrot.slane %v2011, 4
  %v2013 = vadd.f32 %v2011, %v2012
  %v2014 = vrot.slane %v2013, 2
  %v2015 = vadd.f32 %v2013, %v2014
  %v2016 = vrot.slane %v2015, 1
  %v2017 = vadd.f32 %v2015, %v2016
  %v2018 = vsel %vm1154, %v1908, 0.0
  %v2019 = vsel %vm1154, %v1910, 0.0
  %v2020 = vadd.f32 %v2018, %v2019
  %v2021 = vrot.slane %v2020, 4
  %v2022 = vadd.f32 %v2020, %v2021
  %v2023 = vrot.slane %v2022, 2
  %v2024 = vadd.f32 %v2022, %v2023
  %v2025 = vrot.slane %v2024, 1
  %v2026 = vadd.f32 %v2024, %v2025
  %v2027 = vadd.f32 %v1911, %v1913
  %v2028 = vrot.slane %v2027, 4
  %v2029 = vadd.f32 %v2027, %v2028
  %v2030 = vrot.slane %v2029, 2
  %v2031 = vadd.f32 %v2029, %v2030
  %v2032 = vrot.slane %v2031, 1
  %v2033 = vadd.f32 %v2031, %v2032
  %v2034 = vsel %vm1154, %v1912, 0.0
  %v2035 = vsel %vm1154, %v1914, 0.0
  %v2036 = vadd.f32 %v2034, %v2035
  %v2037 = vrot.slane %v2036, 4
  %v2038 = vadd.f32 %v2036, %v2037
  %v2039 = vrot.slane %v2038, 2
  %v2040 = vadd.f32 %v2038, %v2039
  %v2041 = vrot.slane %v2040, 1
  %v2042 = vadd.f32 %v2040, %v2041
  %v2043 = vlaneseq
  %v2044 = vshrl.u32 %v2043, 7
  %v2045 = vsub.s32 0, %v2044
  %v2046 = vrot.slane %v70, %v2045
  %2048 = vbcast.lane.b32.xlu0 %v2046, 256
  %v2049 = vpop.permute.xlu0 %2048
  %s2051 = sor.u32 256, 8
  %2052 = vbcast.lane.b32.xlu0 %v2046, %s2051
  %v2053 = vpop.permute.xlu0 %2052
  %v2054 = vlaneseq
  %v2055 = vshrl.u32 %v2054, 7
  %v2056 = vsub.s32 1, %v2055
  %v2057 = vrot.slane %v70, %v2056
  %2059 = vbcast.lane.b32.xlu0 %v2057, 256
  %v2060 = vpop.permute.xlu0 %2059
  %s2062 = sor.u32 256, 8
  %2063 = vbcast.lane.b32.xlu0 %v2057, %s2062
  %v2064 = vpop.permute.xlu0 %2063
  %v2065 = vlaneseq
  %v2066 = vshrl.u32 %v2065, 7
  %v2067 = vsub.s32 2, %v2066
  %v2068 = vrot.slane %v70, %v2067
  %2070 = vbcast.lane.b32.xlu0 %v2068, 256
  %v2071 = vpop.permute.xlu0 %2070
  %s2073 = sor.u32 256, 8
  %2074 = vbcast.lane.b32.xlu0 %v2068, %s2073
  %v2075 = vpop.permute.xlu0 %2074
  %v2076 = vlaneseq
  %v2077 = vshrl.u32 %v2076, 7
  %v2078 = vsub.s32 3, %v2077
  %v2079 = vrot.slane %v70, %v2078
  %2081 = vbcast.lane.b32.xlu0 %v2079, 256
  %v2082 = vpop.permute.xlu0 %2081
  %s2084 = sor.u32 256, 8
  %2085 = vbcast.lane.b32.xlu0 %v2079, %s2084
  %v2086 = vpop.permute.xlu0 %2085
  %v2087 = vlaneseq
  %v2088 = vshrl.u32 %v2087, 7
  %v2089 = vsub.s32 4, %v2088
  %v2090 = vrot.slane %v70, %v2089
  %2092 = vbcast.lane.b32.xlu0 %v2090, 256
  %v2093 = vpop.permute.xlu0 %2092
  %s2095 = sor.u32 256, 8
  %2096 = vbcast.lane.b32.xlu0 %v2090, %s2095
  %v2097 = vpop.permute.xlu0 %2096
  %v2098 = vlaneseq
  %v2099 = vshrl.u32 %v2098, 7
  %v2100 = vsub.s32 5, %v2099
  %v2101 = vrot.slane %v70, %v2100
  %2103 = vbcast.lane.b32.xlu0 %v2101, 256
  %v2104 = vpop.permute.xlu0 %2103
  %s2106 = sor.u32 256, 8
  %2107 = vbcast.lane.b32.xlu0 %v2101, %s2106
  %v2108 = vpop.permute.xlu0 %2107
  %v2109 = vlaneseq
  %v2110 = vshrl.u32 %v2109, 7
  %v2111 = vsub.s32 6, %v2110
  %v2112 = vrot.slane %v70, %v2111
  %2114 = vbcast.lane.b32.xlu0 %v2112, 256
  %v2115 = vpop.permute.xlu0 %2114
  %s2117 = sor.u32 256, 8
  %2118 = vbcast.lane.b32.xlu0 %v2112, %s2117
  %v2119 = vpop.permute.xlu0 %2118
  %v2120 = vlaneseq
  %v2121 = vshrl.u32 %v2120, 7
  %v2122 = vsub.s32 7, %v2121
  %v2123 = vrot.slane %v70, %v2122
  %2125 = vbcast.lane.b32.xlu0 %v2123, 256
  %v2126 = vpop.permute.xlu0 %2125
  %s2128 = sor.u32 256, 8
  %2129 = vbcast.lane.b32.xlu0 %v2123, %s2128
  %v2130 = vpop.permute.xlu0 %2129
  %v2133 = vcombine.low %v301, %v303
  %v2134 = vcombine.high %v301, %v303
  %v2136 = vunpack.c.l.s4 1966171168
  %v2137 = vunpack.c.0.s8 %v2136
  %v2138 = vlaneseq
  %v2139 = vshrl.u32 %v2138, 7
  %v2140 = vsub.s32 %v2137, %v2139
  %v2141 = vrot.slane %v2133, %v2140
  %v2143 = vunpack.c.l.s4 1966171168
  %v2144 = vunpack.c.0.s8 %v2143
  %v2145 = vlaneseq
  %v2146 = vshrl.u32 %v2145, 7
  %v2147 = vsub.s32 %v2144, %v2146
  %v2148 = vrot.slane %v2134, %v2147
  %v2149 = vcombine.high %v2141, %v2141
  %v2150 = vcombine.high %v2148, %v2148
  %v2152 = vunpack.c.l.s4 1966171168
  %v2153 = vunpack.c.0.s8 %v2152
  %v2154 = vlaneseq
  %v2155 = vshrl.u32 %v2154, 7
  %v2156 = vsub.s32 %v2153, %v2155
  %v2157 = vrot.slane %v2141, %v2156
  %v2159 = vunpack.c.l.s4 1966171168
  %v2160 = vunpack.c.0.s8 %v2159
  %v2161 = vlaneseq
  %v2162 = vshrl.u32 %v2161, 7
  %v2163 = vsub.s32 %v2160, %v2162
  %v2164 = vrot.slane %v2148, %v2163
  %v2166 = vunpack.c.l.s4 1966171168
  %v2167 = vunpack.c.0.s8 %v2166
  %v2168 = vlaneseq
  %v2169 = vshrl.u32 %v2168, 7
  %v2170 = vsub.s32 %v2167, %v2169
  %v2171 = vrot.slane %v2149, %v2170
  %v2173 = vunpack.c.l.s4 1966171168
  %v2174 = vunpack.c.0.s8 %v2173
  %v2175 = vlaneseq
  %v2176 = vshrl.u32 %v2175, 7
  %v2177 = vsub.s32 %v2174, %v2176
  %v2178 = vrot.slane %v2150, %v2177
  %v2179 = vcombine.high %v2157, %v2157
  %v2180 = vcombine.high %v2164, %v2164
  %v2181 = vcombine.high %v2171, %v2171
  %v2182 = vcombine.high %v2178, %v2178
  %v2183 = vlaneseq
  %v2184 = vshrl.u32 %v2183, 7
  %v2185 = vsub.s32 0, %v2184
  %v2186 = vrot.slane %v2157, %v2185
  %v2187 = vlaneseq
  %v2188 = vshrl.u32 %v2187, 7
  %v2189 = vsub.s32 1, %v2188
  %v2190 = vrot.slane %v2157, %v2189
  %v2191 = vlaneseq
  %v2192 = vshrl.u32 %v2191, 7
  %v2193 = vsub.s32 0, %v2192
  %v2194 = vrot.slane %v2171, %v2193
  %v2195 = vlaneseq
  %v2196 = vshrl.u32 %v2195, 7
  %v2197 = vsub.s32 1, %v2196
  %v2198 = vrot.slane %v2171, %v2197
  %v2199 = vlaneseq
  %v2200 = vshrl.u32 %v2199, 7
  %v2201 = vsub.s32 0, %v2200
  %v2202 = vrot.slane %v2179, %v2201
  %v2203 = vlaneseq
  %v2204 = vshrl.u32 %v2203, 7
  %v2205 = vsub.s32 1, %v2204
  %v2206 = vrot.slane %v2179, %v2205
  %v2207 = vlaneseq
  %v2208 = vshrl.u32 %v2207, 7
  %v2209 = vsub.s32 0, %v2208
  %v2210 = vrot.slane %v2181, %v2209
  %v2211 = vlaneseq
  %v2212 = vshrl.u32 %v2211, 7
  %v2213 = vsub.s32 1, %v2212
  %v2214 = vrot.slane %v2181, %v2213
  %v2215 = vlaneseq
  %v2216 = vshrl.u32 %v2215, 7
  %v2217 = vsub.s32 0, %v2216
  %v2218 = vrot.slane %v2164, %v2217
  %v2219 = vlaneseq
  %v2220 = vshrl.u32 %v2219, 7
  %v2221 = vsub.s32 1, %v2220
  %v2222 = vrot.slane %v2164, %v2221
  %v2223 = vlaneseq
  %v2224 = vshrl.u32 %v2223, 7
  %v2225 = vsub.s32 0, %v2224
  %v2226 = vrot.slane %v2178, %v2225
  %v2227 = vlaneseq
  %v2228 = vshrl.u32 %v2227, 7
  %v2229 = vsub.s32 1, %v2228
  %v2230 = vrot.slane %v2178, %v2229
  %v2231 = vlaneseq
  %v2232 = vshrl.u32 %v2231, 7
  %v2233 = vsub.s32 0, %v2232
  %v2234 = vrot.slane %v2180, %v2233
  %v2235 = vlaneseq
  %v2236 = vshrl.u32 %v2235, 7
  %v2237 = vsub.s32 1, %v2236
  %v2238 = vrot.slane %v2180, %v2237
  %v2239 = vlaneseq
  %v2240 = vshrl.u32 %v2239, 7
  %v2241 = vsub.s32 0, %v2240
  %v2242 = vrot.slane %v2182, %v2241
  %v2243 = vlaneseq
  %v2244 = vshrl.u32 %v2243, 7
  %v2245 = vsub.s32 1, %v2244
  %v2246 = vrot.slane %v2182, %v2245
  %v2263 = vadd.f32 %v182, %v2186
  %v2264 = vadd.f32 %v184, %v2190
  %v2265 = vadd.f32 %v188, %v2186
  %v2266 = vadd.f32 %v190, %v2190
  %v2267 = vadd.f32 %v182, %v2194
  %v2268 = vadd.f32 %v184, %v2198
  %v2269 = vadd.f32 %v188, %v2194
  %v2270 = vadd.f32 %v190, %v2198
  %v2271 = vadd.f32 %v182, %v2202
  %v2272 = vadd.f32 %v184, %v2206
  %v2273 = vadd.f32 %v188, %v2202
  %v2274 = vadd.f32 %v190, %v2206
  %v2275 = vadd.f32 %v182, %v2210
  %v2276 = vadd.f32 %v184, %v2214
  %v2277 = vadd.f32 %v188, %v2210
  %v2278 = vadd.f32 %v190, %v2214
  %v2279 = vadd.f32 %v182, %v2218
  %v2280 = vadd.f32 %v184, %v2222
  %v2281 = vadd.f32 %v188, %v2218
  %v2282 = vadd.f32 %v190, %v2222
  %v2283 = vadd.f32 %v182, %v2226
  %v2284 = vadd.f32 %v184, %v2230
  %v2285 = vadd.f32 %v188, %v2226
  %v2286 = vadd.f32 %v190, %v2230
  %v2287 = vadd.f32 %v182, %v2234
  %v2288 = vadd.f32 %v184, %v2238
  %v2289 = vadd.f32 %v188, %v2234
  %v2290 = vadd.f32 %v190, %v2238
  %v2291 = vadd.f32 %v182, %v2242
  %v2292 = vadd.f32 %v184, %v2246
  %v2293 = vadd.f32 %v188, %v2242
  %v2294 = vadd.f32 %v190, %v2246
  %v2295 = vadd.f32 %v2263, %v616
  %v2296 = vadd.f32 %v2264, %v618
  %v2297 = vadd.f32 %v2265, %v622
  %v2298 = vadd.f32 %v2266, %v624
  %v2299 = vadd.f32 %v2267, %v628
  %v2300 = vadd.f32 %v2268, %v630
  %v2301 = vadd.f32 %v2269, %v634
  %v2302 = vadd.f32 %v2270, %v636
  %v2303 = vadd.f32 %v2271, %v640
  %v2304 = vadd.f32 %v2272, %v642
  %v2305 = vadd.f32 %v2273, %v646
  %v2306 = vadd.f32 %v2274, %v648
  %v2307 = vadd.f32 %v2275, %v652
  %v2308 = vadd.f32 %v2276, %v654
  %v2309 = vadd.f32 %v2277, %v658
  %v2310 = vadd.f32 %v2278, %v660
  %v2311 = vadd.f32 %v2279, %v664
  %v2312 = vadd.f32 %v2280, %v666
  %v2313 = vadd.f32 %v2281, %v670
  %v2314 = vadd.f32 %v2282, %v672
  %v2315 = vadd.f32 %v2283, %v676
  %v2316 = vadd.f32 %v2284, %v678
  %v2317 = vadd.f32 %v2285, %v682
  %v2318 = vadd.f32 %v2286, %v684
  %v2319 = vadd.f32 %v2287, %v688
  %v2320 = vadd.f32 %v2288, %v690
  %v2321 = vadd.f32 %v2289, %v694
  %v2322 = vadd.f32 %v2290, %v696
  %v2323 = vadd.f32 %v2291, %v700
  %v2324 = vadd.f32 %v2292, %v702
  %v2325 = vadd.f32 %v2293, %v706
  %v2326 = vadd.f32 %v2294, %v708
  %vm2327 = vcmp.gt.f32.partialorder %v2295, 0.0
  %vm2328 = vcmp.gt.f32.partialorder %v2296, 0.0
  %vm2329 = vcmp.gt.f32.partialorder %v2297, 0.0
  %vm2330 = vcmp.gt.f32.partialorder %v2298, 0.0
  %vm2331 = vcmp.gt.f32.partialorder %v2299, 0.0
  %vm2332 = vcmp.gt.f32.partialorder %v2300, 0.0
  %vm2333 = vcmp.gt.f32.partialorder %v2301, 0.0
  %vm2334 = vcmp.gt.f32.partialorder %v2302, 0.0
  %vm2335 = vcmp.gt.f32.partialorder %v2303, 0.0
  %vm2336 = vcmp.gt.f32.partialorder %v2304, 0.0
  %vm2337 = vcmp.gt.f32.partialorder %v2305, 0.0
  %vm2338 = vcmp.gt.f32.partialorder %v2306, 0.0
  %vm2339 = vcmp.gt.f32.partialorder %v2307, 0.0
  %vm2340 = vcmp.gt.f32.partialorder %v2308, 0.0
  %vm2341 = vcmp.gt.f32.partialorder %v2309, 0.0
  %vm2342 = vcmp.gt.f32.partialorder %v2310, 0.0
  %vm2343 = vcmp.gt.f32.partialorder %v2311, 0.0
  %vm2344 = vcmp.gt.f32.partialorder %v2312, 0.0
  %vm2345 = vcmp.gt.f32.partialorder %v2313, 0.0
  %vm2346 = vcmp.gt.f32.partialorder %v2314, 0.0
  %vm2347 = vcmp.gt.f32.partialorder %v2315, 0.0
  %vm2348 = vcmp.gt.f32.partialorder %v2316, 0.0
  %vm2349 = vcmp.gt.f32.partialorder %v2317, 0.0
  %vm2350 = vcmp.gt.f32.partialorder %v2318, 0.0
  %vm2351 = vcmp.gt.f32.partialorder %v2319, 0.0
  %vm2352 = vcmp.gt.f32.partialorder %v2320, 0.0
  %vm2353 = vcmp.gt.f32.partialorder %v2321, 0.0
  %vm2354 = vcmp.gt.f32.partialorder %v2322, 0.0
  %vm2355 = vcmp.gt.f32.partialorder %v2323, 0.0
  %vm2356 = vcmp.gt.f32.partialorder %v2324, 0.0
  %vm2357 = vcmp.gt.f32.partialorder %v2325, 0.0
  %vm2358 = vcmp.gt.f32.partialorder %v2326, 0.0
  %v2359 = vmul.f32 %v2295, 0.2
  %v2360 = vmul.f32 %v2296, 0.2
  %v2361 = vmul.f32 %v2297, 0.2
  %v2362 = vmul.f32 %v2298, 0.2
  %v2363 = vmul.f32 %v2299, 0.2
  %v2364 = vmul.f32 %v2300, 0.2
  %v2365 = vmul.f32 %v2301, 0.2
  %v2366 = vmul.f32 %v2302, 0.2
  %v2367 = vmul.f32 %v2303, 0.2
  %v2368 = vmul.f32 %v2304, 0.2
  %v2369 = vmul.f32 %v2305, 0.2
  %v2370 = vmul.f32 %v2306, 0.2
  %v2371 = vmul.f32 %v2307, 0.2
  %v2372 = vmul.f32 %v2308, 0.2
  %v2373 = vmul.f32 %v2309, 0.2
  %v2374 = vmul.f32 %v2310, 0.2
  %v2375 = vmul.f32 %v2311, 0.2
  %v2376 = vmul.f32 %v2312, 0.2
  %v2377 = vmul.f32 %v2313, 0.2
  %v2378 = vmul.f32 %v2314, 0.2
  %v2379 = vmul.f32 %v2315, 0.2
  %v2380 = vmul.f32 %v2316, 0.2
  %v2381 = vmul.f32 %v2317, 0.2
  %v2382 = vmul.f32 %v2318, 0.2
  %v2383 = vmul.f32 %v2319, 0.2
  %v2384 = vmul.f32 %v2320, 0.2
  %v2385 = vmul.f32 %v2321, 0.2
  %v2386 = vmul.f32 %v2322, 0.2
  %v2387 = vmul.f32 %v2323, 0.2
  %v2388 = vmul.f32 %v2324, 0.2
  %v2389 = vmul.f32 %v2325, 0.2
  %v2390 = vmul.f32 %v2326, 0.2
  %v2391 = vsel %vm2327, %v2295, %v2359
  %v2392 = vsel %vm2328, %v2296, %v2360
  %v2393 = vsel %vm2329, %v2297, %v2361
  %v2394 = vsel %vm2330, %v2298, %v2362
  %v2395 = vsel %vm2331, %v2299, %v2363
  %v2396 = vsel %vm2332, %v2300, %v2364
  %v2397 = vsel %vm2333, %v2301, %v2365
  %v2398 = vsel %vm2334, %v2302, %v2366
  %v2399 = vsel %vm2335, %v2303, %v2367
  %v2400 = vsel %vm2336, %v2304, %v2368
  %v2401 = vsel %vm2337, %v2305, %v2369
  %v2402 = vsel %vm2338, %v2306, %v2370
  %v2403 = vsel %vm2339, %v2307, %v2371
  %v2404 = vsel %vm2340, %v2308, %v2372
  %v2405 = vsel %vm2341, %v2309, %v2373
  %v2406 = vsel %vm2342, %v2310, %v2374
  %v2407 = vsel %vm2343, %v2311, %v2375
  %v2408 = vsel %vm2344, %v2312, %v2376
  %v2409 = vsel %vm2345, %v2313, %v2377
  %v2410 = vsel %vm2346, %v2314, %v2378
  %v2411 = vsel %vm2347, %v2315, %v2379
  %v2412 = vsel %vm2348, %v2316, %v2380
  %v2413 = vsel %vm2349, %v2317, %v2381
  %v2414 = vsel %vm2350, %v2318, %v2382
  %v2415 = vsel %vm2351, %v2319, %v2383
  %v2416 = vsel %vm2352, %v2320, %v2384
  %v2417 = vsel %vm2353, %v2321, %v2385
  %v2418 = vsel %vm2354, %v2322, %v2386
  %v2419 = vsel %vm2355, %v2323, %v2387
  %v2420 = vsel %vm2356, %v2324, %v2388
  %v2421 = vsel %vm2357, %v2325, %v2389
  %v2422 = vsel %vm2358, %v2326, %v2390
  %v2424 = vsel %vm1154, %v2392, 0
  %v2427 = vsel %vm1154, %v2394, 0
  %v2430 = vsel %vm1154, %v2396, 0
  %v2433 = vsel %vm1154, %v2398, 0
  %v2436 = vsel %vm1154, %v2400, 0
  %v2439 = vsel %vm1154, %v2402, 0
  %v2442 = vsel %vm1154, %v2404, 0
  %v2445 = vsel %vm1154, %v2406, 0
  %v2448 = vsel %vm1154, %v2408, 0
  %v2451 = vsel %vm1154, %v2410, 0
  %v2454 = vsel %vm1154, %v2412, 0
  %v2457 = vsel %vm1154, %v2414, 0
  %v2460 = vsel %vm1154, %v2416, 0
  %v2463 = vsel %vm1154, %v2418, 0
  %v2466 = vsel %vm1154, %v2420, 0
  %v2469 = vsel %vm1154, %v2422, 0
  %2471 = vmatprep.subr.mxu0 %v711
  %2472 = vmatpush1.msra.mxu0 %v710
  %2473 = vmatprep.subr.mxu0 %v713
  %2474 = vmatpush1.msra.mxu0 %v712
  %2475 = vmatprep.subr.mxu0 %v715
  %2476 = vmatpush1.msra.mxu0 %v714
  %2477 = vmatprep.subr.mxu0 %v717
  %2478 = vmatpush1.msra.mxu0 %v716
  %2479 = vmatprep.subr.mxu0 %v719
  %2480 = vmatpush1.msra.mxu0 %v718
  %2481 = vmatprep.subr.mxu0 %v721
  %2482 = vmatpush1.msra.mxu0 %v720
  %2483 = vmatprep.subr.mxu0 %v723
  %2484 = vmatpush1.msra.mxu0 %v722
  %2485 = vmatprep.subr.mxu0 %v725
  %2486 = vmatpush1.msra.mxu0 %v724
  %2487 = vmatprep.subr.mxu0 %v727
  %2488 = vmatpush1.msra.mxu0 %v726
  %2489 = vmatprep.subr.mxu0 %v729
  %2490 = vmatpush1.msra.mxu0 %v728
  %2491 = vmatprep.subr.mxu0 %v731
  %2492 = vmatpush1.msra.mxu0 %v730
  %2493 = vmatprep.subr.mxu0 %v733
  %2494 = vmatpush1.msra.mxu0 %v732
  %2495 = vmatprep.subr.mxu0 %v735
  %2496 = vmatpush1.msra.mxu0 %v734
  %2497 = vmatprep.subr.mxu0 %v737
  %2498 = vmatpush1.msra.mxu0 %v736
  %2499 = vmatprep.subr.mxu0 %v739
  %2500 = vmatpush1.msra.mxu0 %v738
  %2501 = vmatprep.subr.mxu0 %v741
  %2502 = vmatpush1.msra.mxu0 %v740
  %2503 = vmatprep.subr.mxu0 %v743
  %2504 = vmatpush1.msra.mxu0 %v742
  %2505 = vmatprep.subr.mxu0 %v745
  %2506 = vmatpush1.msra.mxu0 %v744
  %2507 = vmatprep.subr.mxu0 %v747
  %2508 = vmatpush1.msra.mxu0 %v746
  %2509 = vmatprep.subr.mxu0 %v749
  %2510 = vmatpush1.msra.mxu0 %v748
  %2511 = vmatprep.subr.mxu0 %v751
  %2512 = vmatpush1.msra.mxu0 %v750
  %2513 = vmatprep.subr.mxu0 %v753
  %2514 = vmatpush1.msra.mxu0 %v752
  %2515 = vmatprep.subr.mxu0 %v755
  %2516 = vmatpush1.msra.mxu0 %v754
  %2517 = vmatprep.subr.mxu0 %v757
  %2518 = vmatpush1.msra.mxu0 %v756
  %2519 = vmatprep.subr.mxu0 %v759
  %2520 = vmatpush1.msra.mxu0 %v758
  %2521 = vmatprep.subr.mxu0 %v761
  %2522 = vmatpush1.msra.mxu0 %v760
  %2523 = vmatprep.subr.mxu0 %v763
  %2524 = vmatpush1.msra.mxu0 %v762
  %2525 = vmatprep.subr.mxu0 %v765
  %2526 = vmatpush1.msra.mxu0 %v764
  %2527 = vmatprep.subr.mxu0 %v767
  %2528 = vmatpush1.msra.mxu0 %v766
  %2529 = vmatprep.subr.mxu0 %v769
  %2530 = vmatpush1.msra.mxu0 %v768
  %2531 = vmatprep.subr.mxu0 %v771
  %2532 = vmatpush1.msra.mxu0 %v770
  %2533 = vmatprep.subr.mxu0 %v1208
  %2534 = vmatpush1.msra.mxu0 %v1205
  %2535 = vmatprep.mubr.f32.mxu0 %v2424
  %2536 = vmatmul.mubr.f32.gmra.mrb[0].mxu0 %v2391
  %v2537 = vpop.f32.mrb[0].mxu0
  %v2538 = vadd.f32 0.0, %v2537
  %v2539 = vpop.f32.mrb[0].mxu0
  %v2540 = vadd.f32 0.0, %v2539
  %2541 = vmatprep.mubr.f32.mxu0 %v2427
  %2542 = vmatmul.mubr.f32.gmra.mrb[0].mxu0 %v2393
  %v2543 = vpop.f32.mrb[0].mxu0
  %v2544 = vadd.f32 0.0, %v2543
  %v2545 = vpop.f32.mrb[0].mxu0
  %v2546 = vadd.f32 0.0, %v2545
  %2547 = vmatprep.mubr.f32.mxu0 %v2430
  %2548 = vmatmul.mubr.f32.gmra.mrb[0].mxu0 %v2395
  %v2549 = vpop.f32.mrb[0].mxu0
  %v2550 = vadd.f32 0.0, %v2549
  %v2551 = vpop.f32.mrb[0].mxu0
  %v2552 = vadd.f32 0.0, %v2551
  %2553 = vmatprep.mubr.f32.mxu0 %v2433
  %2554 = vmatmul.mubr.f32.gmra.mrb[0].mxu0 %v2397
  %v2555 = vpop.f32.mrb[0].mxu0
  %v2556 = vadd.f32 0.0, %v2555
  %v2557 = vpop.f32.mrb[0].mxu0
  %v2558 = vadd.f32 0.0, %v2557
  %2559 = vmatprep.mubr.f32.mxu0 %v2436
  %2560 = vmatmul.mubr.f32.gmra.mrb[0].mxu0 %v2399
  %v2561 = vpop.f32.mrb[0].mxu0
  %v2562 = vadd.f32 0.0, %v2561
  %v2563 = vpop.f32.mrb[0].mxu0
  %v2564 = vadd.f32 0.0, %v2563
  %2565 = vmatprep.mubr.f32.mxu0 %v2439
  %2566 = vmatmul.mubr.f32.gmra.mrb[0].mxu0 %v2401
  %v2567 = vpop.f32.mrb[0].mxu0
  %v2568 = vadd.f32 0.0, %v2567
  %v2569 = vpop.f32.mrb[0].mxu0
  %v2570 = vadd.f32 0.0, %v2569
  %2571 = vmatprep.mubr.f32.mxu0 %v2442
  %2572 = vmatmul.mubr.f32.gmra.mrb[0].mxu0 %v2403
  %v2573 = vpop.f32.mrb[0].mxu0
  %v2574 = vadd.f32 0.0, %v2573
  %v2575 = vpop.f32.mrb[0].mxu0
  %v2576 = vadd.f32 0.0, %v2575
  %2577 = vmatprep.mubr.f32.mxu0 %v2445
  %2578 = vmatmul.mubr.f32.gmra.mrb[0].mxu0 %v2405
  %v2579 = vpop.f32.mrb[0].mxu0
  %v2580 = vadd.f32 0.0, %v2579
  %v2581 = vpop.f32.mrb[0].mxu0
  %v2582 = vadd.f32 0.0, %v2581
  %2583 = vmatprep.mubr.f32.mxu0 %v2448
  %2584 = vmatmul.mubr.f32.gmra.mrb[0].mxu0 %v2407
  %v2585 = vpop.f32.mrb[0].mxu0
  %v2586 = vadd.f32 0.0, %v2585
  %v2587 = vpop.f32.mrb[0].mxu0
  %v2588 = vadd.f32 0.0, %v2587
  %2589 = vmatprep.mubr.f32.mxu0 %v2451
  %2590 = vmatmul.mubr.f32.gmra.mrb[0].mxu0 %v2409
  %v2591 = vpop.f32.mrb[0].mxu0
  %v2592 = vadd.f32 0.0, %v2591
  %v2593 = vpop.f32.mrb[0].mxu0
  %v2594 = vadd.f32 0.0, %v2593
  %2595 = vmatprep.mubr.f32.mxu0 %v2454
  %2596 = vmatmul.mubr.f32.gmra.mrb[0].mxu0 %v2411
  %v2597 = vpop.f32.mrb[0].mxu0
  %v2598 = vadd.f32 0.0, %v2597
  %v2599 = vpop.f32.mrb[0].mxu0
  %v2600 = vadd.f32 0.0, %v2599
  %2601 = vmatprep.mubr.f32.mxu0 %v2457
  %2602 = vmatmul.mubr.f32.gmra.mrb[0].mxu0 %v2413
  %v2603 = vpop.f32.mrb[0].mxu0
  %v2604 = vadd.f32 0.0, %v2603
  %v2605 = vpop.f32.mrb[0].mxu0
  %v2606 = vadd.f32 0.0, %v2605
  %2607 = vmatprep.mubr.f32.mxu0 %v2460
  %2608 = vmatmul.mubr.f32.gmra.mrb[0].mxu0 %v2415
  %v2609 = vpop.f32.mrb[0].mxu0
  %v2610 = vadd.f32 0.0, %v2609
  %v2611 = vpop.f32.mrb[0].mxu0
  %v2612 = vadd.f32 0.0, %v2611
  %2613 = vmatprep.mubr.f32.mxu0 %v2463
  %2614 = vmatmul.mubr.f32.gmra.mrb[0].mxu0 %v2417
  %v2615 = vpop.f32.mrb[0].mxu0
  %v2616 = vadd.f32 0.0, %v2615
  %v2617 = vpop.f32.mrb[0].mxu0
  %v2618 = vadd.f32 0.0, %v2617
  %2619 = vmatprep.mubr.f32.mxu0 %v2466
  %2620 = vmatmul.mubr.f32.gmra.mrb[0].mxu0 %v2419
  %v2621 = vpop.f32.mrb[0].mxu0
  %v2622 = vadd.f32 0.0, %v2621
  %v2623 = vpop.f32.mrb[0].mxu0
  %v2624 = vadd.f32 0.0, %v2623
  %2625 = vmatprep.mubr.f32.mxu0 %v2469
  %2626 = vmatmul.mubr.f32.gmra.mrb[0].mxu0 %v2421
  %v2627 = vpop.f32.mrb[0].mxu0
  %v2628 = vadd.f32 0.0, %v2627
  %v2629 = vpop.f32.mrb[0].mxu0
  %v2630 = vadd.f32 0.0, %v2629
  %2631 = vdwg.mxu0
  %vm2632 = vcmp.gt.f32.partialorder %v2049, 0.0
  %vm2633 = vcmp.gt.f32.partialorder %v2053, 0.0
  %vm2634 = vcmp.gt.f32.partialorder %v2060, 0.0
  %vm2635 = vcmp.gt.f32.partialorder %v2064, 0.0
  %vm2636 = vcmp.gt.f32.partialorder %v2071, 0.0
  %vm2637 = vcmp.gt.f32.partialorder %v2075, 0.0
  %vm2638 = vcmp.gt.f32.partialorder %v2082, 0.0
  %vm2639 = vcmp.gt.f32.partialorder %v2086, 0.0
  %vm2640 = vcmp.gt.f32.partialorder %v2093, 0.0
  %vm2641 = vcmp.gt.f32.partialorder %v2097, 0.0
  %vm2642 = vcmp.gt.f32.partialorder %v2104, 0.0
  %vm2643 = vcmp.gt.f32.partialorder %v2108, 0.0
  %vm2644 = vcmp.gt.f32.partialorder %v2115, 0.0
  %vm2645 = vcmp.gt.f32.partialorder %v2119, 0.0
  %vm2646 = vcmp.gt.f32.partialorder %v2126, 0.0
  %vm2647 = vcmp.gt.f32.partialorder %v2130, 0.0
  %v2648 = vsel %vm2632, 1, 0
  %v2649 = vsel %vm2633, 1, 0
  %v2650 = vsel %vm2634, 1, 0
  %v2651 = vsel %vm2635, 1, 0
  %v2652 = vsel %vm2636, 1, 0
  %v2653 = vsel %vm2637, 1, 0
  %v2654 = vsel %vm2638, 1, 0
  %v2655 = vsel %vm2639, 1, 0
  %v2656 = vsel %vm2640, 1, 0
  %v2657 = vsel %vm2641, 1, 0
  %v2658 = vsel %vm2642, 1, 0
  %v2659 = vsel %vm2643, 1, 0
  %v2660 = vsel %vm2644, 1, 0
  %v2661 = vsel %vm2645, 1, 0
  %v2662 = vsel %vm2646, 1, 0
  %v2663 = vsel %vm2647, 1, 0
  %vm2664 = vcmp.eq.s32.totalorder %v2648, 1
  %vm2665 = vcmp.eq.s32.totalorder %v2649, 1
  %vm2666 = vcmp.eq.s32.totalorder %v2650, 1
  %vm2667 = vcmp.eq.s32.totalorder %v2651, 1
  %vm2668 = vcmp.eq.s32.totalorder %v2652, 1
  %vm2669 = vcmp.eq.s32.totalorder %v2653, 1
  %vm2670 = vcmp.eq.s32.totalorder %v2654, 1
  %vm2671 = vcmp.eq.s32.totalorder %v2655, 1
  %vm2672 = vcmp.eq.s32.totalorder %v2656, 1
  %vm2673 = vcmp.eq.s32.totalorder %v2657, 1
  %vm2674 = vcmp.eq.s32.totalorder %v2658, 1
  %vm2675 = vcmp.eq.s32.totalorder %v2659, 1
  %vm2676 = vcmp.eq.s32.totalorder %v2660, 1
  %vm2677 = vcmp.eq.s32.totalorder %v2661, 1
  %vm2678 = vcmp.eq.s32.totalorder %v2662, 1
  %vm2679 = vcmp.eq.s32.totalorder %v2663, 1
  %v2680 = vsel %vm2664, %v2538, -1e+30
  %v2681 = vsel %vm2664, %v2540, -1e+30
  %v2682 = vsel %vm2665, %v2544, -1e+30
  %v2683 = vsel %vm2665, %v2546, -1e+30
  %v2684 = vsel %vm2666, %v2550, -1e+30
  %v2685 = vsel %vm2666, %v2552, -1e+30
  %v2686 = vsel %vm2667, %v2556, -1e+30
  %v2687 = vsel %vm2667, %v2558, -1e+30
  %v2688 = vsel %vm2668, %v2562, -1e+30
  %v2689 = vsel %vm2668, %v2564, -1e+30
  %v2690 = vsel %vm2669, %v2568, -1e+30
  %v2691 = vsel %vm2669, %v2570, -1e+30
  %v2692 = vsel %vm2670, %v2574, -1e+30
  %v2693 = vsel %vm2670, %v2576, -1e+30
  %v2694 = vsel %vm2671, %v2580, -1e+30
  %v2695 = vsel %vm2671, %v2582, -1e+30
  %v2696 = vsel %vm2672, %v2586, -1e+30
  %v2697 = vsel %vm2672, %v2588, -1e+30
  %v2698 = vsel %vm2673, %v2592, -1e+30
  %v2699 = vsel %vm2673, %v2594, -1e+30
  %v2700 = vsel %vm2674, %v2598, -1e+30
  %v2701 = vsel %vm2674, %v2600, -1e+30
  %v2702 = vsel %vm2675, %v2604, -1e+30
  %v2703 = vsel %vm2675, %v2606, -1e+30
  %v2704 = vsel %vm2676, %v2610, -1e+30
  %v2705 = vsel %vm2676, %v2612, -1e+30
  %v2706 = vsel %vm2677, %v2616, -1e+30
  %v2707 = vsel %vm2677, %v2618, -1e+30
  %v2708 = vsel %vm2678, %v2622, -1e+30
  %v2709 = vsel %vm2678, %v2624, -1e+30
  %v2710 = vsel %vm2679, %v2628, -1e+30
  %v2711 = vsel %vm2679, %v2630, -1e+30
  %v2712 = vmax.f32 %v2680, %v2682
  %v2713 = vrot.slane %v2712, 4
  %v2714 = vmax.f32 %v2712, %v2713
  %v2715 = vrot.slane %v2714, 2
  %v2716 = vmax.f32 %v2714, %v2715
  %v2717 = vrot.slane %v2716, 1
  %v2718 = vmax.f32 %v2716, %v2717
  %v2719 = vsel %vm1154, %v2681, -inf
  %v2720 = vsel %vm1154, %v2683, -inf
  %v2721 = vmax.f32 %v2719, %v2720
  %v2722 = vrot.slane %v2721, 4
  %v2723 = vmax.f32 %v2721, %v2722
  %v2724 = vrot.slane %v2723, 2
  %v2725 = vmax.f32 %v2723, %v2724
  %v2726 = vrot.slane %v2725, 1
  %v2727 = vmax.f32 %v2725, %v2726
  %v2728 = vmax.f32 %v2684, %v2686
  %v2729 = vrot.slane %v2728, 4
  %v2730 = vmax.f32 %v2728, %v2729
  %v2731 = vrot.slane %v2730, 2
  %v2732 = vmax.f32 %v2730, %v2731
  %v2733 = vrot.slane %v2732, 1
  %v2734 = vmax.f32 %v2732, %v2733
  %v2735 = vsel %vm1154, %v2685, -inf
  %v2736 = vsel %vm1154, %v2687, -inf
  %v2737 = vmax.f32 %v2735, %v2736
  %v2738 = vrot.slane %v2737, 4
  %v2739 = vmax.f32 %v2737, %v2738
  %v2740 = vrot.slane %v2739, 2
  %v2741 = vmax.f32 %v2739, %v2740
  %v2742 = vrot.slane %v2741, 1
  %v2743 = vmax.f32 %v2741, %v2742
  %v2744 = vmax.f32 %v2688, %v2690
  %v2745 = vrot.slane %v2744, 4
  %v2746 = vmax.f32 %v2744, %v2745
  %v2747 = vrot.slane %v2746, 2
  %v2748 = vmax.f32 %v2746, %v2747
  %v2749 = vrot.slane %v2748, 1
  %v2750 = vmax.f32 %v2748, %v2749
  %v2751 = vsel %vm1154, %v2689, -inf
  %v2752 = vsel %vm1154, %v2691, -inf
  %v2753 = vmax.f32 %v2751, %v2752
  %v2754 = vrot.slane %v2753, 4
  %v2755 = vmax.f32 %v2753, %v2754
  %v2756 = vrot.slane %v2755, 2
  %v2757 = vmax.f32 %v2755, %v2756
  %v2758 = vrot.slane %v2757, 1
  %v2759 = vmax.f32 %v2757, %v2758
  %v2760 = vmax.f32 %v2692, %v2694
  %v2761 = vrot.slane %v2760, 4
  %v2762 = vmax.f32 %v2760, %v2761
  %v2763 = vrot.slane %v2762, 2
  %v2764 = vmax.f32 %v2762, %v2763
  %v2765 = vrot.slane %v2764, 1
  %v2766 = vmax.f32 %v2764, %v2765
  %v2767 = vsel %vm1154, %v2693, -inf
  %v2768 = vsel %vm1154, %v2695, -inf
  %v2769 = vmax.f32 %v2767, %v2768
  %v2770 = vrot.slane %v2769, 4
  %v2771 = vmax.f32 %v2769, %v2770
  %v2772 = vrot.slane %v2771, 2
  %v2773 = vmax.f32 %v2771, %v2772
  %v2774 = vrot.slane %v2773, 1
  %v2775 = vmax.f32 %v2773, %v2774
  %v2776 = vmax.f32 %v2696, %v2698
  %v2777 = vrot.slane %v2776, 4
  %v2778 = vmax.f32 %v2776, %v2777
  %v2779 = vrot.slane %v2778, 2
  %v2780 = vmax.f32 %v2778, %v2779
  %v2781 = vrot.slane %v2780, 1
  %v2782 = vmax.f32 %v2780, %v2781
  %v2783 = vsel %vm1154, %v2697, -inf
  %v2784 = vsel %vm1154, %v2699, -inf
  %v2785 = vmax.f32 %v2783, %v2784
  %v2786 = vrot.slane %v2785, 4
  %v2787 = vmax.f32 %v2785, %v2786
  %v2788 = vrot.slane %v2787, 2
  %v2789 = vmax.f32 %v2787, %v2788
  %v2790 = vrot.slane %v2789, 1
  %v2791 = vmax.f32 %v2789, %v2790
  %v2792 = vmax.f32 %v2700, %v2702
  %v2793 = vrot.slane %v2792, 4
  %v2794 = vmax.f32 %v2792, %v2793
  %v2795 = vrot.slane %v2794, 2
  %v2796 = vmax.f32 %v2794, %v2795
  %v2797 = vrot.slane %v2796, 1
  %v2798 = vmax.f32 %v2796, %v2797
  %v2799 = vsel %vm1154, %v2701, -inf
  %v2800 = vsel %vm1154, %v2703, -inf
  %v2801 = vmax.f32 %v2799, %v2800
  %v2802 = vrot.slane %v2801, 4
  %v2803 = vmax.f32 %v2801, %v2802
  %v2804 = vrot.slane %v2803, 2
  %v2805 = vmax.f32 %v2803, %v2804
  %v2806 = vrot.slane %v2805, 1
  %v2807 = vmax.f32 %v2805, %v2806
  %v2808 = vmax.f32 %v2704, %v2706
  %v2809 = vrot.slane %v2808, 4
  %v2810 = vmax.f32 %v2808, %v2809
  %v2811 = vrot.slane %v2810, 2
  %v2812 = vmax.f32 %v2810, %v2811
  %v2813 = vrot.slane %v2812, 1
  %v2814 = vmax.f32 %v2812, %v2813
  %v2815 = vsel %vm1154, %v2705, -inf
  %v2816 = vsel %vm1154, %v2707, -inf
  %v2817 = vmax.f32 %v2815, %v2816
  %v2818 = vrot.slane %v2817, 4
  %v2819 = vmax.f32 %v2817, %v2818
  %v2820 = vrot.slane %v2819, 2
  %v2821 = vmax.f32 %v2819, %v2820
  %v2822 = vrot.slane %v2821, 1
  %v2823 = vmax.f32 %v2821, %v2822
  %v2824 = vmax.f32 %v2708, %v2710
  %v2825 = vrot.slane %v2824, 4
  %v2826 = vmax.f32 %v2824, %v2825
  %v2827 = vrot.slane %v2826, 2
  %v2828 = vmax.f32 %v2826, %v2827
  %v2829 = vrot.slane %v2828, 1
  %v2830 = vmax.f32 %v2828, %v2829
  %v2831 = vsel %vm1154, %v2709, -inf
  %v2832 = vsel %vm1154, %v2711, -inf
  %v2833 = vmax.f32 %v2831, %v2832
  %v2834 = vrot.slane %v2833, 4
  %v2835 = vmax.f32 %v2833, %v2834
  %v2836 = vrot.slane %v2835, 2
  %v2837 = vmax.f32 %v2835, %v2836
  %v2838 = vrot.slane %v2837, 1
  %v2839 = vmax.f32 %v2837, %v2838
  %v2840 = vsub.f32 %v2680, %v2718
  %v2841 = vsub.f32 %v2681, %v2727
  %v2842 = vsub.f32 %v2682, %v2718
  %v2843 = vsub.f32 %v2683, %v2727
  %v2844 = vsub.f32 %v2684, %v2734
  %v2845 = vsub.f32 %v2685, %v2743
  %v2846 = vsub.f32 %v2686, %v2734
  %v2847 = vsub.f32 %v2687, %v2743
  %v2848 = vsub.f32 %v2688, %v2750
  %v2849 = vsub.f32 %v2689, %v2759
  %v2850 = vsub.f32 %v2690, %v2750
  %v2851 = vsub.f32 %v2691, %v2759
  %v2852 = vsub.f32 %v2692, %v2766
  %v2853 = vsub.f32 %v2693, %v2775
  %v2854 = vsub.f32 %v2694, %v2766
  %v2855 = vsub.f32 %v2695, %v2775
  %v2856 = vsub.f32 %v2696, %v2782
  %v2857 = vsub.f32 %v2697, %v2791
  %v2858 = vsub.f32 %v2698, %v2782
  %v2859 = vsub.f32 %v2699, %v2791
  %v2860 = vsub.f32 %v2700, %v2798
  %v2861 = vsub.f32 %v2701, %v2807
  %v2862 = vsub.f32 %v2702, %v2798
  %v2863 = vsub.f32 %v2703, %v2807
  %v2864 = vsub.f32 %v2704, %v2814
  %v2865 = vsub.f32 %v2705, %v2823
  %v2866 = vsub.f32 %v2706, %v2814
  %v2867 = vsub.f32 %v2707, %v2823
  %v2868 = vsub.f32 %v2708, %v2830
  %v2869 = vsub.f32 %v2709, %v2839
  %v2870 = vsub.f32 %v2710, %v2830
  %v2871 = vsub.f32 %v2711, %v2839
  %v2872 = vmul.f32 %v2840, 1.442695
  %v2873 = vpow.pop %v2872
  %v2874 = vmul.f32 %v2841, 1.442695
  %v2875 = vpow.pop %v2874
  %v2876 = vmul.f32 %v2842, 1.442695
  %v2877 = vpow.pop %v2876
  %v2878 = vmul.f32 %v2843, 1.442695
  %v2879 = vpow.pop %v2878
  %v2880 = vmul.f32 %v2844, 1.442695
  %v2881 = vpow.pop %v2880
  %v2882 = vmul.f32 %v2845, 1.442695
  %v2883 = vpow.pop %v2882
  %v2884 = vmul.f32 %v2846, 1.442695
  %v2885 = vpow.pop %v2884
  %v2886 = vmul.f32 %v2847, 1.442695
  %v2887 = vpow.pop %v2886
  %v2888 = vmul.f32 %v2848, 1.442695
  %v2889 = vpow.pop %v2888
  %v2890 = vmul.f32 %v2849, 1.442695
  %v2891 = vpow.pop %v2890
  %v2892 = vmul.f32 %v2850, 1.442695
  %v2893 = vpow.pop %v2892
  %v2894 = vmul.f32 %v2851, 1.442695
  %v2895 = vpow.pop %v2894
  %v2896 = vmul.f32 %v2852, 1.442695
  %v2897 = vpow.pop %v2896
  %v2898 = vmul.f32 %v2853, 1.442695
  %v2899 = vpow.pop %v2898
  %v2900 = vmul.f32 %v2854, 1.442695
  %v2901 = vpow.pop %v2900
  %v2902 = vmul.f32 %v2855, 1.442695
  %v2903 = vpow.pop %v2902
  %v2904 = vmul.f32 %v2856, 1.442695
  %v2905 = vpow.pop %v2904
  %v2906 = vmul.f32 %v2857, 1.442695
  %v2907 = vpow.pop %v2906
  %v2908 = vmul.f32 %v2858, 1.442695
  %v2909 = vpow.pop %v2908
  %v2910 = vmul.f32 %v2859, 1.442695
  %v2911 = vpow.pop %v2910
  %v2912 = vmul.f32 %v2860, 1.442695
  %v2913 = vpow.pop %v2912
  %v2914 = vmul.f32 %v2861, 1.442695
  %v2915 = vpow.pop %v2914
  %v2916 = vmul.f32 %v2862, 1.442695
  %v2917 = vpow.pop %v2916
  %v2918 = vmul.f32 %v2863, 1.442695
  %v2919 = vpow.pop %v2918
  %v2920 = vmul.f32 %v2864, 1.442695
  %v2921 = vpow.pop %v2920
  %v2922 = vmul.f32 %v2865, 1.442695
  %v2923 = vpow.pop %v2922
  %v2924 = vmul.f32 %v2866, 1.442695
  %v2925 = vpow.pop %v2924
  %v2926 = vmul.f32 %v2867, 1.442695
  %v2927 = vpow.pop %v2926
  %v2928 = vmul.f32 %v2868, 1.442695
  %v2929 = vpow.pop %v2928
  %v2930 = vmul.f32 %v2869, 1.442695
  %v2931 = vpow.pop %v2930
  %v2932 = vmul.f32 %v2870, 1.442695
  %v2933 = vpow.pop %v2932
  %v2934 = vmul.f32 %v2871, 1.442695
  %v2935 = vpow.pop %v2934
  %v2936 = vsel %vm2664, %v2873, 0.0
  %v2937 = vsel %vm2664, %v2875, 0.0
  %v2938 = vsel %vm2665, %v2877, 0.0
  %v2939 = vsel %vm2665, %v2879, 0.0
  %v2940 = vsel %vm2666, %v2881, 0.0
  %v2941 = vsel %vm2666, %v2883, 0.0
  %v2942 = vsel %vm2667, %v2885, 0.0
  %v2943 = vsel %vm2667, %v2887, 0.0
  %v2944 = vsel %vm2668, %v2889, 0.0
  %v2945 = vsel %vm2668, %v2891, 0.0
  %v2946 = vsel %vm2669, %v2893, 0.0
  %v2947 = vsel %vm2669, %v2895, 0.0
  %v2948 = vsel %vm2670, %v2897, 0.0
  %v2949 = vsel %vm2670, %v2899, 0.0
  %v2950 = vsel %vm2671, %v2901, 0.0
  %v2951 = vsel %vm2671, %v2903, 0.0
  %v2952 = vsel %vm2672, %v2905, 0.0
  %v2953 = vsel %vm2672, %v2907, 0.0
  %v2954 = vsel %vm2673, %v2909, 0.0
  %v2955 = vsel %vm2673, %v2911, 0.0
  %v2956 = vsel %vm2674, %v2913, 0.0
  %v2957 = vsel %vm2674, %v2915, 0.0
  %v2958 = vsel %vm2675, %v2917, 0.0
  %v2959 = vsel %vm2675, %v2919, 0.0
  %v2960 = vsel %vm2676, %v2921, 0.0
  %v2961 = vsel %vm2676, %v2923, 0.0
  %v2962 = vsel %vm2677, %v2925, 0.0
  %v2963 = vsel %vm2677, %v2927, 0.0
  %v2964 = vsel %vm2678, %v2929, 0.0
  %v2965 = vsel %vm2678, %v2931, 0.0
  %v2966 = vsel %vm2679, %v2933, 0.0
  %v2967 = vsel %vm2679, %v2935, 0.0
  %v2968 = vadd.f32 %v2936, %v2938
  %v2969 = vrot.slane %v2968, 4
  %v2970 = vadd.f32 %v2968, %v2969
  %v2971 = vrot.slane %v2970, 2
  %v2972 = vadd.f32 %v2970, %v2971
  %v2973 = vrot.slane %v2972, 1
  %v2974 = vadd.f32 %v2972, %v2973
  %v2975 = vsel %vm1154, %v2937, 0.0
  %v2976 = vsel %vm1154, %v2939, 0.0
  %v2977 = vadd.f32 %v2975, %v2976
  %v2978 = vrot.slane %v2977, 4
  %v2979 = vadd.f32 %v2977, %v2978
  %v2980 = vrot.slane %v2979, 2
  %v2981 = vadd.f32 %v2979, %v2980
  %v2982 = vrot.slane %v2981, 1
  %v2983 = vadd.f32 %v2981, %v2982
  %v2984 = vadd.f32 %v2940, %v2942
  %v2985 = vrot.slane %v2984, 4
  %v2986 = vadd.f32 %v2984, %v2985
  %v2987 = vrot.slane %v2986, 2
  %v2988 = vadd.f32 %v2986, %v2987
  %v2989 = vrot.slane %v2988, 1
  %v2990 = vadd.f32 %v2988, %v2989
  %v2991 = vsel %vm1154, %v2941, 0.0
  %v2992 = vsel %vm1154, %v2943, 0.0
  %v2993 = vadd.f32 %v2991, %v2992
  %v2994 = vrot.slane %v2993, 4
  %v2995 = vadd.f32 %v2993, %v2994
  %v2996 = vrot.slane %v2995, 2
  %v2997 = vadd.f32 %v2995, %v2996
  %v2998 = vrot.slane %v2997, 1
  %v2999 = vadd.f32 %v2997, %v2998
  %v3000 = vadd.f32 %v2944, %v2946
  %v3001 = vrot.slane %v3000, 4
  %v3002 = vadd.f32 %v3000, %v3001
  %v3003 = vrot.slane %v3002, 2
  %v3004 = vadd.f32 %v3002, %v3003
  %v3005 = vrot.slane %v3004, 1
  %v3006 = vadd.f32 %v3004, %v3005
  %v3007 = vsel %vm1154, %v2945, 0.0
  %v3008 = vsel %vm1154, %v2947, 0.0
  %v3009 = vadd.f32 %v3007, %v3008
  %v3010 = vrot.slane %v3009, 4
  %v3011 = vadd.f32 %v3009, %v3010
  %v3012 = vrot.slane %v3011, 2
  %v3013 = vadd.f32 %v3011, %v3012
  %v3014 = vrot.slane %v3013, 1
  %v3015 = vadd.f32 %v3013, %v3014
  %v3016 = vadd.f32 %v2948, %v2950
  %v3017 = vrot.slane %v3016, 4
  %v3018 = vadd.f32 %v3016, %v3017
  %v3019 = vrot.slane %v3018, 2
  %v3020 = vadd.f32 %v3018, %v3019
  %v3021 = vrot.slane %v3020, 1
  %v3022 = vadd.f32 %v3020, %v3021
  %v3023 = vsel %vm1154, %v2949, 0.0
  %v3024 = vsel %vm1154, %v2951, 0.0
  %v3025 = vadd.f32 %v3023, %v3024
  %v3026 = vrot.slane %v3025, 4
  %v3027 = vadd.f32 %v3025, %v3026
  %v3028 = vrot.slane %v3027, 2
  %v3029 = vadd.f32 %v3027, %v3028
  %v3030 = vrot.slane %v3029, 1
  %v3031 = vadd.f32 %v3029, %v3030
  %v3032 = vadd.f32 %v2952, %v2954
  %v3033 = vrot.slane %v3032, 4
  %v3034 = vadd.f32 %v3032, %v3033
  %v3035 = vrot.slane %v3034, 2
  %v3036 = vadd.f32 %v3034, %v3035
  %v3037 = vrot.slane %v3036, 1
  %v3038 = vadd.f32 %v3036, %v3037
  %v3039 = vsel %vm1154, %v2953, 0.0
  %v3040 = vsel %vm1154, %v2955, 0.0
  %v3041 = vadd.f32 %v3039, %v3040
  %v3042 = vrot.slane %v3041, 4
  %v3043 = vadd.f32 %v3041, %v3042
  %v3044 = vrot.slane %v3043, 2
  %v3045 = vadd.f32 %v3043, %v3044
  %v3046 = vrot.slane %v3045, 1
  %v3047 = vadd.f32 %v3045, %v3046
  %v3048 = vadd.f32 %v2956, %v2958
  %v3049 = vrot.slane %v3048, 4
  %v3050 = vadd.f32 %v3048, %v3049
  %v3051 = vrot.slane %v3050, 2
  %v3052 = vadd.f32 %v3050, %v3051
  %v3053 = vrot.slane %v3052, 1
  %v3054 = vadd.f32 %v3052, %v3053
  %v3055 = vsel %vm1154, %v2957, 0.0
  %v3056 = vsel %vm1154, %v2959, 0.0
  %v3057 = vadd.f32 %v3055, %v3056
  %v3058 = vrot.slane %v3057, 4
  %v3059 = vadd.f32 %v3057, %v3058
  %v3060 = vrot.slane %v3059, 2
  %v3061 = vadd.f32 %v3059, %v3060
  %v3062 = vrot.slane %v3061, 1
  %v3063 = vadd.f32 %v3061, %v3062
  %v3064 = vadd.f32 %v2960, %v2962
  %v3065 = vrot.slane %v3064, 4
  %v3066 = vadd.f32 %v3064, %v3065
  %v3067 = vrot.slane %v3066, 2
  %v3068 = vadd.f32 %v3066, %v3067
  %v3069 = vrot.slane %v3068, 1
  %v3070 = vadd.f32 %v3068, %v3069
  %v3071 = vsel %vm1154, %v2961, 0.0
  %v3072 = vsel %vm1154, %v2963, 0.0
  %v3073 = vadd.f32 %v3071, %v3072
  %v3074 = vrot.slane %v3073, 4
  %v3075 = vadd.f32 %v3073, %v3074
  %v3076 = vrot.slane %v3075, 2
  %v3077 = vadd.f32 %v3075, %v3076
  %v3078 = vrot.slane %v3077, 1
  %v3079 = vadd.f32 %v3077, %v3078
  %v3080 = vadd.f32 %v2964, %v2966
  %v3081 = vrot.slane %v3080, 4
  %v3082 = vadd.f32 %v3080, %v3081
  %v3083 = vrot.slane %v3082, 2
  %v3084 = vadd.f32 %v3082, %v3083
  %v3085 = vrot.slane %v3084, 1
  %v3086 = vadd.f32 %v3084, %v3085
  %v3087 = vsel %vm1154, %v2965, 0.0
  %v3088 = vsel %vm1154, %v2967, 0.0
  %v3089 = vadd.f32 %v3087, %v3088
  %v3090 = vrot.slane %v3089, 4
  %v3091 = vadd.f32 %v3089, %v3090
  %v3092 = vrot.slane %v3091, 2
  %v3093 = vadd.f32 %v3091, %v3092
  %v3094 = vrot.slane %v3093, 1
  %v3095 = vadd.f32 %v3093, %v3094
  %v3096 = vrcp.pop %v2974
  %v3097 = vrcp.pop %v2983
  %v3098 = vrcp.pop %v2990
  %v3099 = vrcp.pop %v2999
  %v3100 = vrcp.pop %v3006
  %v3101 = vrcp.pop %v3015
  %v3102 = vrcp.pop %v3022
  %v3103 = vrcp.pop %v3031
  %v3104 = vrcp.pop %v3038
  %v3105 = vrcp.pop %v3047
  %v3106 = vrcp.pop %v3054
  %v3107 = vrcp.pop %v3063
  %v3108 = vrcp.pop %v3070
  %v3109 = vrcp.pop %v3079
  %v3110 = vrcp.pop %v3086
  %v3111 = vrcp.pop %v3095
  %v3112 = vmul.f32 %v2936, %v3096
  %v3113 = vmul.f32 %v2937, %v3097
  %v3114 = vmul.f32 %v2938, %v3096
  %v3115 = vmul.f32 %v2939, %v3097
  %v3116 = vmul.f32 %v2940, %v3098
  %v3117 = vmul.f32 %v2941, %v3099
  %v3118 = vmul.f32 %v2942, %v3098
  %v3119 = vmul.f32 %v2943, %v3099
  %v3120 = vmul.f32 %v2944, %v3100
  %v3121 = vmul.f32 %v2945, %v3101
  %v3122 = vmul.f32 %v2946, %v3100
  %v3123 = vmul.f32 %v2947, %v3101
  %v3124 = vmul.f32 %v2948, %v3102
  %v3125 = vmul.f32 %v2949, %v3103
  %v3126 = vmul.f32 %v2950, %v3102
  %v3127 = vmul.f32 %v2951, %v3103
  %v3128 = vmul.f32 %v2952, %v3104
  %v3129 = vmul.f32 %v2953, %v3105
  %v3130 = vmul.f32 %v2954, %v3104
  %v3131 = vmul.f32 %v2955, %v3105
  %v3132 = vmul.f32 %v2956, %v3106
  %v3133 = vmul.f32 %v2957, %v3107
  %v3134 = vmul.f32 %v2958, %v3106
  %v3135 = vmul.f32 %v2959, %v3107
  %v3136 = vmul.f32 %v2960, %v3108
  %v3137 = vmul.f32 %v2961, %v3109
  %v3138 = vmul.f32 %v2962, %v3108
  %v3139 = vmul.f32 %v2963, %v3109
  %v3140 = vmul.f32 %v2964, %v3110
  %v3141 = vmul.f32 %v2965, %v3111
  %v3142 = vmul.f32 %v2966, %v3110
  %v3143 = vmul.f32 %v2967, %v3111
  %v3144 = vmul.f32 %v3112, %v182
  %v3145 = vmul.f32 %v3113, %v184
  %v3146 = vmul.f32 %v3114, %v188
  %v3147 = vmul.f32 %v3115, %v190
  %v3148 = vmul.f32 %v3116, %v182
  %v3149 = vmul.f32 %v3117, %v184
  %v3150 = vmul.f32 %v3118, %v188
  %v3151 = vmul.f32 %v3119, %v190
  %v3152 = vmul.f32 %v3120, %v182
  %v3153 = vmul.f32 %v3121, %v184
  %v3154 = vmul.f32 %v3122, %v188
  %v3155 = vmul.f32 %v3123, %v190
  %v3156 = vmul.f32 %v3124, %v182
  %v3157 = vmul.f32 %v3125, %v184
  %v3158 = vmul.f32 %v3126, %v188
  %v3159 = vmul.f32 %v3127, %v190
  %v3160 = vmul.f32 %v3128, %v182
  %v3161 = vmul.f32 %v3129, %v184
  %v3162 = vmul.f32 %v3130, %v188
  %v3163 = vmul.f32 %v3131, %v190
  %v3164 = vmul.f32 %v3132, %v182
  %v3165 = vmul.f32 %v3133, %v184
  %v3166 = vmul.f32 %v3134, %v188
  %v3167 = vmul.f32 %v3135, %v190
  %v3168 = vmul.f32 %v3136, %v182
  %v3169 = vmul.f32 %v3137, %v184
  %v3170 = vmul.f32 %v3138, %v188
  %v3171 = vmul.f32 %v3139, %v190
  %v3172 = vmul.f32 %v3140, %v182
  %v3173 = vmul.f32 %v3141, %v184
  %v3174 = vmul.f32 %v3142, %v188
  %v3175 = vmul.f32 %v3143, %v190
  %v3176 = vadd.f32 %v3144, %v3146
  %v3177 = vrot.slane %v3176, 4
  %v3178 = vadd.f32 %v3176, %v3177
  %v3179 = vrot.slane %v3178, 2
  %v3180 = vadd.f32 %v3178, %v3179
  %v3181 = vrot.slane %v3180, 1
  %v3182 = vadd.f32 %v3180, %v3181
  %v3183 = vsel %vm1154, %v3145, 0.0
  %v3184 = vsel %vm1154, %v3147, 0.0
  %v3185 = vadd.f32 %v3183, %v3184
  %v3186 = vrot.slane %v3185, 4
  %v3187 = vadd.f32 %v3185, %v3186
  %v3188 = vrot.slane %v3187, 2
  %v3189 = vadd.f32 %v3187, %v3188
  %v3190 = vrot.slane %v3189, 1
  %v3191 = vadd.f32 %v3189, %v3190
  %v3192 = vadd.f32 %v3148, %v3150
  %v3193 = vrot.slane %v3192, 4
  %v3194 = vadd.f32 %v3192, %v3193
  %v3195 = vrot.slane %v3194, 2
  %v3196 = vadd.f32 %v3194, %v3195
  %v3197 = vrot.slane %v3196, 1
  %v3198 = vadd.f32 %v3196, %v3197
  %v3199 = vsel %vm1154, %v3149, 0.0
  %v3200 = vsel %vm1154, %v3151, 0.0
  %v3201 = vadd.f32 %v3199, %v3200
  %v3202 = vrot.slane %v3201, 4
  %v3203 = vadd.f32 %v3201, %v3202
  %v3204 = vrot.slane %v3203, 2
  %v3205 = vadd.f32 %v3203, %v3204
  %v3206 = vrot.slane %v3205, 1
  %v3207 = vadd.f32 %v3205, %v3206
  %v3208 = vadd.f32 %v3152, %v3154
  %v3209 = vrot.slane %v3208, 4
  %v3210 = vadd.f32 %v3208, %v3209
  %v3211 = vrot.slane %v3210, 2
  %v3212 = vadd.f32 %v3210, %v3211
  %v3213 = vrot.slane %v3212, 1
  %v3214 = vadd.f32 %v3212, %v3213
  %v3215 = vsel %vm1154, %v3153, 0.0
  %v3216 = vsel %vm1154, %v3155, 0.0
  %v3217 = vadd.f32 %v3215, %v3216
  %v3218 = vrot.slane %v3217, 4
  %v3219 = vadd.f32 %v3217, %v3218
  %v3220 = vrot.slane %v3219, 2
  %v3221 = vadd.f32 %v3219, %v3220
  %v3222 = vrot.slane %v3221, 1
  %v3223 = vadd.f32 %v3221, %v3222
  %v3224 = vadd.f32 %v3156, %v3158
  %v3225 = vrot.slane %v3224, 4
  %v3226 = vadd.f32 %v3224, %v3225
  %v3227 = vrot.slane %v3226, 2
  %v3228 = vadd.f32 %v3226, %v3227
  %v3229 = vrot.slane %v3228, 1
  %v3230 = vadd.f32 %v3228, %v3229
  %v3231 = vsel %vm1154, %v3157, 0.0
  %v3232 = vsel %vm1154, %v3159, 0.0
  %v3233 = vadd.f32 %v3231, %v3232
  %v3234 = vrot.slane %v3233, 4
  %v3235 = vadd.f32 %v3233, %v3234
  %v3236 = vrot.slane %v3235, 2
  %v3237 = vadd.f32 %v3235, %v3236
  %v3238 = vrot.slane %v3237, 1
  %v3239 = vadd.f32 %v3237, %v3238
  %v3240 = vadd.f32 %v3160, %v3162
  %v3241 = vrot.slane %v3240, 4
  %v3242 = vadd.f32 %v3240, %v3241
  %v3243 = vrot.slane %v3242, 2
  %v3244 = vadd.f32 %v3242, %v3243
  %v3245 = vrot.slane %v3244, 1
  %v3246 = vadd.f32 %v3244, %v3245
  %v3247 = vsel %vm1154, %v3161, 0.0
  %v3248 = vsel %vm1154, %v3163, 0.0
  %v3249 = vadd.f32 %v3247, %v3248
  %v3250 = vrot.slane %v3249, 4
  %v3251 = vadd.f32 %v3249, %v3250
  %v3252 = vrot.slane %v3251, 2
  %v3253 = vadd.f32 %v3251, %v3252
  %v3254 = vrot.slane %v3253, 1
  %v3255 = vadd.f32 %v3253, %v3254
  %v3256 = vadd.f32 %v3164, %v3166
  %v3257 = vrot.slane %v3256, 4
  %v3258 = vadd.f32 %v3256, %v3257
  %v3259 = vrot.slane %v3258, 2
  %v3260 = vadd.f32 %v3258, %v3259
  %v3261 = vrot.slane %v3260, 1
  %v3262 = vadd.f32 %v3260, %v3261
  %v3263 = vsel %vm1154, %v3165, 0.0
  %v3264 = vsel %vm1154, %v3167, 0.0
  %v3265 = vadd.f32 %v3263, %v3264
  %v3266 = vrot.slane %v3265, 4
  %v3267 = vadd.f32 %v3265, %v3266
  %v3268 = vrot.slane %v3267, 2
  %v3269 = vadd.f32 %v3267, %v3268
  %v3270 = vrot.slane %v3269, 1
  %v3271 = vadd.f32 %v3269, %v3270
  %v3272 = vadd.f32 %v3168, %v3170
  %v3273 = vrot.slane %v3272, 4
  %v3274 = vadd.f32 %v3272, %v3273
  %v3275 = vrot.slane %v3274, 2
  %v3276 = vadd.f32 %v3274, %v3275
  %v3277 = vrot.slane %v3276, 1
  %v3278 = vadd.f32 %v3276, %v3277
  %v3279 = vsel %vm1154, %v3169, 0.0
  %v3280 = vsel %vm1154, %v3171, 0.0
  %v3281 = vadd.f32 %v3279, %v3280
  %v3282 = vrot.slane %v3281, 4
  %v3283 = vadd.f32 %v3281, %v3282
  %v3284 = vrot.slane %v3283, 2
  %v3285 = vadd.f32 %v3283, %v3284
  %v3286 = vrot.slane %v3285, 1
  %v3287 = vadd.f32 %v3285, %v3286
  %v3288 = vadd.f32 %v3172, %v3174
  %v3289 = vrot.slane %v3288, 4
  %v3290 = vadd.f32 %v3288, %v3289
  %v3291 = vrot.slane %v3290, 2
  %v3292 = vadd.f32 %v3290, %v3291
  %v3293 = vrot.slane %v3292, 1
  %v3294 = vadd.f32 %v3292, %v3293
  %v3295 = vsel %vm1154, %v3173, 0.0
  %v3296 = vsel %vm1154, %v3175, 0.0
  %v3297 = vadd.f32 %v3295, %v3296
  %v3298 = vrot.slane %v3297, 4
  %v3299 = vadd.f32 %v3297, %v3298
  %v3300 = vrot.slane %v3299, 2
  %v3301 = vadd.f32 %v3299, %v3300
  %v3302 = vrot.slane %v3301, 1
  %v3303 = vadd.f32 %v3301, %v3302
  %vm3320 = vcmask 1041409
  %v3321 = vsel %vm3320, %v1937, %v1921
  %vm3322 = vcmask 1042434
  %v3323 = vsel %vm3322, %v1953, %v3321
  %vm3324 = vcmask 1043459
  %v3325 = vsel %vm3324, %v1969, %v3323
  %vm3326 = vcmask 1044484
  %v3327 = vsel %vm3326, %v1985, %v3325
  %vm3328 = vcmask 1045509
  %v3329 = vsel %vm3328, %v2001, %v3327
  %vm3330 = vcmask 1046534
  %v3331 = vsel %vm3330, %v2017, %v3329
  %vm3332 = vcmask 1047559
  %v3333 = vsel %vm3332, %v2033, %v3331
  %v3334 = vsel %vm3320, %v1946, %v1930
  %v3335 = vsel %vm3322, %v1962, %v3334
  %v3336 = vsel %vm3324, %v1978, %v3335
  %v3337 = vsel %vm3326, %v1994, %v3336
  %v3338 = vsel %vm3328, %v2010, %v3337
  %v3339 = vsel %vm3330, %v2026, %v3338
  %v3340 = vsel %vm3332, %v2042, %v3339
  %v3358 = vsel %vm3320, %v3198, %v3182
  %v3359 = vsel %vm3322, %v3214, %v3358
  %v3360 = vsel %vm3324, %v3230, %v3359
  %v3361 = vsel %vm3326, %v3246, %v3360
  %v3362 = vsel %vm3328, %v3262, %v3361
  %v3363 = vsel %vm3330, %v3278, %v3362
  %v3364 = vsel %vm3332, %v3294, %v3363
  %v3365 = vsel %vm3320, %v3207, %v3191
  %v3366 = vsel %vm3322, %v3223, %v3365
  %v3367 = vsel %vm3324, %v3239, %v3366
  %v3368 = vsel %vm3326, %v3255, %v3367
  %v3369 = vsel %vm3328, %v3271, %v3368
  %v3370 = vsel %vm3330, %v3287, %v3369
  %v3371 = vsel %vm3332, %v3303, %v3370
  %v3373 = vld [vmem:[%s11] sm:$0xff]
  %v3374 = vld [vmem:[%s11 + $0x8] sm:$0xff]
  %v3375 = vld [vmem:[%s11 + $0x10] sm:$0xff]
  %v3376 = vld [vmem:[%s11 + $0x18] sm:$0xff]
  %v3377 = vld [vmem:[%s11 + $0x20] sm:$0xff]
  %v3378 = vld [vmem:[%s11 + $0x28] sm:$0xff]
  %v3379 = vld [vmem:[%s11 + $0x30] sm:$0xff]
  %v3380 = vld [vmem:[%s11 + $0x38] sm:$0xff]
  %v3381 = vld [vmem:[%s11 + $0x40] sm:$0xff]
  %v3382 = vld [vmem:[%s11 + $0x48] sm:$0xff]
  %v3383 = vld [vmem:[%s11 + $0x50] sm:$0xff]
  %v3384 = vld [vmem:[%s11 + $0x58] sm:$0xff]
  %v3385 = vld [vmem:[%s11 + $0x60] sm:$0xff]
  %v3386 = vld [vmem:[%s11 + $0x68] sm:$0xff]
  %v3387 = vld [vmem:[%s11 + $0x70] sm:$0xff]
  %v3388 = vld [vmem:[%s11 + $0x78] sm:$0xff]
  %v3389 = vld [vmem:[%s11 + $0x80] sm:$0xff]
  %v3390 = vld [vmem:[%s11 + $0x88] sm:$0xff]
  %v3391 = vld [vmem:[%s11 + $0x90] sm:$0xff]
  %v3392 = vld [vmem:[%s11 + $0x98] sm:$0xff]
  %v3393 = vld [vmem:[%s11 + $0xa0] sm:$0xff]
  %v3394 = vld [vmem:[%s11 + $0xa8] sm:$0xff]
  %v3395 = vld [vmem:[%s11 + $0xb0] sm:$0xff]
  %v3396 = vld [vmem:[%s11 + $0xb8] sm:$0xff]
  %v3397 = vld [vmem:[%s11 + $0xc0] sm:$0xff]
  %v3398 = vld [vmem:[%s11 + $0xc8] sm:$0xff]
  %v3399 = vld [vmem:[%s11 + $0xd0] sm:$0xff]
  %v3400 = vld [vmem:[%s11 + $0xd8] sm:$0xff]
  %v3401 = vld [vmem:[%s11 + $0xe0] sm:$0xff]
  %v3402 = vld [vmem:[%s11 + $0xe8] sm:$0xff]
  %v3403 = vld [vmem:[%s11 + $0xf0] sm:$0xff]
  %v3404 = vld [vmem:[%s11 + $0xf8] sm:$0x3]
  %v3405 = vld [vmem:[%s12] sm:$0x1]
  %v3407 = vlaneseq
  %v3408 = vshrl.u32 %v3407, 7
  %v3409 = vsub.s32 0, %v3408
  %v3410 = vrot.slane %v3405, %v3409
  %v3412 = vsel %vm1154, %v3340, 0
  %v3414 = vsel %vm1154, %v3371, 0
  %v3417 = vsel %vm1203, %v3404, 0
  %3419 = vmatprep.subr.mxu0 0.0
  %3420 = vmatpush1.msra.mxu0 %v3373
  %3421 = vmatprep.subr.mxu0 0.0
  %3422 = vmatpush1.msra.mxu0 %v3374
  %3423 = vmatprep.subr.mxu0 0.0
  %3424 = vmatpush1.msra.mxu0 %v3375
  %3425 = vmatprep.subr.mxu0 0.0
  %3426 = vmatpush1.msra.mxu0 %v3376
  %3427 = vmatprep.subr.mxu0 0.0
  %3428 = vmatpush1.msra.mxu0 %v3377
  %3429 = vmatprep.subr.mxu0 0.0
  %3430 = vmatpush1.msra.mxu0 %v3378
  %3431 = vmatprep.subr.mxu0 0.0
  %3432 = vmatpush1.msra.mxu0 %v3379
  %3433 = vmatprep.subr.mxu0 0.0
  %3434 = vmatpush1.msra.mxu0 %v3380
  %3435 = vmatprep.subr.mxu0 0.0
  %3436 = vmatpush1.msra.mxu0 %v3381
  %3437 = vmatprep.subr.mxu0 0.0
  %3438 = vmatpush1.msra.mxu0 %v3382
  %3439 = vmatprep.subr.mxu0 0.0
  %3440 = vmatpush1.msra.mxu0 %v3383
  %3441 = vmatprep.subr.mxu0 0.0
  %3442 = vmatpush1.msra.mxu0 %v3384
  %3443 = vmatprep.subr.mxu0 0.0
  %3444 = vmatpush1.msra.mxu0 %v3385
  %3445 = vmatprep.subr.mxu0 0.0
  %3446 = vmatpush1.msra.mxu0 %v3386
  %3447 = vmatprep.subr.mxu0 0.0
  %3448 = vmatpush1.msra.mxu0 %v3387
  %3449 = vmatprep.subr.mxu0 0.0
  %3450 = vmatpush1.msra.mxu0 %v3388
  %3451 = vmatprep.subr.mxu0 0.0
  %3452 = vmatpush1.msra.mxu0 %v3389
  %3453 = vmatprep.subr.mxu0 0.0
  %3454 = vmatpush1.msra.mxu0 %v3390
  %3455 = vmatprep.subr.mxu0 0.0
  %3456 = vmatpush1.msra.mxu0 %v3391
  %3457 = vmatprep.subr.mxu0 0.0
  %3458 = vmatpush1.msra.mxu0 %v3392
  %3459 = vmatprep.subr.mxu0 0.0
  %3460 = vmatpush1.msra.mxu0 %v3393
  %3461 = vmatprep.subr.mxu0 0.0
  %3462 = vmatpush1.msra.mxu0 %v3394
  %3463 = vmatprep.subr.mxu0 0.0
  %3464 = vmatpush1.msra.mxu0 %v3395
  %3465 = vmatprep.subr.mxu0 0.0
  %3466 = vmatpush1.msra.mxu0 %v3396
  %3467 = vmatprep.subr.mxu0 0.0
  %3468 = vmatpush1.msra.mxu0 %v3397
  %3469 = vmatprep.subr.mxu0 0.0
  %3470 = vmatpush1.msra.mxu0 %v3398
  %3471 = vmatprep.subr.mxu0 0.0
  %3472 = vmatpush1.msra.mxu0 %v3399
  %3473 = vmatprep.subr.mxu0 0.0
  %3474 = vmatpush1.msra.mxu0 %v3400
  %3475 = vmatprep.subr.mxu0 0.0
  %3476 = vmatpush1.msra.mxu0 %v3401
  %3477 = vmatprep.subr.mxu0 0.0
  %3478 = vmatpush1.msra.mxu0 %v3402
  %3479 = vmatprep.subr.mxu0 0.0
  %3480 = vmatpush1.msra.mxu0 %v3403
  %3481 = vmatprep.subr.mxu0 0.0
  %3482 = vmatpush1.msra.mxu0 %v3417
  %3483 = vmatprep.mubr.f32.mxu0 %v3412
  %3484 = vmatmul.mubr.f32.gmra.mrb[0].mxu0 %v3333
  %v3485 = vpop.f32.mrb[0].mxu0
  %v3486 = vadd.f32 %v3410, %v3485
  %v3487 = vpop.f32.mrb[0].mxu0
  %3488 = vmatprep.mubr.f32.mxu0 %v3414
  %3489 = vmatmul.mubr.f32.gmra.mrb[0].mxu0 %v3364
  %v3490 = vpop.f32.mrb[0].mxu0
  %v3491 = vadd.f32 %v3410, %v3490
  %v3492 = vpop.f32.mrb[0].mxu0
  %3493 = vdwg.mxu0
  %v3494 = vmax.f32 %v3486, 0.0
  %v3495 = vmax.f32 %v3491, 0.0
  %v3496 = vld [vmem:[%s3] sm:$0x3]
  %v3497 = vlaneseq
  %v3498 = vshrl.u32 %v3497, 7
  %v3499 = vsub.s32 0, %v3498
  %v3500 = vrot.slane %v3496, %v3499
  %3502 = vbcast.lane.b32.xlu0 %v3500, 256
  %v3503 = vpop.permute.xlu0 %3502
  %s3505 = sor.u32 256, 8
  %3506 = vbcast.lane.b32.xlu0 %v3500, %s3505
  %v3507 = vpop.permute.xlu0 %3506
  %v3508 = vlaneseq
  %v3509 = vshrl.u32 %v3508, 7
  %v3510 = vsub.s32 1, %v3509
  %v3511 = vrot.slane %v3496, %v3510
  %3513 = vbcast.lane.b32.xlu0 %v3511, 256
  %v3514 = vpop.permute.xlu0 %3513
  %s3516 = sor.u32 256, 8
  %3517 = vbcast.lane.b32.xlu0 %v3511, %s3516
  %v3518 = vpop.permute.xlu0 %3517
  %vm3519 = vcmp.gt.f32.partialorder %v3503, 0.0
  %vm3520 = vcmp.gt.f32.partialorder %v3507, 0.0
  %vm3521 = vcmp.gt.f32.partialorder %v3514, 0.0
  %vm3522 = vcmp.gt.f32.partialorder %v3518, 0.0
  %v3523 = vsel %vm3519, 1, 0
  %v3524 = vsel %vm3520, 1, 0
  %v3525 = vsel %vm3521, 1, 0
  %v3526 = vsel %vm3522, 1, 0
  %vm3527 = vcmp.eq.s32.totalorder %v3523, 1
  %vm3528 = vcmp.eq.s32.totalorder %v3524, 1
  %vm3529 = vcmp.eq.s32.totalorder %v3525, 1
  %vm3530 = vcmp.eq.s32.totalorder %v3526, 1
  %v3531 = vsel %vm3527, %v3494, -1e+30
  %v3532 = vsel %vm3528, %v3495, -1e+30
  %v3533 = vsel %vm3529, %v3494, -1e+30
  %v3534 = vsel %vm3530, %v3495, -1e+30
  %vm3535 = vcmask 408576
  %v3536 = vsel %vm3535, %v3531, -inf
  %v3537 = vsel %vm3535, %v3532, -inf
  %v3538 = vmax.f32 %v3536, %v3537
  %v3539 = vrot.slane %v3538, 4
  %v3540 = vmax.f32 %v3538, %v3539
  %v3541 = vrot.slane %v3540, 2
  %v3542 = vmax.f32 %v3540, %v3541
  %v3543 = vrot.slane %v3542, 1
  %v3544 = vmax.f32 %v3542, %v3543
  %v3545 = vsel %vm3535, %v3533, -inf
  %v3546 = vsel %vm3535, %v3534, -inf
  %v3547 = vmax.f32 %v3545, %v3546
  %v3548 = vrot.slane %v3547, 4
  %v3549 = vmax.f32 %v3547, %v3548
  %v3550 = vrot.slane %v3549, 2
  %v3551 = vmax.f32 %v3549, %v3550
  %v3552 = vrot.slane %v3551, 1
  %v3553 = vmax.f32 %v3551, %v3552
  %v3554 = vld [vmem:[%s13] sm:$0xff]
  %v3555 = vld [vmem:[%s13 + $0x8] sm:$0xff]
  %v3556 = vld [vmem:[%s13 + $0x10] sm:$0xff]
  %v3557 = vld [vmem:[%s13 + $0x18] sm:$0xff]
  %v3558 = vld [vmem:[%s13 + $0x20] sm:$0xff]
  %v3559 = vld [vmem:[%s13 + $0x28] sm:$0xff]
  %v3560 = vld [vmem:[%s13 + $0x30] sm:$0xff]
  %v3561 = vld [vmem:[%s13 + $0x38] sm:$0xff]
  %v3562 = vld [vmem:[%s13 + $0x40] sm:$0xff]
  %v3563 = vld [vmem:[%s13 + $0x48] sm:$0xff]
  %v3564 = vld [vmem:[%s13 + $0x50] sm:$0xff]
  %v3565 = vld [vmem:[%s13 + $0x58] sm:$0xff]
  %v3566 = vld [vmem:[%s13 + $0x60] sm:$0xff]
  %v3567 = vld [vmem:[%s13 + $0x68] sm:$0xff]
  %v3568 = vld [vmem:[%s13 + $0x70] sm:$0xff]
  %v3569 = vld [vmem:[%s13 + $0x78] sm:$0xff]
  %v3570 = vld [vmem:[%s13 + $0x80] sm:$0xff]
  %v3571 = vld [vmem:[%s13 + $0x88] sm:$0xff]
  %v3572 = vld [vmem:[%s13 + $0x90] sm:$0xff]
  %v3573 = vld [vmem:[%s13 + $0x98] sm:$0xff]
  %v3574 = vld [vmem:[%s13 + $0xa0] sm:$0xff]
  %v3575 = vld [vmem:[%s13 + $0xa8] sm:$0xff]
  %v3576 = vld [vmem:[%s13 + $0xb0] sm:$0xff]
  %v3577 = vld [vmem:[%s13 + $0xb8] sm:$0xff]
  %v3578 = vld [vmem:[%s13 + $0xc0] sm:$0x3]
  %v3579 = vld [vmem:[%s13 + $0xc8] sm:$0x3]
  %v3580 = vld [vmem:[%s13 + $0xd0] sm:$0x3]
  %v3581 = vld [vmem:[%s13 + $0xd8] sm:$0x3]
  %v3582 = vld [vmem:[%s4] sm:$0xf]
  %v3583 = vld [vmem:[%s14] sm:$0xff]
  %v3584 = vld [vmem:[%s14 + $0x8] sm:$0xff]
  %v3585 = vld [vmem:[%s14 + $0x10] sm:$0xff]
  %v3586 = vld [vmem:[%s14 + $0x18] sm:$0xff]
  %v3587 = vld [vmem:[%s14 + $0x20] sm:$0xff]
  %v3588 = vld [vmem:[%s14 + $0x28] sm:$0xff]
  %v3589 = vld [vmem:[%s14 + $0x30] sm:$0xff]
  %v3590 = vld [vmem:[%s14 + $0x38] sm:$0xff]
  %v3591 = vld [vmem:[%s14 + $0x40] sm:$0xff]
  %v3592 = vld [vmem:[%s14 + $0x48] sm:$0xff]
  %v3593 = vld [vmem:[%s14 + $0x50] sm:$0xff]
  %v3594 = vld [vmem:[%s14 + $0x58] sm:$0xff]
  %v3595 = vld [vmem:[%s14 + $0x60] sm:$0xff]
  %v3596 = vld [vmem:[%s14 + $0x68] sm:$0xff]
  %v3597 = vld [vmem:[%s14 + $0x70] sm:$0xff]
  %v3598 = vld [vmem:[%s14 + $0x78] sm:$0xff]
  %v3599 = vld [vmem:[%s14 + $0x80] sm:$0xff]
  %v3600 = vld [vmem:[%s14 + $0x88] sm:$0xff]
  %v3601 = vld [vmem:[%s14 + $0x90] sm:$0xff]
  %v3602 = vld [vmem:[%s14 + $0x98] sm:$0xff]
  %v3603 = vld [vmem:[%s14 + $0xa0] sm:$0xff]
  %v3604 = vld [vmem:[%s14 + $0xa8] sm:$0xff]
  %v3605 = vld [vmem:[%s14 + $0xb0] sm:$0xff]
  %v3606 = vld [vmem:[%s14 + $0xb8] sm:$0xff]
  %v3607 = vld [vmem:[%s14 + $0xc0] sm:$0xff]
  %v3608 = vld [vmem:[%s14 + $0xc8] sm:$0xff]
  %v3609 = vld [vmem:[%s14 + $0xd0] sm:$0xff]
  %v3610 = vld [vmem:[%s14 + $0xd8] sm:$0xff]
  %v3611 = vld [vmem:[%s14 + $0xe0] sm:$0xff]
  %v3612 = vld [vmem:[%s14 + $0xe8] sm:$0xff]
  %v3613 = vld [vmem:[%s14 + $0xf0] sm:$0xff]
  %v3614 = vld [vmem:[%s14 + $0xf8] sm:$0xff]
  %v3615 = vld [vmem:[%s14 + $0x100] sm:$0xff]
  %v3616 = vld [vmem:[%s14 + $0x108] sm:$0xff]
  %v3617 = vld [vmem:[%s14 + $0x110] sm:$0xff]
  %v3618 = vld [vmem:[%s14 + $0x118] sm:$0xff]
  %v3619 = vld [vmem:[%s14 + $0x120] sm:$0xff]
  %v3620 = vld [vmem:[%s14 + $0x128] sm:$0xff]
  %v3621 = vld [vmem:[%s14 + $0x130] sm:$0xff]
  %v3622 = vld [vmem:[%s14 + $0x138] sm:$0xff]
  %v3623 = vld [vmem:[%s14 + $0x140] sm:$0xff]
  %v3624 = vld [vmem:[%s14 + $0x148] sm:$0xff]
  %v3625 = vld [vmem:[%s14 + $0x150] sm:$0xff]
  %v3626 = vld [vmem:[%s14 + $0x158] sm:$0xff]
  %v3627 = vld [vmem:[%s14 + $0x160] sm:$0xff]
  %v3628 = vld [vmem:[%s14 + $0x168] sm:$0xff]
  %v3629 = vld [vmem:[%s14 + $0x170] sm:$0xff]
  %v3630 = vld [vmem:[%s14 + $0x178] sm:$0xff]
  %v3631 = vld [vmem:[%s14 + $0x180] sm:$0xff]
  %v3632 = vld [vmem:[%s14 + $0x188] sm:$0xff]
  %v3633 = vld [vmem:[%s14 + $0x190] sm:$0xff]
  %v3634 = vld [vmem:[%s14 + $0x198] sm:$0xff]
  %v3635 = vld [vmem:[%s14 + $0x1a0] sm:$0xff]
  %v3636 = vld [vmem:[%s14 + $0x1a8] sm:$0xff]
  %v3637 = vld [vmem:[%s14 + $0x1b0] sm:$0xff]
  %v3638 = vld [vmem:[%s14 + $0x1b8] sm:$0xff]
  %v3639 = vld [vmem:[%s14 + $0x1c0] sm:$0xff]
  %v3640 = vld [vmem:[%s14 + $0x1c8] sm:$0xff]
  %v3641 = vld [vmem:[%s14 + $0x1d0] sm:$0xff]
  %v3642 = vld [vmem:[%s14 + $0x1d8] sm:$0xff]
  %v3643 = vld [vmem:[%s14 + $0x1e0] sm:$0xff]
  %v3644 = vld [vmem:[%s14 + $0x1e8] sm:$0xff]
  %v3645 = vld [vmem:[%s14 + $0x1f0] sm:$0xff]
  %v3646 = vld [vmem:[%s14 + $0x1f8] sm:$0xff]
  %v3647 = vld [vmem:[%s14 + $0x200] sm:$0xff]
  %v3648 = vld [vmem:[%s14 + $0x208] sm:$0xff]
  %v3649 = vld [vmem:[%s14 + $0x210] sm:$0xff]
  %v3650 = vld [vmem:[%s14 + $0x218] sm:$0xff]
  %v3651 = vld [vmem:[%s14 + $0x220] sm:$0xff]
  %v3652 = vld [vmem:[%s14 + $0x228] sm:$0xff]
  %v3653 = vld [vmem:[%s14 + $0x230] sm:$0xff]
  %v3654 = vld [vmem:[%s14 + $0x238] sm:$0xff]
  %v3655 = vld [vmem:[%s14 + $0x240] sm:$0xff]
  %v3656 = vld [vmem:[%s14 + $0x248] sm:$0xff]
  %v3657 = vld [vmem:[%s14 + $0x250] sm:$0xff]
  %v3658 = vld [vmem:[%s14 + $0x258] sm:$0xff]
  %v3659 = vld [vmem:[%s14 + $0x260] sm:$0xff]
  %v3660 = vld [vmem:[%s14 + $0x268] sm:$0xff]
  %v3661 = vld [vmem:[%s14 + $0x270] sm:$0xff]
  %v3662 = vld [vmem:[%s14 + $0x278] sm:$0xff]
  %v3663 = vld [vmem:[%s14 + $0x280] sm:$0x1]
  %v3664 = vld [vmem:[%s14 + $0x288] sm:$0x1]
  %v3665 = vld [vmem:[%s14 + $0x290] sm:$0x1]
  %v3666 = vld [vmem:[%s14 + $0x298] sm:$0x1]
  %v3669 = vunpack.c.l.s4 1983009808
  %v3670 = vunpack.c.0.s8 %v3669
  %v3671 = vlaneseq
  %v3672 = vshrl.u32 %v3671, 7
  %v3673 = vsub.s32 %v3670, %v3672
  %v3674 = vrot.slane %v3582, %v3673
  %v3675 = vcombine.high %v3674, %v3674
  %vm3677 = vcmask 269312
  %v3678 = vsel %vm3677, %v3675, 0
  %v3681 = vsel %vm446, %v3663, 0
  %v3684 = vsel %vm446, %v3664, 0
  %v3687 = vsel %vm446, %v3665, 0
  %v3690 = vsel %vm446, %v3666, 0
  %3692 = vmatprep.subr.mxu0 %v3584
  %3693 = vmatpush1.msra.mxu0 %v3583
  %3694 = vmatprep.subr.mxu0 %v3588
  %3695 = vmatpush1.msra.mxu0 %v3587
  %3696 = vmatprep.subr.mxu0 %v3592
  %3697 = vmatpush1.msra.mxu0 %v3591
  %3698 = vmatprep.subr.mxu0 %v3596
  %3699 = vmatpush1.msra.mxu0 %v3595
  %3700 = vmatprep.subr.mxu0 %v3600
  %3701 = vmatpush1.msra.mxu0 %v3599
  %3702 = vmatprep.subr.mxu0 %v3604
  %3703 = vmatpush1.msra.mxu0 %v3603
  %3704 = vmatprep.subr.mxu0 %v3608
  %3705 = vmatpush1.msra.mxu0 %v3607
  %3706 = vmatprep.subr.mxu0 %v3612
  %3707 = vmatpush1.msra.mxu0 %v3611
  %3708 = vmatprep.subr.mxu0 %v3616
  %3709 = vmatpush1.msra.mxu0 %v3615
  %3710 = vmatprep.subr.mxu0 %v3620
  %3711 = vmatpush1.msra.mxu0 %v3619
  %3712 = vmatprep.subr.mxu0 %v3624
  %3713 = vmatpush1.msra.mxu0 %v3623
  %3714 = vmatprep.subr.mxu0 %v3628
  %3715 = vmatpush1.msra.mxu0 %v3627
  %3716 = vmatprep.subr.mxu0 %v3632
  %3717 = vmatpush1.msra.mxu0 %v3631
  %3718 = vmatprep.subr.mxu0 %v3636
  %3719 = vmatpush1.msra.mxu0 %v3635
  %3720 = vmatprep.subr.mxu0 %v3640
  %3721 = vmatpush1.msra.mxu0 %v3639
  %3722 = vmatprep.subr.mxu0 %v3644
  %3723 = vmatpush1.msra.mxu0 %v3643
  %3724 = vmatprep.subr.mxu0 %v3648
  %3725 = vmatpush1.msra.mxu0 %v3647
  %3726 = vmatprep.subr.mxu0 %v3652
  %3727 = vmatpush1.msra.mxu0 %v3651
  %3728 = vmatprep.subr.mxu0 %v3656
  %3729 = vmatpush1.msra.mxu0 %v3655
  %3730 = vmatprep.subr.mxu0 %v3660
  %3731 = vmatpush1.msra.mxu0 %v3659
  %3732 = vmatprep.subr.mxu0 %v3684
  %3733 = vmatpush1.msra.mxu0 %v3681
  %3734 = vmatprep.subr.mxu0 0.0
  %3735 = vmatpush1.msra.mxu0 0.0
  %3736 = vmatprep.subr.mxu0 0.0
  %3737 = vmatpush1.msra.mxu0 0.0
  %3738 = vmatprep.subr.mxu0 0.0
  %3739 = vmatpush1.msra.mxu0 0.0
  %3740 = vmatprep.subr.mxu0 0.0
  %3741 = vmatpush1.msra.mxu0 0.0
  %3742 = vmatprep.subr.mxu0 0.0
  %3743 = vmatpush1.msra.mxu0 0.0
  %3744 = vmatprep.subr.mxu0 0.0
  %3745 = vmatpush1.msra.mxu0 0.0
  %3746 = vmatprep.subr.mxu0 0.0
  %3747 = vmatpush1.msra.mxu0 0.0
  %3748 = vmatprep.subr.mxu0 0.0
  %3749 = vmatpush1.msra.mxu0 0.0
  %3750 = vmatprep.subr.mxu0 0.0
  %3751 = vmatpush1.msra.mxu0 0.0
  %3752 = vmatprep.subr.mxu0 0.0
  %3753 = vmatpush1.msra.mxu0 0.0
  %3754 = vmatprep.subr.mxu0 0.0
  %3755 = vmatpush1.msra.mxu0 0.0
  %3756 = vmatprep.mubr.f32.mxu0 %v3678
  %3757 = vmatmul.mubr.f32.gmra.mrb[0].mxu0 %v3674
  %v3758 = vpop.f32.mrb[0].mxu0
  %v3759 = vadd.f32 0.0, %v3758
  %v3760 = vpop.f32.mrb[0].mxu0
  %v3761 = vadd.f32 0.0, %v3760
  %3762 = vdwg.mxu0
  %3763 = vmatprep.subr.mxu0 %v3586
  %3764 = vmatpush1.msra.mxu0 %v3585
  %3765 = vmatprep.subr.mxu0 %v3590
  %3766 = vmatpush1.msra.mxu0 %v3589
  %3767 = vmatprep.subr.mxu0 %v3594
  %3768 = vmatpush1.msra.mxu0 %v3593
  %3769 = vmatprep.subr.mxu0 %v3598
  %3770 = vmatpush1.msra.mxu0 %v3597
  %3771 = vmatprep.subr.mxu0 %v3602
  %3772 = vmatpush1.msra.mxu0 %v3601
  %3773 = vmatprep.subr.mxu0 %v3606
  %3774 = vmatpush1.msra.mxu0 %v3605
  %3775 = vmatprep.subr.mxu0 %v3610
  %3776 = vmatpush1.msra.mxu0 %v3609
  %3777 = vmatprep.subr.mxu0 %v3614
  %3778 = vmatpush1.msra.mxu0 %v3613
  %3779 = vmatprep.subr.mxu0 %v3618
  %3780 = vmatpush1.msra.mxu0 %v3617
  %3781 = vmatprep.subr.mxu0 %v3622
  %3782 = vmatpush1.msra.mxu0 %v3621
  %3783 = vmatprep.subr.mxu0 %v3626
  %3784 = vmatpush1.msra.mxu0 %v3625
  %3785 = vmatprep.subr.mxu0 %v3630
  %3786 = vmatpush1.msra.mxu0 %v3629
  %3787 = vmatprep.subr.mxu0 %v3634
  %3788 = vmatpush1.msra.mxu0 %v3633
  %3789 = vmatprep.subr.mxu0 %v3638
  %3790 = vmatpush1.msra.mxu0 %v3637
  %3791 = vmatprep.subr.mxu0 %v3642
  %3792 = vmatpush1.msra.mxu0 %v3641
  %3793 = vmatprep.subr.mxu0 %v3646
  %3794 = vmatpush1.msra.mxu0 %v3645
  %3795 = vmatprep.subr.mxu0 %v3650
  %3796 = vmatpush1.msra.mxu0 %v3649
  %3797 = vmatprep.subr.mxu0 %v3654
  %3798 = vmatpush1.msra.mxu0 %v3653
  %3799 = vmatprep.subr.mxu0 %v3658
  %3800 = vmatpush1.msra.mxu0 %v3657
  %3801 = vmatprep.subr.mxu0 %v3662
  %3802 = vmatpush1.msra.mxu0 %v3661
  %3803 = vmatprep.subr.mxu0 %v3690
  %3804 = vmatpush1.msra.mxu0 %v3687
  %3805 = vmatprep.subr.mxu0 0.0
  %3806 = vmatpush1.msra.mxu0 0.0
  %3807 = vmatprep.subr.mxu0 0.0
  %3808 = vmatpush1.msra.mxu0 0.0
  %3809 = vmatprep.subr.mxu0 0.0
  %3810 = vmatpush1.msra.mxu0 0.0
  %3811 = vmatprep.subr.mxu0 0.0
  %3812 = vmatpush1.msra.mxu0 0.0
  %3813 = vmatprep.subr.mxu0 0.0
  %3814 = vmatpush1.msra.mxu0 0.0
  %3815 = vmatprep.subr.mxu0 0.0
  %3816 = vmatpush1.msra.mxu0 0.0
  %3817 = vmatprep.subr.mxu0 0.0
  %3818 = vmatpush1.msra.mxu0 0.0
  %3819 = vmatprep.subr.mxu0 0.0
  %3820 = vmatpush1.msra.mxu0 0.0
  %3821 = vmatprep.subr.mxu0 0.0
  %3822 = vmatpush1.msra.mxu0 0.0
  %3823 = vmatprep.subr.mxu0 0.0
  %3824 = vmatpush1.msra.mxu0 0.0
  %3825 = vmatprep.subr.mxu0 0.0
  %3826 = vmatpush1.msra.mxu0 0.0
  %3827 = vmatprep.mubr.f32.mxu0 %v3678
  %3828 = vmatmul.mubr.f32.gmra.mrb[0].mxu0 %v3674
  %v3829 = vpop.f32.mrb[0].mxu0
  %v3830 = vadd.f32 0.0, %v3829
  %v3831 = vpop.f32.mrb[0].mxu0
  %v3832 = vadd.f32 0.0, %v3831
  %3833 = vdwg.mxu0
  %v3836 = vsel %vm3320, %v3553, %v3544
  %v3837 = vsel %vm3535, %v3836, 0
  %v3840 = vsel %vm1203, %v3578, 0
  %v3843 = vsel %vm1203, %v3579, 0
  %v3846 = vsel %vm1203, %v3580, 0
  %v3849 = vsel %vm1203, %v3581, 0
  %3851 = vmatprep.subr.mxu0 %v3555
  %3852 = vmatpush1.msra.mxu0 %v3554
  %3853 = vmatprep.subr.mxu0 %v3559
  %3854 = vmatpush1.msra.mxu0 %v3558
  %3855 = vmatprep.subr.mxu0 %v3563
  %3856 = vmatpush1.msra.mxu0 %v3562
  %3857 = vmatprep.subr.mxu0 %v3567
  %3858 = vmatpush1.msra.mxu0 %v3566
  %3859 = vmatprep.subr.mxu0 %v3571
  %3860 = vmatpush1.msra.mxu0 %v3570
  %3861 = vmatprep.subr.mxu0 %v3575
  %3862 = vmatpush1.msra.mxu0 %v3574
  %3863 = vmatprep.subr.mxu0 %v3843
  %3864 = vmatpush1.msra.mxu0 %v3840
  %3865 = vmatprep.subr.mxu0 0.0
  %3866 = vmatpush1.msra.mxu0 0.0
  %3867 = vmatprep.subr.mxu0 0.0
  %3868 = vmatpush1.msra.mxu0 0.0
  %3869 = vmatprep.subr.mxu0 0.0
  %3870 = vmatpush1.msra.mxu0 0.0
  %3871 = vmatprep.subr.mxu0 0.0
  %3872 = vmatpush1.msra.mxu0 0.0
  %3873 = vmatprep.subr.mxu0 0.0
  %3874 = vmatpush1.msra.mxu0 0.0
  %3875 = vmatprep.subr.mxu0 0.0
  %3876 = vmatpush1.msra.mxu0 0.0
  %3877 = vmatprep.subr.mxu0 0.0
  %3878 = vmatpush1.msra.mxu0 0.0
  %3879 = vmatprep.subr.mxu0 0.0
  %3880 = vmatpush1.msra.mxu0 0.0
  %3881 = vmatprep.subr.mxu0 0.0
  %3882 = vmatpush1.msra.mxu0 0.0
  %3883 = vmatprep.subr.mxu0 0.0
  %3884 = vmatpush1.msra.mxu0 0.0
  %3885 = vmatprep.subr.mxu0 0.0
  %3886 = vmatpush1.msra.mxu0 0.0
  %3887 = vmatprep.subr.mxu0 0.0
  %3888 = vmatpush1.msra.mxu0 0.0
  %3889 = vmatprep.subr.mxu0 0.0
  %3890 = vmatpush1.msra.mxu0 0.0
  %3891 = vmatprep.subr.mxu0 0.0
  %3892 = vmatpush1.msra.mxu0 0.0
  %3893 = vmatprep.subr.mxu0 0.0
  %3894 = vmatpush1.msra.mxu0 0.0
  %3895 = vmatprep.subr.mxu0 0.0
  %3896 = vmatpush1.msra.mxu0 0.0
  %3897 = vmatprep.subr.mxu0 0.0
  %3898 = vmatpush1.msra.mxu0 0.0
  %3899 = vmatprep.subr.mxu0 0.0
  %3900 = vmatpush1.msra.mxu0 0.0
  %3901 = vmatprep.subr.mxu0 0.0
  %3902 = vmatpush1.msra.mxu0 0.0
  %3903 = vmatprep.subr.mxu0 0.0
  %3904 = vmatpush1.msra.mxu0 0.0
  %3905 = vmatprep.subr.mxu0 0.0
  %3906 = vmatpush1.msra.mxu0 0.0
  %3907 = vmatprep.subr.mxu0 0.0
  %3908 = vmatpush1.msra.mxu0 0.0
  %3909 = vmatprep.subr.mxu0 0.0
  %3910 = vmatpush1.msra.mxu0 0.0
  %3911 = vmatprep.subr.mxu0 0.0
  %3912 = vmatpush1.msra.mxu0 0.0
  %3913 = vmatprep.subr.mxu0 0.0
  %3914 = vmatpush1.msra.mxu0 0.0
  %3915 = vmatprep.mubr.f32.mxu0 0.0
  %3916 = vmatmul.mubr.f32.gmra.mrb[0].mxu0 %v3837
  %v3917 = vpop.f32.mrb[0].mxu0
  %v3918 = vadd.f32 %v3759, %v3917
  %v3919 = vpop.f32.mrb[0].mxu0
  %v3920 = vadd.f32 %v3761, %v3919
  %3921 = vdwg.mxu0
  %3922 = vmatprep.subr.mxu0 %v3557
  %3923 = vmatpush1.msra.mxu0 %v3556
  %3924 = vmatprep.subr.mxu0 %v3561
  %3925 = vmatpush1.msra.mxu0 %v3560
  %3926 = vmatprep.subr.mxu0 %v3565
  %3927 = vmatpush1.msra.mxu0 %v3564
  %3928 = vmatprep.subr.mxu0 %v3569
  %3929 = vmatpush1.msra.mxu0 %v3568
  %3930 = vmatprep.subr.mxu0 %v3573
  %3931 = vmatpush1.msra.mxu0 %v3572
  %3932 = vmatprep.subr.mxu0 %v3577
  %3933 = vmatpush1.msra.mxu0 %v3576
  %3934 = vmatprep.subr.mxu0 %v3849
  %3935 = vmatpush1.msra.mxu0 %v3846
  %3936 = vmatprep.subr.mxu0 0.0
  %3937 = vmatpush1.msra.mxu0 0.0
  %3938 = vmatprep.subr.mxu0 0.0
  %3939 = vmatpush1.msra.mxu0 0.0
  %3940 = vmatprep.subr.mxu0 0.0
  %3941 = vmatpush1.msra.mxu0 0.0
  %3942 = vmatprep.subr.mxu0 0.0
  %3943 = vmatpush1.msra.mxu0 0.0
  %3944 = vmatprep.subr.mxu0 0.0
  %3945 = vmatpush1.msra.mxu0 0.0
  %3946 = vmatprep.subr.mxu0 0.0
  %3947 = vmatpush1.msra.mxu0 0.0
  %3948 = vmatprep.subr.mxu0 0.0
  %3949 = vmatpush1.msra.mxu0 0.0
  %3950 = vmatprep.subr.mxu0 0.0
  %3951 = vmatpush1.msra.mxu0 0.0
  %3952 = vmatprep.subr.mxu0 0.0
  %3953 = vmatpush1.msra.mxu0 0.0
  %3954 = vmatprep.subr.mxu0 0.0
  %3955 = vmatpush1.msra.mxu0 0.0
  %3956 = vmatprep.subr.mxu0 0.0
  %3957 = vmatpush1.msra.mxu0 0.0
  %3958 = vmatprep.subr.mxu0 0.0
  %3959 = vmatpush1.msra.mxu0 0.0
  %3960 = vmatprep.subr.mxu0 0.0
  %3961 = vmatpush1.msra.mxu0 0.0
  %3962 = vmatprep.subr.mxu0 0.0
  %3963 = vmatpush1.msra.mxu0 0.0
  %3964 = vmatprep.subr.mxu0 0.0
  %3965 = vmatpush1.msra.mxu0 0.0
  %3966 = vmatprep.subr.mxu0 0.0
  %3967 = vmatpush1.msra.mxu0 0.0
  %3968 = vmatprep.subr.mxu0 0.0
  %3969 = vmatpush1.msra.mxu0 0.0
  %3970 = vmatprep.subr.mxu0 0.0
  %3971 = vmatpush1.msra.mxu0 0.0
  %3972 = vmatprep.subr.mxu0 0.0
  %3973 = vmatpush1.msra.mxu0 0.0
  %3974 = vmatprep.subr.mxu0 0.0
  %3975 = vmatpush1.msra.mxu0 0.0
  %3976 = vmatprep.subr.mxu0 0.0
  %3977 = vmatpush1.msra.mxu0 0.0
  %3978 = vmatprep.subr.mxu0 0.0
  %3979 = vmatpush1.msra.mxu0 0.0
  %3980 = vmatprep.subr.mxu0 0.0
  %3981 = vmatpush1.msra.mxu0 0.0
  %3982 = vmatprep.subr.mxu0 0.0
  %3983 = vmatpush1.msra.mxu0 0.0
  %3984 = vmatprep.subr.mxu0 0.0
  %3985 = vmatpush1.msra.mxu0 0.0
  %3986 = vmatprep.mubr.f32.mxu0 0.0
  %3987 = vmatmul.mubr.f32.gmra.mrb[0].mxu0 %v3837
  %v3988 = vpop.f32.mrb[0].mxu0
  %v3989 = vadd.f32 %v3830, %v3988
  %v3990 = vpop.f32.mrb[0].mxu0
  %v3991 = vadd.f32 %v3832, %v3990
  %3992 = vdwg.mxu0
  %v3993 = vld [vmem:[%s15] sm:$0xf]
  %v3995 = vlaneseq
  %v3996 = vshrl.u32 %v3995, 7
  %v3997 = vsub.s32 0, %v3996
  %v3998 = vrot.slane %v3993, %v3997
  %v3999 = vlaneseq
  %v4000 = vshrl.u32 %v3999, 7
  %v4001 = vsub.s32 1, %v4000
  %v4002 = vrot.slane %v3993, %v4001
  %v4003 = vlaneseq
  %v4004 = vshrl.u32 %v4003, 7
  %v4005 = vsub.s32 2, %v4004
  %v4006 = vrot.slane %v3993, %v4005
  %v4007 = vlaneseq
  %v4008 = vshrl.u32 %v4007, 7
  %v4009 = vsub.s32 3, %v4008
  %v4010 = vrot.slane %v3993, %v4009
  %v4015 = vadd.f32 %v3918, %v3998
  %v4016 = vadd.f32 %v3920, %v4002
  %v4017 = vadd.f32 %v3989, %v4006
  %v4018 = vadd.f32 %v3991, %v4010
  %v4019 = vmax.f32 %v4015, 0.0
  %v4020 = vmax.f32 %v4016, 0.0
  %v4021 = vmax.f32 %v4017, 0.0
  %v4022 = vmax.f32 %v4018, 0.0
  %v4023 = vld [vmem:[%s16] sm:$0xff]
  %v4024 = vld [vmem:[%s16 + $0x8] sm:$0xff]
  %v4025 = vld [vmem:[%s16 + $0x10] sm:$0xff]
  %v4026 = vld [vmem:[%s16 + $0x18] sm:$0xff]
  %v4027 = vld [vmem:[%s16 + $0x20] sm:$0xff]
  %v4028 = vld [vmem:[%s16 + $0x28] sm:$0xff]
  %v4029 = vld [vmem:[%s16 + $0x30] sm:$0xff]
  %v4030 = vld [vmem:[%s16 + $0x38] sm:$0xff]
  %v4031 = vld [vmem:[%s16 + $0x40] sm:$0xff]
  %v4032 = vld [vmem:[%s16 + $0x48] sm:$0xff]
  %v4033 = vld [vmem:[%s16 + $0x50] sm:$0xff]
  %v4034 = vld [vmem:[%s16 + $0x58] sm:$0xff]
  %v4035 = vld [vmem:[%s16 + $0x60] sm:$0xff]
  %v4036 = vld [vmem:[%s16 + $0x68] sm:$0xff]
  %v4037 = vld [vmem:[%s16 + $0x70] sm:$0xff]
  %v4038 = vld [vmem:[%s16 + $0x78] sm:$0xff]
  %v4039 = vld [vmem:[%s16 + $0x80] sm:$0xff]
  %v4040 = vld [vmem:[%s16 + $0x88] sm:$0xff]
  %v4041 = vld [vmem:[%s16 + $0x90] sm:$0xff]
  %v4042 = vld [vmem:[%s16 + $0x98] sm:$0xff]
  %v4043 = vld [vmem:[%s16 + $0xa0] sm:$0xff]
  %v4044 = vld [vmem:[%s16 + $0xa8] sm:$0xff]
  %v4045 = vld [vmem:[%s16 + $0xb0] sm:$0xff]
  %v4046 = vld [vmem:[%s16 + $0xb8] sm:$0xff]
  %v4047 = vld [vmem:[%s16 + $0xc0] sm:$0xff]
  %v4048 = vld [vmem:[%s16 + $0xc8] sm:$0xff]
  %v4049 = vld [vmem:[%s16 + $0xd0] sm:$0xff]
  %v4050 = vld [vmem:[%s16 + $0xd8] sm:$0xff]
  %v4051 = vld [vmem:[%s16 + $0xe0] sm:$0xff]
  %v4052 = vld [vmem:[%s16 + $0xe8] sm:$0xff]
  %v4053 = vld [vmem:[%s16 + $0xf0] sm:$0xff]
  %v4054 = vld [vmem:[%s16 + $0xf8] sm:$0xff]
  %v4055 = vld [vmem:[%s16 + $0x100] sm:$0xff]
  %v4056 = vld [vmem:[%s16 + $0x108] sm:$0xff]
  %v4057 = vld [vmem:[%s16 + $0x110] sm:$0xff]
  %v4058 = vld [vmem:[%s16 + $0x118] sm:$0xff]
  %v4059 = vld [vmem:[%s16 + $0x120] sm:$0xff]
  %v4060 = vld [vmem:[%s16 + $0x128] sm:$0xff]
  %v4061 = vld [vmem:[%s16 + $0x130] sm:$0xff]
  %v4062 = vld [vmem:[%s16 + $0x138] sm:$0xff]
  %v4063 = vld [vmem:[%s16 + $0x140] sm:$0xff]
  %v4064 = vld [vmem:[%s16 + $0x148] sm:$0xff]
  %v4065 = vld [vmem:[%s16 + $0x150] sm:$0xff]
  %v4066 = vld [vmem:[%s16 + $0x158] sm:$0xff]
  %v4067 = vld [vmem:[%s16 + $0x160] sm:$0xff]
  %v4068 = vld [vmem:[%s16 + $0x168] sm:$0xff]
  %v4069 = vld [vmem:[%s16 + $0x170] sm:$0xff]
  %v4070 = vld [vmem:[%s16 + $0x178] sm:$0xff]
  %v4071 = vld [vmem:[%s16 + $0x180] sm:$0xff]
  %v4072 = vld [vmem:[%s16 + $0x188] sm:$0xff]
  %v4073 = vld [vmem:[%s16 + $0x190] sm:$0xff]
  %v4074 = vld [vmem:[%s16 + $0x198] sm:$0xff]
  %v4075 = vld [vmem:[%s16 + $0x1a0] sm:$0xff]
  %v4076 = vld [vmem:[%s16 + $0x1a8] sm:$0xff]
  %v4077 = vld [vmem:[%s16 + $0x1b0] sm:$0xff]
  %v4078 = vld [vmem:[%s16 + $0x1b8] sm:$0xff]
  %v4079 = vld [vmem:[%s16 + $0x1c0] sm:$0xff]
  %v4080 = vld [vmem:[%s16 + $0x1c8] sm:$0xff]
  %v4081 = vld [vmem:[%s16 + $0x1d0] sm:$0xff]
  %v4082 = vld [vmem:[%s16 + $0x1d8] sm:$0xff]
  %v4083 = vld [vmem:[%s16 + $0x1e0] sm:$0xff]
  %v4084 = vld [vmem:[%s16 + $0x1e8] sm:$0xff]
  %v4085 = vld [vmem:[%s16 + $0x1f0] sm:$0xff]
  %v4086 = vld [vmem:[%s16 + $0x1f8] sm:$0xff]
  %v4087 = vld [vmem:[%s17] sm:$0x1]
  %v4089 = vlaneseq
  %v4090 = vshrl.u32 %v4089, 7
  %v4091 = vsub.s32 0, %v4090
  %v4092 = vrot.slane %v4087, %v4091
  %4094 = vmatprep.subr.mxu0 0.0
  %4095 = vmatpush1.msra.mxu0 %v4023
  %4096 = vmatprep.subr.mxu0 0.0
  %4097 = vmatpush1.msra.mxu0 %v4024
  %4098 = vmatprep.subr.mxu0 0.0
  %4099 = vmatpush1.msra.mxu0 %v4025
  %4100 = vmatprep.subr.mxu0 0.0
  %4101 = vmatpush1.msra.mxu0 %v4026
  %4102 = vmatprep.subr.mxu0 0.0
  %4103 = vmatpush1.msra.mxu0 %v4027
  %4104 = vmatprep.subr.mxu0 0.0
  %4105 = vmatpush1.msra.mxu0 %v4028
  %4106 = vmatprep.subr.mxu0 0.0
  %4107 = vmatpush1.msra.mxu0 %v4029
  %4108 = vmatprep.subr.mxu0 0.0
  %4109 = vmatpush1.msra.mxu0 %v4030
  %4110 = vmatprep.subr.mxu0 0.0
  %4111 = vmatpush1.msra.mxu0 %v4031
  %4112 = vmatprep.subr.mxu0 0.0
  %4113 = vmatpush1.msra.mxu0 %v4032
  %4114 = vmatprep.subr.mxu0 0.0
  %4115 = vmatpush1.msra.mxu0 %v4033
  %4116 = vmatprep.subr.mxu0 0.0
  %4117 = vmatpush1.msra.mxu0 %v4034
  %4118 = vmatprep.subr.mxu0 0.0
  %4119 = vmatpush1.msra.mxu0 %v4035
  %4120 = vmatprep.subr.mxu0 0.0
  %4121 = vmatpush1.msra.mxu0 %v4036
  %4122 = vmatprep.subr.mxu0 0.0
  %4123 = vmatpush1.msra.mxu0 %v4037
  %4124 = vmatprep.subr.mxu0 0.0
  %4125 = vmatpush1.msra.mxu0 %v4038
  %4126 = vmatprep.subr.mxu0 0.0
  %4127 = vmatpush1.msra.mxu0 %v4039
  %4128 = vmatprep.subr.mxu0 0.0
  %4129 = vmatpush1.msra.mxu0 %v4040
  %4130 = vmatprep.subr.mxu0 0.0
  %4131 = vmatpush1.msra.mxu0 %v4041
  %4132 = vmatprep.subr.mxu0 0.0
  %4133 = vmatpush1.msra.mxu0 %v4042
  %4134 = vmatprep.subr.mxu0 0.0
  %4135 = vmatpush1.msra.mxu0 %v4043
  %4136 = vmatprep.subr.mxu0 0.0
  %4137 = vmatpush1.msra.mxu0 %v4044
  %4138 = vmatprep.subr.mxu0 0.0
  %4139 = vmatpush1.msra.mxu0 %v4045
  %4140 = vmatprep.subr.mxu0 0.0
  %4141 = vmatpush1.msra.mxu0 %v4046
  %4142 = vmatprep.subr.mxu0 0.0
  %4143 = vmatpush1.msra.mxu0 %v4047
  %4144 = vmatprep.subr.mxu0 0.0
  %4145 = vmatpush1.msra.mxu0 %v4048
  %4146 = vmatprep.subr.mxu0 0.0
  %4147 = vmatpush1.msra.mxu0 %v4049
  %4148 = vmatprep.subr.mxu0 0.0
  %4149 = vmatpush1.msra.mxu0 %v4050
  %4150 = vmatprep.subr.mxu0 0.0
  %4151 = vmatpush1.msra.mxu0 %v4051
  %4152 = vmatprep.subr.mxu0 0.0
  %4153 = vmatpush1.msra.mxu0 %v4052
  %4154 = vmatprep.subr.mxu0 0.0
  %4155 = vmatpush1.msra.mxu0 %v4053
  %4156 = vmatprep.subr.mxu0 0.0
  %4157 = vmatpush1.msra.mxu0 %v4054
  %4158 = vmatprep.mubr.f32.mxu0 %v4020
  %4159 = vmatmul.mubr.f32.gmra.mrb[0].mxu0 %v4019
  %v4160 = vpop.f32.mrb[0].mxu0
  %v4161 = vadd.f32 %v4092, %v4160
  %v4162 = vpop.f32.mrb[0].mxu0
  %4163 = vdwg.mxu0
  %4164 = vmatprep.subr.mxu0 0.0
  %4165 = vmatpush1.msra.mxu0 %v4055
  %4166 = vmatprep.subr.mxu0 0.0
  %4167 = vmatpush1.msra.mxu0 %v4056
  %4168 = vmatprep.subr.mxu0 0.0
  %4169 = vmatpush1.msra.mxu0 %v4057
  %4170 = vmatprep.subr.mxu0 0.0
  %4171 = vmatpush1.msra.mxu0 %v4058
  %4172 = vmatprep.subr.mxu0 0.0
  %4173 = vmatpush1.msra.mxu0 %v4059
  %4174 = vmatprep.subr.mxu0 0.0
  %4175 = vmatpush1.msra.mxu0 %v4060
  %4176 = vmatprep.subr.mxu0 0.0
  %4177 = vmatpush1.msra.mxu0 %v4061
  %4178 = vmatprep.subr.mxu0 0.0
  %4179 = vmatpush1.msra.mxu0 %v4062
  %4180 = vmatprep.subr.mxu0 0.0
  %4181 = vmatpush1.msra.mxu0 %v4063
  %4182 = vmatprep.subr.mxu0 0.0
  %4183 = vmatpush1.msra.mxu0 %v4064
  %4184 = vmatprep.subr.mxu0 0.0
  %4185 = vmatpush1.msra.mxu0 %v4065
  %4186 = vmatprep.subr.mxu0 0.0
  %4187 = vmatpush1.msra.mxu0 %v4066
  %4188 = vmatprep.subr.mxu0 0.0
  %4189 = vmatpush1.msra.mxu0 %v4067
  %4190 = vmatprep.subr.mxu0 0.0
  %4191 = vmatpush1.msra.mxu0 %v4068
  %4192 = vmatprep.subr.mxu0 0.0
  %4193 = vmatpush1.msra.mxu0 %v4069
  %4194 = vmatprep.subr.mxu0 0.0
  %4195 = vmatpush1.msra.mxu0 %v4070
  %4196 = vmatprep.subr.mxu0 0.0
  %4197 = vmatpush1.msra.mxu0 %v4071
  %4198 = vmatprep.subr.mxu0 0.0
  %4199 = vmatpush1.msra.mxu0 %v4072
  %4200 = vmatprep.subr.mxu0 0.0
  %4201 = vmatpush1.msra.mxu0 %v4073
  %4202 = vmatprep.subr.mxu0 0.0
  %4203 = vmatpush1.msra.mxu0 %v4074
  %4204 = vmatprep.subr.mxu0 0.0
  %4205 = vmatpush1.msra.mxu0 %v4075
  %4206 = vmatprep.subr.mxu0 0.0
  %4207 = vmatpush1.msra.mxu0 %v4076
  %4208 = vmatprep.subr.mxu0 0.0
  %4209 = vmatpush1.msra.mxu0 %v4077
  %4210 = vmatprep.subr.mxu0 0.0
  %4211 = vmatpush1.msra.mxu0 %v4078
  %4212 = vmatprep.subr.mxu0 0.0
  %4213 = vmatpush1.msra.mxu0 %v4079
  %4214 = vmatprep.subr.mxu0 0.0
  %4215 = vmatpush1.msra.mxu0 %v4080
  %4216 = vmatprep.subr.mxu0 0.0
  %4217 = vmatpush1.msra.mxu0 %v4081
  %4218 = vmatprep.subr.mxu0 0.0
  %4219 = vmatpush1.msra.mxu0 %v4082
  %4220 = vmatprep.subr.mxu0 0.0
  %4221 = vmatpush1.msra.mxu0 %v4083
  %4222 = vmatprep.subr.mxu0 0.0
  %4223 = vmatpush1.msra.mxu0 %v4084
  %4224 = vmatprep.subr.mxu0 0.0
  %4225 = vmatpush1.msra.mxu0 %v4085
  %4226 = vmatprep.subr.mxu0 0.0
  %4227 = vmatpush1.msra.mxu0 %v4086
  %4228 = vmatprep.mubr.f32.mxu0 %v4022
  %4229 = vmatmul.mubr.f32.gmra.mrb[0].mxu0 %v4021
  %v4230 = vpop.f32.mrb[0].mxu0
  %v4231 = vadd.f32 %v4161, %v4230
  %v4232 = vpop.f32.mrb[0].mxu0
  %4233 = vdwg.mxu0
  %v4234 = vmax.f32 %v4231, 0.0
  %v4235 = vld [vmem:[%s18] sm:$0xff]
  %v4236 = vld [vmem:[%s18 + $0x8] sm:$0xff]
  %v4237 = vld [vmem:[%s18 + $0x10] sm:$0xff]
  %v4238 = vld [vmem:[%s18 + $0x18] sm:$0xff]
  %v4239 = vld [vmem:[%s18 + $0x20] sm:$0xff]
  %v4240 = vld [vmem:[%s18 + $0x28] sm:$0xff]
  %v4241 = vld [vmem:[%s18 + $0x30] sm:$0xff]
  %v4242 = vld [vmem:[%s18 + $0x38] sm:$0xff]
  %v4243 = vld [vmem:[#allocation2] sm:$0x1]
  %v4245 = vlaneseq
  %v4246 = vshrl.u32 %v4245, 7
  %v4247 = vsub.s32 0, %v4246
  %v4248 = vrot.slane %v4243, %v4247
  %vm4250 = vcmask 523264
  %v4252 = vsel %vm4250, %v4234, 0
  %4254 = vmatprep.subr.mxu0 0.0
  %4255 = vmatpush1.msra.mxu0 %v4235
  %4256 = vmatprep.subr.mxu0 0.0
  %4257 = vmatpush1.msra.mxu0 %v4236
  %4258 = vmatprep.subr.mxu0 0.0
  %4259 = vmatpush1.msra.mxu0 %v4237
  %4260 = vmatprep.subr.mxu0 0.0
  %4261 = vmatpush1.msra.mxu0 %v4238
  %4262 = vmatprep.subr.mxu0 0.0
  %4263 = vmatpush1.msra.mxu0 %v4239
  %4264 = vmatprep.subr.mxu0 0.0
  %4265 = vmatpush1.msra.mxu0 %v4240
  %4266 = vmatprep.subr.mxu0 0.0
  %4267 = vmatpush1.msra.mxu0 %v4241
  %4268 = vmatprep.subr.mxu0 0.0
  %4269 = vmatpush1.msra.mxu0 %v4242
  %4270 = vmatprep.subr.mxu0 0.0
  %4271 = vmatpush1.msra.mxu0 0.0
  %4272 = vmatprep.subr.mxu0 0.0
  %4273 = vmatpush1.msra.mxu0 0.0
  %4274 = vmatprep.subr.mxu0 0.0
  %4275 = vmatpush1.msra.mxu0 0.0
  %4276 = vmatprep.subr.mxu0 0.0
  %4277 = vmatpush1.msra.mxu0 0.0
  %4278 = vmatprep.subr.mxu0 0.0
  %4279 = vmatpush1.msra.mxu0 0.0
  %4280 = vmatprep.subr.mxu0 0.0
  %4281 = vmatpush1.msra.mxu0 0.0
  %4282 = vmatprep.subr.mxu0 0.0
  %4283 = vmatpush1.msra.mxu0 0.0
  %4284 = vmatprep.subr.mxu0 0.0
  %4285 = vmatpush1.msra.mxu0 0.0
  %4286 = vmatprep.subr.mxu0 0.0
  %4287 = vmatpush1.msra.mxu0 0.0
  %4288 = vmatprep.subr.mxu0 0.0
  %4289 = vmatpush1.msra.mxu0 0.0
  %4290 = vmatprep.subr.mxu0 0.0
  %4291 = vmatpush1.msra.mxu0 0.0
  %4292 = vmatprep.subr.mxu0 0.0
  %4293 = vmatpush1.msra.mxu0 0.0
  %4294 = vmatprep.subr.mxu0 0.0
  %4295 = vmatpush1.msra.mxu0 0.0
  %4296 = vmatprep.subr.mxu0 0.0
  %4297 = vmatpush1.msra.mxu0 0.0
  %4298 = vmatprep.subr.mxu0 0.0
  %4299 = vmatpush1.msra.mxu0 0.0
  %4300 = vmatprep.subr.mxu0 0.0
  %4301 = vmatpush1.msra.mxu0 0.0
  %4302 = vmatprep.subr.mxu0 0.0
  %4303 = vmatpush1.msra.mxu0 0.0
  %4304 = vmatprep.subr.mxu0 0.0
  %4305 = vmatpush1.msra.mxu0 0.0
  %4306 = vmatprep.subr.mxu0 0.0
  %4307 = vmatpush1.msra.mxu0 0.0
  %4308 = vmatprep.subr.mxu0 0.0
  %4309 = vmatpush1.msra.mxu0 0.0
  %4310 = vmatprep.subr.mxu0 0.0
  %4311 = vmatpush1.msra.mxu0 0.0
  %4312 = vmatprep.subr.mxu0 0.0
  %4313 = vmatpush1.msra.mxu0 0.0
  %4314 = vmatprep.subr.mxu0 0.0
  %4315 = vmatpush1.msra.mxu0 0.0
  %4316 = vmatprep.subr.mxu0 0.0
  %4317 = vmatpush1.msra.mxu0 0.0
  %4318 = vmatprep.mubr.f32.mxu0 0.0
  %4319 = vmatmul.mubr.f32.gmra.mrb[0].mxu0 %v4252
  %v4320 = vpop.f32.mrb[0].mxu0
  %v4321 = vadd.f32 %v4248, %v4320
  %v4322 = vpop.f32.mrb[0].mxu0
  %4323 = vdwg.mxu0
  %vm4324 = vcmask 1024
  %4325 = vst.msk [vmem:[%s20] sm:$0x3] %vm4324, %v4321
  // Predicated region
  $region82: #{net_forward.1} parent=0 // pred_check
    _
  $region83: #{net_forward.1} parent=0 // pred_check_branch
    %4327 = sbr.rel (0) target = $region85
  $region84: #{net_forward.1} parent=0 // pred_region
    _
  $region85: #{net_forward.1} parent=0 // pred_fallthru
    _
  // Predicated region
  $region86: #{net_forward.1} parent=0 // pred_check
    _
  $region87: #{net_forward.1} parent=0 // pred_check_branch
    %4329 = sbr.rel (0) target = $region89
  $region88: #{net_forward.1} parent=0 // pred_region
    _
  $region89: #{net_forward.1} parent=0 // pred_fallthru
    _

</llo_original>
